<compile_context>
chip_gen: v7x
topology: tpu7x:2x2x1
jax: 0.10.0
libtpu: 0.0.40
codegen_flags: <defaults>
</compile_context>

<pallas_src>
import jax
import jax.numpy as jnp
from jax.experimental import pallas as pl
from jax.experimental.pallas import tpu as pltpu


def _round_up(x, m):
    return -(-x // m) * m


# ---------------------------------------------------------------------------
# Kernel 1: fused masked GRU over all padded sequence groups.
#   grid = (G,) groups; scalar-prefetch widx[g] picks the encoder weight slab.
#   Output = hidden state at the last valid timestep of every row
#   (== pack_padded_sequence + gather(out[len-1]) semantics).
# ---------------------------------------------------------------------------
def fused_gru_kernel(widx_ref,                       # (G,) SMEM (index_maps only)
                     emb_ref, len_ref,               # (1, T*N, E), (1, N, 1)
                     wir_ref, wiz_ref, win_ref,      # (1, E, H) each
                     whr_ref, whz_ref, whn_ref,      # (1, H, H) each
                     br_ref, bz_ref, bin_ref, bhn_ref,   # (1, 1, H) each
                     out_ref):                       # (1, N, H)
    del widx_ref
    N, H = out_ref.shape[1], out_ref.shape[2]
    T = emb_ref.shape[1] // N

    emb = emb_ref[0]                                 # (T*N, E), row = t*N + n

    # Input projections hoisted out of the recurrence (one matmul per gate);
    # r/z hidden biases were pre-folded into br/bz by the wrapper.
    gi_r = jnp.dot(emb, wir_ref[0], preferred_element_type=jnp.float32) + br_ref[0]
    gi_z = jnp.dot(emb, wiz_ref[0], preferred_element_type=jnp.float32) + bz_ref[0]
    gi_n = jnp.dot(emb, win_ref[0], preferred_element_type=jnp.float32) + bin_ref[0]

    w_r, w_z, w_n = whr_ref[0], whz_ref[0], whn_ref[0]
    b_hn = jnp.broadcast_to(bhn_ref[0], (N, H))      # hoisted broadcast
    lengths = len_ref[0]                             # (N, 1) int32

    h = jnp.zeros((N, H), dtype=jnp.float32)
    for t in range(T):                               # static unroll (T small)
        gh_r = jnp.dot(h, w_r, preferred_element_type=jnp.float32)
        gh_z = jnp.dot(h, w_z, preferred_element_type=jnp.float32)
        gh_n = jnp.dot(h, w_n, preferred_element_type=jnp.float32)
        sl = slice(t * N, (t + 1) * N)
        r = jax.nn.sigmoid(gi_r[sl] + gh_r)
        z = jax.nn.sigmoid(gi_z[sl] + gh_z)
        n = jnp.tanh(gi_n[sl] + r * (gh_n + b_hn))
        h_new = (1.0 - z) * n + z * h
        # freeze the hidden state once t >= length[row] (padding positions)
        h = jnp.where(t < lengths, h_new, h)
    out_ref[0] = h


def fused_gru(emb_all, len_all, widx, gw):
    """emb_all: (G, T*N, E) f32, len_all: (G, N, 1) i32, widx: (G,) i32."""
    G, TN, E = emb_all.shape
    N = len_all.shape[1]
    H = gw["whr"].shape[-1]

    def by_group(*shape):
        zeros = (0,) * len(shape)
        return pl.BlockSpec((1,) + shape, lambda g, w: (g,) + zeros)

    def by_weight(*shape):
        zeros = (0,) * len(shape)
        return pl.BlockSpec((1,) + shape, lambda g, w: (w[g],) + zeros)

    grid_spec = pltpu.PrefetchScalarGridSpec(
        num_scalar_prefetch=1,
        grid=(G,),
        in_specs=[
            by_group(TN, E),                         # embedded tokens
            by_group(N, 1),                          # lengths
            by_weight(E, H), by_weight(E, H), by_weight(E, H),   # W_i{r,z,n}
            by_weight(H, H), by_weight(H, H), by_weight(H, H),   # W_h{r,z,n}
            by_weight(1, H), by_weight(1, H),
            by_weight(1, H), by_weight(1, H),                     # biases
        ],
        out_specs=pl.BlockSpec((1, N, H), lambda g, w: (g, 0, 0)),
    )
    return pl.pallas_call(
        fused_gru_kernel,
        out_shape=jax.ShapeDtypeStruct((G, N, H), jnp.float32),
        grid_spec=grid_spec,
        compiler_params=pltpu.CompilerParams(
            dimension_semantics=("parallel",)),      # v7x: groups across 2 TCs
    )(widx, emb_all, len_all,
      gw["wir"], gw["wiz"], gw["win"],
      gw["whr"], gw["whz"], gw["whn"],
      gw["br"], gw["bz"], gw["bin"], gw["bhn"])


# ---------------------------------------------------------------------------
# Kernel 2: REM ensemble heads, all K heads + all rows in one lane-dense call.
#   z: (N, 4H) -> q: (N, K)  with stacked (4H,K*H), block-diag (K*H,K*H),
#   stacked (K*H,K) weights (mathematically identical to K independent heads).
# ---------------------------------------------------------------------------
def rem_heads_kernel(z_ref, w1_ref, b1_ref, w2_ref, b2_ref, w3_ref, b3_ref,
                     out_ref):
    z = z_ref[...]                                                    # (N, 4H)
    h1 = jnp.maximum(
        jnp.dot(z, w1_ref[...], preferred_element_type=jnp.float32)
        + b1_ref[...], 0.0)                                           # (N, K*H)
    h2 = jnp.maximum(
        jnp.dot(h1, w2_ref[...], preferred_element_type=jnp.float32)
        + b2_ref[...], 0.0)                                           # (N, K*H)
    out_ref[...] = (
        jnp.dot(h2, w3_ref[...], preferred_element_type=jnp.float32)
        + b3_ref[...])                                                # (N, K)


def rem_heads_all(z, hw):
    n = z.shape[0]
    K = hw["b3"].shape[1]
    vmem = pl.BlockSpec(memory_space=pltpu.MemorySpace.VMEM)
    return pl.pallas_call(
        rem_heads_kernel,
        out_shape=jax.ShapeDtypeStruct((n, K), jnp.float32),
        in_specs=[vmem] * 7,
        out_specs=vmem,
    )(z, hw["w1"], hw["b1"], hw["w2"], hw["b2"], hw["w3"], hw["b3"])


# ---------------------------------------------------------------------------
# Host-side weight preparation (plain JAX glue, done once per forward).
# ---------------------------------------------------------------------------
def prepare_gru_weights(params, H):
    """Split each encoder's GRU weights per gate; stack along encoder axis."""
    grus = [params["obs_gru"], params["look_gru"], params["act_gru"],
            params["inv_gru"]]                       # index 0,1,2,3

    def split(g):
        wih, whh = g["wih_t"], g["whh_t"]            # (E,3H), (H,3H)
        bih = g["bih"].reshape(1, 3 * H)
        bhh = g["bhh"].reshape(1, 3 * H)
        return {
            "wir": wih[:, 0:H], "wiz": wih[:, H:2 * H], "win": wih[:, 2 * H:],
            "whr": whh[:, 0:H], "whz": whh[:, H:2 * H], "whn": whh[:, 2 * H:],
            # r/z hidden biases fold into the (hoisted) input projection
            "br": bih[:, 0:H] + bhh[:, 0:H],
            "bz": bih[:, H:2 * H] + bhh[:, H:2 * H],
            "bin": bih[:, 2 * H:],
            "bhn": bhh[:, 2 * H:],                   # stays inside r*(W_hn h + b_hn)
        }

    per = [split(g) for g in grus]
    return {k: jnp.stack([p[k] for p in per]) for k in per[0]}


def prepare_head_weights(heads, H):
    """Stack the K ensemble heads into lane-dense weights for one matmul chain."""
    K = heads["w1"].shape[0]
    w1 = jnp.concatenate([heads["w1"][k] for k in range(K)], axis=1)    # (4H, K*H)
    b1 = jnp.concatenate([heads["b1"][k] for k in range(K)], axis=1)    # (1, K*H)
    w2 = jnp.zeros((K * H, K * H), jnp.float32)                         # block-diag
    for k in range(K):
        w2 = w2.at[k * H:(k + 1) * H, k * H:(k + 1) * H].set(heads["w2"][k])
    b2 = jnp.concatenate([heads["b2"][k] for k in range(K)], axis=1)    # (1, K*H)
    w3 = jnp.zeros((K * H, K), jnp.float32)
    for k in range(K):
        w3 = w3.at[k * H:(k + 1) * H, k].set(heads["w3"][k][:, 0])
    b3 = jnp.concatenate([heads["b3"][k] for k in range(K)], axis=1)    # (1, K)
    return {"w1": w1, "b1": b1, "w2": w2, "b2": b2, "w3": w3, "b3": b3}


# ---------------------------------------------------------------------------
# REMCritic forward.  Embedding gather / padding / concat / slicing are glue;
# the GRU recurrences and ensemble heads run in the two Pallas kernels above.
# ---------------------------------------------------------------------------
def rem_critic_forward(params, state_tokens, act_tokens):
    embedding = params["embedding"]
    E = embedding.shape[1]
    H = params["obs_gru"]["whh_t"].shape[0]
    B = state_tokens["obs"][0].shape[0]

    gw = prepare_gru_weights(params, H)
    hw = prepare_head_weights(params["heads"], H)

    # --- assemble every GRU invocation as a padded group --------------------
    # weight index: 0=obs, 1=look, 2=act, 3=inv (matches prepare_gru_weights)
    groups = [
        (state_tokens["obs"][0],  state_tokens["obs"][1],  0),
        (state_tokens["look"][0], state_tokens["look"][1], 1),
        (state_tokens["inv"][0],  state_tokens["inv"][1],  3),
    ]
    for a_tok, a_len in act_tokens:
        groups.append((a_tok, a_len, 2))

    T_max = max(int(t.shape[1]) for t, _, _ in groups)
    N_max = _round_up(max(int(t.shape[0]) for t, _, _ in groups), 8)

    emb_list, len_list, widx_list = [], [], []
    for toks, lens, wi in groups:
        n, t = toks.shape
        emb = embedding[toks].astype(jnp.float32)        # (n, t, E) gather (glue)
        emb = jnp.transpose(emb, (1, 0, 2))              # (t, n, E) time-major
        emb_p = jnp.zeros((T_max, N_max, E), jnp.float32).at[:t, :n, :].set(emb)
        len_p = jnp.zeros((N_max, 1), jnp.int32).at[:n, 0].set(
            lens.astype(jnp.int32))
        emb_list.append(emb_p.reshape(T_max * N_max, E))
        len_list.append(len_p)
        widx_list.append(wi)

    emb_all = jnp.stack(emb_list)                        # (G, T_max*N_max, E)
    len_all = jnp.stack(len_list)                        # (G, N_max, 1)
    widx = jnp.asarray(widx_list, dtype=jnp.int32)       # (G,)

    hid_all = fused_gru(emb_all, len_all, widx, gw)      # (G, N_max, H)

    obs_out, look_out, inv_out = hid_all[0, :B], hid_all[1, :B], hid_all[2, :B]
    state_out = jnp.concatenate([obs_out, look_out, inv_out], axis=1)   # (B, 3H)

    # --- one fused ensemble-head call over every (batch, action) row --------
    counts, z_rows = [], []
    for i, (a_tok, _) in enumerate(act_tokens):
        ni = a_tok.shape[0]
        act_out = hid_all[3 + i, :ni]                                   # (ni, H)
        state_exp = jnp.broadcast_to(state_out[i], (ni, 3 * H))
        z_rows.append(jnp.concatenate([state_exp, act_out], axis=1))    # (ni, 4H)
        counts.append(ni)
    z = jnp.concatenate(z_rows, axis=0)                                 # (sum, 4H)
    n_total = z.shape[0]
    n_pad = _round_up(n_total, 8)
    z = jnp.pad(z, ((0, n_pad - n_total), (0, 0)))

    q_all = rem_heads_all(z, hw)                                        # (n_pad, K)

    batch_q_values, off = [], 0
    for ni in counts:
        batch_q_values.append(q_all[off:off + ni, :].T)                 # (K, ni)
        off += ni
    return batch_q_values


# ---------------------------------------------------------------------------
# Deterministic parameter construction (mirrors shapes in REMCritic.__init__).
# ---------------------------------------------------------------------------
def make_params(key, vocab_size, E, H, K):
    ks = list(jax.random.split(key, 16))

    def gru_params(k):
        k1, k2, k3, k4 = jax.random.split(k, 4)
        s = 1.0 / jnp.sqrt(H)
        return {
            "wih_t": jax.random.uniform(k1, (E, 3 * H), jnp.float32, -s, s),
            "whh_t": jax.random.uniform(k2, (H, 3 * H), jnp.float32, -s, s),
            "bih": jax.random.uniform(k3, (3 * H,), jnp.float32, -s, s),
            "bhh": jax.random.uniform(k4, (3 * H,), jnp.float32, -s, s),
        }

    # Ensemble heads: weight ~ N(0, (0.1*i+0.1)^2), bias = 0.1*i (per-module init)
    w1, b1, w2, b2, w3, b3 = [], [], [], [], [], []
    hk = jax.random.split(ks[5], 3 * K)
    for i in range(K):
        std = 0.1 * i + 0.1
        bias = 0.1 * i
        w1.append(std * jax.random.normal(hk[3 * i + 0], (4 * H, H), jnp.float32))
        w2.append(std * jax.random.normal(hk[3 * i + 1], (H, H), jnp.float32))
        w3.append(std * jax.random.normal(hk[3 * i + 2], (H, 1), jnp.float32))
        b1.append(jnp.full((1, H), bias, jnp.float32))
        b2.append(jnp.full((1, H), bias, jnp.float32))
        b3.append(jnp.full((1, 1), bias, jnp.float32))

    return {
        "embedding": jax.random.normal(ks[0], (vocab_size, E), jnp.float32),
        "obs_gru": gru_params(ks[1]),
        "look_gru": gru_params(ks[2]),
        "act_gru": gru_params(ks[3]),
        "inv_gru": gru_params(ks[4]),
        "heads": {
            "w1": jnp.stack(w1), "b1": jnp.stack(b1),
            "w2": jnp.stack(w2), "b2": jnp.stack(b2),
            "w3": jnp.stack(w3), "b3": jnp.stack(b3),
        },
    }


if __name__ == "__main__":
    key = jax.random.PRNGKey(0)
    vocab_size, E, H, K = 50, 32, 32, 4
    B = 2

    pkey, dkey = jax.random.split(key)
    params = make_params(pkey, vocab_size, E, H, K)

    dks = jax.random.split(dkey, 8)

    def toks(k, shape):
        return jax.random.randint(k, shape, 1, vocab_size, dtype=jnp.int32)

    # per-batch variable-length state sequences (padded + lengths)
    state_tokens = {
        "obs":  (toks(dks[0], (B, 8)), jnp.array([8, 5], jnp.int32)),
        "look": (toks(dks[1], (B, 7)), jnp.array([7, 4], jnp.int32)),
        "inv":  (toks(dks[2], (B, 6)), jnp.array([3, 6], jnp.int32)),
    }
    # variable number of candidate actions per batch element (ragged -> list)
    act_tokens = [
        (toks(dks[3], (3, 6)), jnp.array([6, 2, 4], jnp.int32)),   # elem 0: 3 acts
        (toks(dks[4], (2, 6)), jnp.array([5, 3], jnp.int32)),      # elem 1: 2 acts
    ]

    batch_q = rem_critic_forward(params, state_tokens, act_tokens)
    batch_q = jax.block_until_ready(batch_q)

    assert batch_q[0].shape == (K, 3) and batch_q[1].shape == (K, 2)
    assert all(bool(jnp.all(jnp.isfinite(q))) for q in batch_q)
    print("KERNEL_OK")
</pallas_src>

<mosaic_0001>
module attributes {stable_mosaic.version = 11 : i64} {
  func.func @fused_gru_kernel(%arg0: i32, %arg1: memref<5xi32, #tpu.memory_space<smem>>, %arg2: memref<1x64x32xf32, #tpu.memory_space<vmem>>, %arg3: memref<1x8x1xi32, #tpu.memory_space<vmem>>, %arg4: memref<1x32x32xf32, #tpu.memory_space<vmem>>, %arg5: memref<1x32x32xf32, #tpu.memory_space<vmem>>, %arg6: memref<1x32x32xf32, #tpu.memory_space<vmem>>, %arg7: memref<1x32x32xf32, #tpu.memory_space<vmem>>, %arg8: memref<1x32x32xf32, #tpu.memory_space<vmem>>, %arg9: memref<1x32x32xf32, #tpu.memory_space<vmem>>, %arg10: memref<1x1x32xf32, #tpu.memory_space<vmem>>, %arg11: memref<1x1x32xf32, #tpu.memory_space<vmem>>, %arg12: memref<1x1x32xf32, #tpu.memory_space<vmem>>, %arg13: memref<1x1x32xf32, #tpu.memory_space<vmem>>, %arg14: memref<1x8x32xf32, #tpu.memory_space<vmem>>) attributes {dimension_semantics = [#tpu.dimension_semantics<parallel>], iteration_bounds = array<i64: 5>, scalar_prefetch = 1 : i64, scratch_operands = 0 : i64, tpu.core_type = #tpu.core_type<tc>, window_params = [{transform_indices = @transform_0, window_bounds = array<i64: 1, 64, 32>}, {transform_indices = @transform_1, window_bounds = array<i64: 1, 8, 1>}, {transform_indices = @transform_2, window_bounds = array<i64: 1, 32, 32>}, {transform_indices = @transform_3, window_bounds = array<i64: 1, 32, 32>}, {transform_indices = @transform_4, window_bounds = array<i64: 1, 32, 32>}, {transform_indices = @transform_5, window_bounds = array<i64: 1, 32, 32>}, {transform_indices = @transform_6, window_bounds = array<i64: 1, 32, 32>}, {transform_indices = @transform_7, window_bounds = array<i64: 1, 32, 32>}, {transform_indices = @transform_8, window_bounds = array<i64: 1, 1, 32>}, {transform_indices = @transform_9, window_bounds = array<i64: 1, 1, 32>}, {transform_indices = @transform_10, window_bounds = array<i64: 1, 1, 32>}, {transform_indices = @transform_11, window_bounds = array<i64: 1, 1, 32>}, {transform_indices = @transform_12, window_bounds = array<i64: 1, 8, 32>}]} {
    %c0 = arith.constant 0 : index
    %c0_0 = arith.constant 0 : index
    %c0_1 = arith.constant 0 : index
    %0 = vector.load %arg2[%c0, %c0_0, %c0_1] : memref<1x64x32xf32, #tpu.memory_space<vmem>>, vector<1x64x32xf32>
    %1 = vector.shape_cast %0 : vector<1x64x32xf32> to vector<64x32xf32>
    %c0_2 = arith.constant 0 : index
    %c0_3 = arith.constant 0 : index
    %c0_4 = arith.constant 0 : index
    %2 = vector.load %arg4[%c0_2, %c0_3, %c0_4] : memref<1x32x32xf32, #tpu.memory_space<vmem>>, vector<1x32x32xf32>
    %3 = vector.shape_cast %2 : vector<1x32x32xf32> to vector<32x32xf32>
    %cst = arith.constant dense<0.000000e+00> : vector<64x32xf32>
    %4 = tpu.matmul %1, %3, %cst {dimension_numbers = #tpu.dot_dimension_numbers<[1], [0], [0], [1], [0, 0, 1, 1], [], []>} : vector<64x32xf32>, vector<32x32xf32>, vector<64x32xf32> -> vector<64x32xf32>
    %c0_5 = arith.constant 0 : index
    %c0_6 = arith.constant 0 : index
    %c0_7 = arith.constant 0 : index
    %5 = vector.load %arg10[%c0_5, %c0_6, %c0_7] : memref<1x1x32xf32, #tpu.memory_space<vmem>>, vector<1x1x32xf32>
    %6 = vector.shape_cast %5 : vector<1x1x32xf32> to vector<1x32xf32>
    %7 = vector.broadcast %6 : vector<1x32xf32> to vector<64x32xf32>
    %8 = arith.addf %4, %7 : vector<64x32xf32>
    %c0_8 = arith.constant 0 : index
    %c0_9 = arith.constant 0 : index
    %c0_10 = arith.constant 0 : index
    %9 = vector.load %arg5[%c0_8, %c0_9, %c0_10] : memref<1x32x32xf32, #tpu.memory_space<vmem>>, vector<1x32x32xf32>
    %10 = vector.shape_cast %9 : vector<1x32x32xf32> to vector<32x32xf32>
    %cst_11 = arith.constant dense<0.000000e+00> : vector<64x32xf32>
    %11 = tpu.matmul %1, %10, %cst_11 {dimension_numbers = #tpu.dot_dimension_numbers<[1], [0], [0], [1], [0, 0, 1, 1], [], []>} : vector<64x32xf32>, vector<32x32xf32>, vector<64x32xf32> -> vector<64x32xf32>
    %c0_12 = arith.constant 0 : index
    %c0_13 = arith.constant 0 : index
    %c0_14 = arith.constant 0 : index
    %12 = vector.load %arg11[%c0_12, %c0_13, %c0_14] : memref<1x1x32xf32, #tpu.memory_space<vmem>>, vector<1x1x32xf32>
    %13 = vector.shape_cast %12 : vector<1x1x32xf32> to vector<1x32xf32>
    %14 = vector.broadcast %13 : vector<1x32xf32> to vector<64x32xf32>
    %15 = arith.addf %11, %14 : vector<64x32xf32>
    %c0_15 = arith.constant 0 : index
    %c0_16 = arith.constant 0 : index
    %c0_17 = arith.constant 0 : index
    %16 = vector.load %arg6[%c0_15, %c0_16, %c0_17] : memref<1x32x32xf32, #tpu.memory_space<vmem>>, vector<1x32x32xf32>
    %17 = vector.shape_cast %16 : vector<1x32x32xf32> to vector<32x32xf32>
    %cst_18 = arith.constant dense<0.000000e+00> : vector<64x32xf32>
    %18 = tpu.matmul %1, %17, %cst_18 {dimension_numbers = #tpu.dot_dimension_numbers<[1], [0], [0], [1], [0, 0, 1, 1], [], []>} : vector<64x32xf32>, vector<32x32xf32>, vector<64x32xf32> -> vector<64x32xf32>
    %c0_19 = arith.constant 0 : index
    %c0_20 = arith.constant 0 : index
    %c0_21 = arith.constant 0 : index
    %19 = vector.load %arg12[%c0_19, %c0_20, %c0_21] : memref<1x1x32xf32, #tpu.memory_space<vmem>>, vector<1x1x32xf32>
    %20 = vector.shape_cast %19 : vector<1x1x32xf32> to vector<1x32xf32>
    %21 = vector.broadcast %20 : vector<1x32xf32> to vector<64x32xf32>
    %22 = arith.addf %18, %21 : vector<64x32xf32>
    %c0_22 = arith.constant 0 : index
    %c0_23 = arith.constant 0 : index
    %c0_24 = arith.constant 0 : index
    %23 = vector.load %arg7[%c0_22, %c0_23, %c0_24] : memref<1x32x32xf32, #tpu.memory_space<vmem>>, vector<1x32x32xf32>
    %24 = vector.shape_cast %23 : vector<1x32x32xf32> to vector<32x32xf32>
    %c0_25 = arith.constant 0 : index
    %c0_26 = arith.constant 0 : index
    %c0_27 = arith.constant 0 : index
    %25 = vector.load %arg8[%c0_25, %c0_26, %c0_27] : memref<1x32x32xf32, #tpu.memory_space<vmem>>, vector<1x32x32xf32>
    %26 = vector.shape_cast %25 : vector<1x32x32xf32> to vector<32x32xf32>
    %c0_28 = arith.constant 0 : index
    %c0_29 = arith.constant 0 : index
    %c0_30 = arith.constant 0 : index
    %27 = vector.load %arg9[%c0_28, %c0_29, %c0_30] : memref<1x32x32xf32, #tpu.memory_space<vmem>>, vector<1x32x32xf32>
    %28 = vector.shape_cast %27 : vector<1x32x32xf32> to vector<32x32xf32>
    %c0_31 = arith.constant 0 : index
    %c0_32 = arith.constant 0 : index
    %c0_33 = arith.constant 0 : index
    %29 = vector.load %arg13[%c0_31, %c0_32, %c0_33] : memref<1x1x32xf32, #tpu.memory_space<vmem>>, vector<1x1x32xf32>
    %30 = vector.shape_cast %29 : vector<1x1x32xf32> to vector<1x32xf32>
    %31 = vector.shape_cast %30 : vector<1x32xf32> to vector<1x32xf32>
    %32 = vector.broadcast %31 : vector<1x32xf32> to vector<8x32xf32>
    %c0_34 = arith.constant 0 : index
    %c0_35 = arith.constant 0 : index
    %c0_36 = arith.constant 0 : index
    %33 = vector.load %arg3[%c0_34, %c0_35, %c0_36] : memref<1x8x1xi32, #tpu.memory_space<vmem>>, vector<1x8x1xi32>
    %34 = vector.shape_cast %33 : vector<1x8x1xi32> to vector<8x1xi32>
    %cst_37 = arith.constant 0.000000e+00 : f32
    %35 = vector.broadcast %cst_37 : f32 to vector<8x32xf32>
    %cst_38 = arith.constant dense<0.000000e+00> : vector<8x32xf32>
    %36 = tpu.matmul %35, %24, %cst_38 {dimension_numbers = #tpu.dot_dimension_numbers<[1], [0], [0], [1], [0, 0, 1, 1], [], []>} : vector<8x32xf32>, vector<32x32xf32>, vector<8x32xf32> -> vector<8x32xf32>
    %cst_39 = arith.constant dense<0.000000e+00> : vector<8x32xf32>
    %37 = tpu.matmul %35, %26, %cst_39 {dimension_numbers = #tpu.dot_dimension_numbers<[1], [0], [0], [1], [0, 0, 1, 1], [], []>} : vector<8x32xf32>, vector<32x32xf32>, vector<8x32xf32> -> vector<8x32xf32>
    %cst_40 = arith.constant dense<0.000000e+00> : vector<8x32xf32>
    %38 = tpu.matmul %35, %28, %cst_40 {dimension_numbers = #tpu.dot_dimension_numbers<[1], [0], [0], [1], [0, 0, 1, 1], [], []>} : vector<8x32xf32>, vector<32x32xf32>, vector<8x32xf32> -> vector<8x32xf32>
    %39 = vector.extract_strided_slice %8 {offsets = [0, 0], sizes = [8, 32], strides = [1, 1]} : vector<64x32xf32> to vector<8x32xf32>
    %40 = arith.addf %39, %36 : vector<8x32xf32>
    %41 = arith.negf %40 : vector<8x32xf32>
    %42 = math.exp %41 : vector<8x32xf32>
    %cst_41 = arith.constant 1.000000e+00 : f32
    %43 = vector.broadcast %cst_41 : f32 to vector<8x32xf32>
    %44 = arith.addf %43, %42 : vector<8x32xf32>
    %45 = arith.divf %43, %44 : vector<8x32xf32>
    %46 = vector.extract_strided_slice %15 {offsets = [0, 0], sizes = [8, 32], strides = [1, 1]} : vector<64x32xf32> to vector<8x32xf32>
    %47 = arith.addf %46, %37 : vector<8x32xf32>
    %48 = arith.negf %47 : vector<8x32xf32>
    %49 = math.exp %48 : vector<8x32xf32>
    %cst_42 = arith.constant 1.000000e+00 : f32
    %50 = vector.broadcast %cst_42 : f32 to vector<8x32xf32>
    %51 = arith.addf %50, %49 : vector<8x32xf32>
    %52 = arith.divf %50, %51 : vector<8x32xf32>
    %53 = vector.extract_strided_slice %22 {offsets = [0, 0], sizes = [8, 32], strides = [1, 1]} : vector<64x32xf32> to vector<8x32xf32>
    %54 = arith.addf %38, %32 : vector<8x32xf32>
    %55 = arith.mulf %45, %54 : vector<8x32xf32>
    %56 = arith.addf %53, %55 : vector<8x32xf32>
    %57 = math.tanh %56 : vector<8x32xf32>
    %cst_43 = arith.constant 1.000000e+00 : f32
    %58 = vector.broadcast %cst_43 : f32 to vector<8x32xf32>
    %59 = arith.subf %58, %52 : vector<8x32xf32>
    %60 = arith.mulf %59, %57 : vector<8x32xf32>
    %61 = arith.mulf %52, %35 : vector<8x32xf32>
    %62 = arith.addf %60, %61 : vector<8x32xf32>
    %c0_i32 = arith.constant 0 : i32
    %63 = vector.broadcast %c0_i32 : i32 to vector<8x1xi32>
    %64 = arith.cmpi sgt, %34, %63 : vector<8x1xi32>
    %65 = vector.shape_cast %64 : vector<8x1xi1> to vector<8x1xi1>
    %66 = vector.broadcast %65 : vector<8x1xi1> to vector<8x32xi1>
    %67 = arith.select %66, %62, %35 : vector<8x32xi1>, vector<8x32xf32>
    %cst_44 = arith.constant dense<0.000000e+00> : vector<8x32xf32>
    %68 = tpu.matmul %67, %24, %cst_44 {dimension_numbers = #tpu.dot_dimension_numbers<[1], [0], [0], [1], [0, 0, 1, 1], [], []>} : vector<8x32xf32>, vector<32x32xf32>, vector<8x32xf32> -> vector<8x32xf32>
    %cst_45 = arith.constant dense<0.000000e+00> : vector<8x32xf32>
    %69 = tpu.matmul %67, %26, %cst_45 {dimension_numbers = #tpu.dot_dimension_numbers<[1], [0], [0], [1], [0, 0, 1, 1], [], []>} : vector<8x32xf32>, vector<32x32xf32>, vector<8x32xf32> -> vector<8x32xf32>
    %cst_46 = arith.constant dense<0.000000e+00> : vector<8x32xf32>
    %70 = tpu.matmul %67, %28, %cst_46 {dimension_numbers = #tpu.dot_dimension_numbers<[1], [0], [0], [1], [0, 0, 1, 1], [], []>} : vector<8x32xf32>, vector<32x32xf32>, vector<8x32xf32> -> vector<8x32xf32>
    %71 = vector.extract_strided_slice %8 {offsets = [8, 0], sizes = [8, 32], strides = [1, 1]} : vector<64x32xf32> to vector<8x32xf32>
    %72 = arith.addf %71, %68 : vector<8x32xf32>
    %73 = arith.negf %72 : vector<8x32xf32>
    %74 = math.exp %73 : vector<8x32xf32>
    %cst_47 = arith.constant 1.000000e+00 : f32
    %75 = vector.broadcast %cst_47 : f32 to vector<8x32xf32>
    %76 = arith.addf %75, %74 : vector<8x32xf32>
    %77 = arith.divf %75, %76 : vector<8x32xf32>
    %78 = vector.extract_strided_slice %15 {offsets = [8, 0], sizes = [8, 32], strides = [1, 1]} : vector<64x32xf32> to vector<8x32xf32>
    %79 = arith.addf %78, %69 : vector<8x32xf32>
    %80 = arith.negf %79 : vector<8x32xf32>
    %81 = math.exp %80 : vector<8x32xf32>
    %cst_48 = arith.constant 1.000000e+00 : f32
    %82 = vector.broadcast %cst_48 : f32 to vector<8x32xf32>
    %83 = arith.addf %82, %81 : vector<8x32xf32>
    %84 = arith.divf %82, %83 : vector<8x32xf32>
    %85 = vector.extract_strided_slice %22 {offsets = [8, 0], sizes = [8, 32], strides = [1, 1]} : vector<64x32xf32> to vector<8x32xf32>
    %86 = arith.addf %70, %32 : vector<8x32xf32>
    %87 = arith.mulf %77, %86 : vector<8x32xf32>
    %88 = arith.addf %85, %87 : vector<8x32xf32>
    %89 = math.tanh %88 : vector<8x32xf32>
    %cst_49 = arith.constant 1.000000e+00 : f32
    %90 = vector.broadcast %cst_49 : f32 to vector<8x32xf32>
    %91 = arith.subf %90, %84 : vector<8x32xf32>
    %92 = arith.mulf %91, %89 : vector<8x32xf32>
    %93 = arith.mulf %84, %67 : vector<8x32xf32>
    %94 = arith.addf %92, %93 : vector<8x32xf32>
    %c1_i32 = arith.constant 1 : i32
    %95 = vector.broadcast %c1_i32 : i32 to vector<8x1xi32>
    %96 = arith.cmpi sgt, %34, %95 : vector<8x1xi32>
    %97 = vector.shape_cast %96 : vector<8x1xi1> to vector<8x1xi1>
    %98 = vector.broadcast %97 : vector<8x1xi1> to vector<8x32xi1>
    %99 = arith.select %98, %94, %67 : vector<8x32xi1>, vector<8x32xf32>
    %cst_50 = arith.constant dense<0.000000e+00> : vector<8x32xf32>
    %100 = tpu.matmul %99, %24, %cst_50 {dimension_numbers = #tpu.dot_dimension_numbers<[1], [0], [0], [1], [0, 0, 1, 1], [], []>} : vector<8x32xf32>, vector<32x32xf32>, vector<8x32xf32> -> vector<8x32xf32>
    %cst_51 = arith.constant dense<0.000000e+00> : vector<8x32xf32>
    %101 = tpu.matmul %99, %26, %cst_51 {dimension_numbers = #tpu.dot_dimension_numbers<[1], [0], [0], [1], [0, 0, 1, 1], [], []>} : vector<8x32xf32>, vector<32x32xf32>, vector<8x32xf32> -> vector<8x32xf32>
    %cst_52 = arith.constant dense<0.000000e+00> : vector<8x32xf32>
    %102 = tpu.matmul %99, %28, %cst_52 {dimension_numbers = #tpu.dot_dimension_numbers<[1], [0], [0], [1], [0, 0, 1, 1], [], []>} : vector<8x32xf32>, vector<32x32xf32>, vector<8x32xf32> -> vector<8x32xf32>
    %103 = vector.extract_strided_slice %8 {offsets = [16, 0], sizes = [8, 32], strides = [1, 1]} : vector<64x32xf32> to vector<8x32xf32>
    %104 = arith.addf %103, %100 : vector<8x32xf32>
    %105 = arith.negf %104 : vector<8x32xf32>
    %106 = math.exp %105 : vector<8x32xf32>
    %cst_53 = arith.constant 1.000000e+00 : f32
    %107 = vector.broadcast %cst_53 : f32 to vector<8x32xf32>
    %108 = arith.addf %107, %106 : vector<8x32xf32>
    %109 = arith.divf %107, %108 : vector<8x32xf32>
    %110 = vector.extract_strided_slice %15 {offsets = [16, 0], sizes = [8, 32], strides = [1, 1]} : vector<64x32xf32> to vector<8x32xf32>
    %111 = arith.addf %110, %101 : vector<8x32xf32>
    %112 = arith.negf %111 : vector<8x32xf32>
    %113 = math.exp %112 : vector<8x32xf32>
    %cst_54 = arith.constant 1.000000e+00 : f32
    %114 = vector.broadcast %cst_54 : f32 to vector<8x32xf32>
    %115 = arith.addf %114, %113 : vector<8x32xf32>
    %116 = arith.divf %114, %115 : vector<8x32xf32>
    %117 = vector.extract_strided_slice %22 {offsets = [16, 0], sizes = [8, 32], strides = [1, 1]} : vector<64x32xf32> to vector<8x32xf32>
    %118 = arith.addf %102, %32 : vector<8x32xf32>
    %119 = arith.mulf %109, %118 : vector<8x32xf32>
    %120 = arith.addf %117, %119 : vector<8x32xf32>
    %121 = math.tanh %120 : vector<8x32xf32>
    %cst_55 = arith.constant 1.000000e+00 : f32
    %122 = vector.broadcast %cst_55 : f32 to vector<8x32xf32>
    %123 = arith.subf %122, %116 : vector<8x32xf32>
    %124 = arith.mulf %123, %121 : vector<8x32xf32>
    %125 = arith.mulf %116, %99 : vector<8x32xf32>
    %126 = arith.addf %124, %125 : vector<8x32xf32>
    %c2_i32 = arith.constant 2 : i32
    %127 = vector.broadcast %c2_i32 : i32 to vector<8x1xi32>
    %128 = arith.cmpi sgt, %34, %127 : vector<8x1xi32>
    %129 = vector.shape_cast %128 : vector<8x1xi1> to vector<8x1xi1>
    %130 = vector.broadcast %129 : vector<8x1xi1> to vector<8x32xi1>
    %131 = arith.select %130, %126, %99 : vector<8x32xi1>, vector<8x32xf32>
    %cst_56 = arith.constant dense<0.000000e+00> : vector<8x32xf32>
    %132 = tpu.matmul %131, %24, %cst_56 {dimension_numbers = #tpu.dot_dimension_numbers<[1], [0], [0], [1], [0, 0, 1, 1], [], []>} : vector<8x32xf32>, vector<32x32xf32>, vector<8x32xf32> -> vector<8x32xf32>
    %cst_57 = arith.constant dense<0.000000e+00> : vector<8x32xf32>
    %133 = tpu.matmul %131, %26, %cst_57 {dimension_numbers = #tpu.dot_dimension_numbers<[1], [0], [0], [1], [0, 0, 1, 1], [], []>} : vector<8x32xf32>, vector<32x32xf32>, vector<8x32xf32> -> vector<8x32xf32>
    %cst_58 = arith.constant dense<0.000000e+00> : vector<8x32xf32>
    %134 = tpu.matmul %131, %28, %cst_58 {dimension_numbers = #tpu.dot_dimension_numbers<[1], [0], [0], [1], [0, 0, 1, 1], [], []>} : vector<8x32xf32>, vector<32x32xf32>, vector<8x32xf32> -> vector<8x32xf32>
    %135 = vector.extract_strided_slice %8 {offsets = [24, 0], sizes = [8, 32], strides = [1, 1]} : vector<64x32xf32> to vector<8x32xf32>
    %136 = arith.addf %135, %132 : vector<8x32xf32>
    %137 = arith.negf %136 : vector<8x32xf32>
    %138 = math.exp %137 : vector<8x32xf32>
    %cst_59 = arith.constant 1.000000e+00 : f32
    %139 = vector.broadcast %cst_59 : f32 to vector<8x32xf32>
    %140 = arith.addf %139, %138 : vector<8x32xf32>
    %141 = arith.divf %139, %140 : vector<8x32xf32>
    %142 = vector.extract_strided_slice %15 {offsets = [24, 0], sizes = [8, 32], strides = [1, 1]} : vector<64x32xf32> to vector<8x32xf32>
    %143 = arith.addf %142, %133 : vector<8x32xf32>
    %144 = arith.negf %143 : vector<8x32xf32>
    %145 = math.exp %144 : vector<8x32xf32>
    %cst_60 = arith.constant 1.000000e+00 : f32
    %146 = vector.broadcast %cst_60 : f32 to vector<8x32xf32>
    %147 = arith.addf %146, %145 : vector<8x32xf32>
    %148 = arith.divf %146, %147 : vector<8x32xf32>
    %149 = vector.extract_strided_slice %22 {offsets = [24, 0], sizes = [8, 32], strides = [1, 1]} : vector<64x32xf32> to vector<8x32xf32>
    %150 = arith.addf %134, %32 : vector<8x32xf32>
    %151 = arith.mulf %141, %150 : vector<8x32xf32>
    %152 = arith.addf %149, %151 : vector<8x32xf32>
    %153 = math.tanh %152 : vector<8x32xf32>
    %cst_61 = arith.constant 1.000000e+00 : f32
    %154 = vector.broadcast %cst_61 : f32 to vector<8x32xf32>
    %155 = arith.subf %154, %148 : vector<8x32xf32>
    %156 = arith.mulf %155, %153 : vector<8x32xf32>
    %157 = arith.mulf %148, %131 : vector<8x32xf32>
    %158 = arith.addf %156, %157 : vector<8x32xf32>
    %c3_i32 = arith.constant 3 : i32
    %159 = vector.broadcast %c3_i32 : i32 to vector<8x1xi32>
    %160 = arith.cmpi sgt, %34, %159 : vector<8x1xi32>
    %161 = vector.shape_cast %160 : vector<8x1xi1> to vector<8x1xi1>
    %162 = vector.broadcast %161 : vector<8x1xi1> to vector<8x32xi1>
    %163 = arith.select %162, %158, %131 : vector<8x32xi1>, vector<8x32xf32>
    %cst_62 = arith.constant dense<0.000000e+00> : vector<8x32xf32>
    %164 = tpu.matmul %163, %24, %cst_62 {dimension_numbers = #tpu.dot_dimension_numbers<[1], [0], [0], [1], [0, 0, 1, 1], [], []>} : vector<8x32xf32>, vector<32x32xf32>, vector<8x32xf32> -> vector<8x32xf32>
    %cst_63 = arith.constant dense<0.000000e+00> : vector<8x32xf32>
    %165 = tpu.matmul %163, %26, %cst_63 {dimension_numbers = #tpu.dot_dimension_numbers<[1], [0], [0], [1], [0, 0, 1, 1], [], []>} : vector<8x32xf32>, vector<32x32xf32>, vector<8x32xf32> -> vector<8x32xf32>
    %cst_64 = arith.constant dense<0.000000e+00> : vector<8x32xf32>
    %166 = tpu.matmul %163, %28, %cst_64 {dimension_numbers = #tpu.dot_dimension_numbers<[1], [0], [0], [1], [0, 0, 1, 1], [], []>} : vector<8x32xf32>, vector<32x32xf32>, vector<8x32xf32> -> vector<8x32xf32>
    %167 = vector.extract_strided_slice %8 {offsets = [32, 0], sizes = [8, 32], strides = [1, 1]} : vector<64x32xf32> to vector<8x32xf32>
    %168 = arith.addf %167, %164 : vector<8x32xf32>
    %169 = arith.negf %168 : vector<8x32xf32>
    %170 = math.exp %169 : vector<8x32xf32>
    %cst_65 = arith.constant 1.000000e+00 : f32
    %171 = vector.broadcast %cst_65 : f32 to vector<8x32xf32>
    %172 = arith.addf %171, %170 : vector<8x32xf32>
    %173 = arith.divf %171, %172 : vector<8x32xf32>
    %174 = vector.extract_strided_slice %15 {offsets = [32, 0], sizes = [8, 32], strides = [1, 1]} : vector<64x32xf32> to vector<8x32xf32>
    %175 = arith.addf %174, %165 : vector<8x32xf32>
    %176 = arith.negf %175 : vector<8x32xf32>
    %177 = math.exp %176 : vector<8x32xf32>
    %cst_66 = arith.constant 1.000000e+00 : f32
    %178 = vector.broadcast %cst_66 : f32 to vector<8x32xf32>
    %179 = arith.addf %178, %177 : vector<8x32xf32>
    %180 = arith.divf %178, %179 : vector<8x32xf32>
    %181 = vector.extract_strided_slice %22 {offsets = [32, 0], sizes = [8, 32], strides = [1, 1]} : vector<64x32xf32> to vector<8x32xf32>
    %182 = arith.addf %166, %32 : vector<8x32xf32>
    %183 = arith.mulf %173, %182 : vector<8x32xf32>
    %184 = arith.addf %181, %183 : vector<8x32xf32>
    %185 = math.tanh %184 : vector<8x32xf32>
    %cst_67 = arith.constant 1.000000e+00 : f32
    %186 = vector.broadcast %cst_67 : f32 to vector<8x32xf32>
    %187 = arith.subf %186, %180 : vector<8x32xf32>
    %188 = arith.mulf %187, %185 : vector<8x32xf32>
    %189 = arith.mulf %180, %163 : vector<8x32xf32>
    %190 = arith.addf %188, %189 : vector<8x32xf32>
    %c4_i32 = arith.constant 4 : i32
    %191 = vector.broadcast %c4_i32 : i32 to vector<8x1xi32>
    %192 = arith.cmpi sgt, %34, %191 : vector<8x1xi32>
    %193 = vector.shape_cast %192 : vector<8x1xi1> to vector<8x1xi1>
    %194 = vector.broadcast %193 : vector<8x1xi1> to vector<8x32xi1>
    %195 = arith.select %194, %190, %163 : vector<8x32xi1>, vector<8x32xf32>
    %cst_68 = arith.constant dense<0.000000e+00> : vector<8x32xf32>
    %196 = tpu.matmul %195, %24, %cst_68 {dimension_numbers = #tpu.dot_dimension_numbers<[1], [0], [0], [1], [0, 0, 1, 1], [], []>} : vector<8x32xf32>, vector<32x32xf32>, vector<8x32xf32> -> vector<8x32xf32>
    %cst_69 = arith.constant dense<0.000000e+00> : vector<8x32xf32>
    %197 = tpu.matmul %195, %26, %cst_69 {dimension_numbers = #tpu.dot_dimension_numbers<[1], [0], [0], [1], [0, 0, 1, 1], [], []>} : vector<8x32xf32>, vector<32x32xf32>, vector<8x32xf32> -> vector<8x32xf32>
    %cst_70 = arith.constant dense<0.000000e+00> : vector<8x32xf32>
    %198 = tpu.matmul %195, %28, %cst_70 {dimension_numbers = #tpu.dot_dimension_numbers<[1], [0], [0], [1], [0, 0, 1, 1], [], []>} : vector<8x32xf32>, vector<32x32xf32>, vector<8x32xf32> -> vector<8x32xf32>
    %199 = vector.extract_strided_slice %8 {offsets = [40, 0], sizes = [8, 32], strides = [1, 1]} : vector<64x32xf32> to vector<8x32xf32>
    %200 = arith.addf %199, %196 : vector<8x32xf32>
    %201 = arith.negf %200 : vector<8x32xf32>
    %202 = math.exp %201 : vector<8x32xf32>
    %cst_71 = arith.constant 1.000000e+00 : f32
    %203 = vector.broadcast %cst_71 : f32 to vector<8x32xf32>
    %204 = arith.addf %203, %202 : vector<8x32xf32>
    %205 = arith.divf %203, %204 : vector<8x32xf32>
    %206 = vector.extract_strided_slice %15 {offsets = [40, 0], sizes = [8, 32], strides = [1, 1]} : vector<64x32xf32> to vector<8x32xf32>
    %207 = arith.addf %206, %197 : vector<8x32xf32>
    %208 = arith.negf %207 : vector<8x32xf32>
    %209 = math.exp %208 : vector<8x32xf32>
    %cst_72 = arith.constant 1.000000e+00 : f32
    %210 = vector.broadcast %cst_72 : f32 to vector<8x32xf32>
    %211 = arith.addf %210, %209 : vector<8x32xf32>
    %212 = arith.divf %210, %211 : vector<8x32xf32>
    %213 = vector.extract_strided_slice %22 {offsets = [40, 0], sizes = [8, 32], strides = [1, 1]} : vector<64x32xf32> to vector<8x32xf32>
    %214 = arith.addf %198, %32 : vector<8x32xf32>
    %215 = arith.mulf %205, %214 : vector<8x32xf32>
    %216 = arith.addf %213, %215 : vector<8x32xf32>
    %217 = math.tanh %216 : vector<8x32xf32>
    %cst_73 = arith.constant 1.000000e+00 : f32
    %218 = vector.broadcast %cst_73 : f32 to vector<8x32xf32>
    %219 = arith.subf %218, %212 : vector<8x32xf32>
    %220 = arith.mulf %219, %217 : vector<8x32xf32>
    %221 = arith.mulf %212, %195 : vector<8x32xf32>
    %222 = arith.addf %220, %221 : vector<8x32xf32>
    %c5_i32 = arith.constant 5 : i32
    %223 = vector.broadcast %c5_i32 : i32 to vector<8x1xi32>
    %224 = arith.cmpi sgt, %34, %223 : vector<8x1xi32>
    %225 = vector.shape_cast %224 : vector<8x1xi1> to vector<8x1xi1>
    %226 = vector.broadcast %225 : vector<8x1xi1> to vector<8x32xi1>
    %227 = arith.select %226, %222, %195 : vector<8x32xi1>, vector<8x32xf32>
    %cst_74 = arith.constant dense<0.000000e+00> : vector<8x32xf32>
    %228 = tpu.matmul %227, %24, %cst_74 {dimension_numbers = #tpu.dot_dimension_numbers<[1], [0], [0], [1], [0, 0, 1, 1], [], []>} : vector<8x32xf32>, vector<32x32xf32>, vector<8x32xf32> -> vector<8x32xf32>
    %cst_75 = arith.constant dense<0.000000e+00> : vector<8x32xf32>
    %229 = tpu.matmul %227, %26, %cst_75 {dimension_numbers = #tpu.dot_dimension_numbers<[1], [0], [0], [1], [0, 0, 1, 1], [], []>} : vector<8x32xf32>, vector<32x32xf32>, vector<8x32xf32> -> vector<8x32xf32>
    %cst_76 = arith.constant dense<0.000000e+00> : vector<8x32xf32>
    %230 = tpu.matmul %227, %28, %cst_76 {dimension_numbers = #tpu.dot_dimension_numbers<[1], [0], [0], [1], [0, 0, 1, 1], [], []>} : vector<8x32xf32>, vector<32x32xf32>, vector<8x32xf32> -> vector<8x32xf32>
    %231 = vector.extract_strided_slice %8 {offsets = [48, 0], sizes = [8, 32], strides = [1, 1]} : vector<64x32xf32> to vector<8x32xf32>
    %232 = arith.addf %231, %228 : vector<8x32xf32>
    %233 = arith.negf %232 : vector<8x32xf32>
    %234 = math.exp %233 : vector<8x32xf32>
    %cst_77 = arith.constant 1.000000e+00 : f32
    %235 = vector.broadcast %cst_77 : f32 to vector<8x32xf32>
    %236 = arith.addf %235, %234 : vector<8x32xf32>
    %237 = arith.divf %235, %236 : vector<8x32xf32>
    %238 = vector.extract_strided_slice %15 {offsets = [48, 0], sizes = [8, 32], strides = [1, 1]} : vector<64x32xf32> to vector<8x32xf32>
    %239 = arith.addf %238, %229 : vector<8x32xf32>
    %240 = arith.negf %239 : vector<8x32xf32>
    %241 = math.exp %240 : vector<8x32xf32>
    %cst_78 = arith.constant 1.000000e+00 : f32
    %242 = vector.broadcast %cst_78 : f32 to vector<8x32xf32>
    %243 = arith.addf %242, %241 : vector<8x32xf32>
    %244 = arith.divf %242, %243 : vector<8x32xf32>
    %245 = vector.extract_strided_slice %22 {offsets = [48, 0], sizes = [8, 32], strides = [1, 1]} : vector<64x32xf32> to vector<8x32xf32>
    %246 = arith.addf %230, %32 : vector<8x32xf32>
    %247 = arith.mulf %237, %246 : vector<8x32xf32>
    %248 = arith.addf %245, %247 : vector<8x32xf32>
    %249 = math.tanh %248 : vector<8x32xf32>
    %cst_79 = arith.constant 1.000000e+00 : f32
    %250 = vector.broadcast %cst_79 : f32 to vector<8x32xf32>
    %251 = arith.subf %250, %244 : vector<8x32xf32>
    %252 = arith.mulf %251, %249 : vector<8x32xf32>
    %253 = arith.mulf %244, %227 : vector<8x32xf32>
    %254 = arith.addf %252, %253 : vector<8x32xf32>
    %c6_i32 = arith.constant 6 : i32
    %255 = vector.broadcast %c6_i32 : i32 to vector<8x1xi32>
    %256 = arith.cmpi sgt, %34, %255 : vector<8x1xi32>
    %257 = vector.shape_cast %256 : vector<8x1xi1> to vector<8x1xi1>
    %258 = vector.broadcast %257 : vector<8x1xi1> to vector<8x32xi1>
    %259 = arith.select %258, %254, %227 : vector<8x32xi1>, vector<8x32xf32>
    %cst_80 = arith.constant dense<0.000000e+00> : vector<8x32xf32>
    %260 = tpu.matmul %259, %24, %cst_80 {dimension_numbers = #tpu.dot_dimension_numbers<[1], [0], [0], [1], [0, 0, 1, 1], [], []>} : vector<8x32xf32>, vector<32x32xf32>, vector<8x32xf32> -> vector<8x32xf32>
    %cst_81 = arith.constant dense<0.000000e+00> : vector<8x32xf32>
    %261 = tpu.matmul %259, %26, %cst_81 {dimension_numbers = #tpu.dot_dimension_numbers<[1], [0], [0], [1], [0, 0, 1, 1], [], []>} : vector<8x32xf32>, vector<32x32xf32>, vector<8x32xf32> -> vector<8x32xf32>
    %cst_82 = arith.constant dense<0.000000e+00> : vector<8x32xf32>
    %262 = tpu.matmul %259, %28, %cst_82 {dimension_numbers = #tpu.dot_dimension_numbers<[1], [0], [0], [1], [0, 0, 1, 1], [], []>} : vector<8x32xf32>, vector<32x32xf32>, vector<8x32xf32> -> vector<8x32xf32>
    %263 = vector.extract_strided_slice %8 {offsets = [56, 0], sizes = [8, 32], strides = [1, 1]} : vector<64x32xf32> to vector<8x32xf32>
    %264 = arith.addf %263, %260 : vector<8x32xf32>
    %265 = arith.negf %264 : vector<8x32xf32>
    %266 = math.exp %265 : vector<8x32xf32>
    %cst_83 = arith.constant 1.000000e+00 : f32
    %267 = vector.broadcast %cst_83 : f32 to vector<8x32xf32>
    %268 = arith.addf %267, %266 : vector<8x32xf32>
    %269 = arith.divf %267, %268 : vector<8x32xf32>
    %270 = vector.extract_strided_slice %15 {offsets = [56, 0], sizes = [8, 32], strides = [1, 1]} : vector<64x32xf32> to vector<8x32xf32>
    %271 = arith.addf %270, %261 : vector<8x32xf32>
    %272 = arith.negf %271 : vector<8x32xf32>
    %273 = math.exp %272 : vector<8x32xf32>
    %cst_84 = arith.constant 1.000000e+00 : f32
    %274 = vector.broadcast %cst_84 : f32 to vector<8x32xf32>
    %275 = arith.addf %274, %273 : vector<8x32xf32>
    %276 = arith.divf %274, %275 : vector<8x32xf32>
    %277 = vector.extract_strided_slice %22 {offsets = [56, 0], sizes = [8, 32], strides = [1, 1]} : vector<64x32xf32> to vector<8x32xf32>
    %278 = arith.addf %262, %32 : vector<8x32xf32>
    %279 = arith.mulf %269, %278 : vector<8x32xf32>
    %280 = arith.addf %277, %279 : vector<8x32xf32>
    %281 = math.tanh %280 : vector<8x32xf32>
    %cst_85 = arith.constant 1.000000e+00 : f32
    %282 = vector.broadcast %cst_85 : f32 to vector<8x32xf32>
    %283 = arith.subf %282, %276 : vector<8x32xf32>
    %284 = arith.mulf %283, %281 : vector<8x32xf32>
    %285 = arith.mulf %276, %259 : vector<8x32xf32>
    %286 = arith.addf %284, %285 : vector<8x32xf32>
    %c7_i32 = arith.constant 7 : i32
    %287 = vector.broadcast %c7_i32 : i32 to vector<8x1xi32>
    %288 = arith.cmpi sgt, %34, %287 : vector<8x1xi32>
    %289 = vector.shape_cast %288 : vector<8x1xi1> to vector<8x1xi1>
    %290 = vector.broadcast %289 : vector<8x1xi1> to vector<8x32xi1>
    %291 = arith.select %290, %286, %259 : vector<8x32xi1>, vector<8x32xf32>
    %c0_86 = arith.constant 0 : index
    %c0_87 = arith.constant 0 : index
    %c0_88 = arith.constant 0 : index
    %292 = vector.load %arg14[%c0_86, %c0_87, %c0_88] : memref<1x8x32xf32, #tpu.memory_space<vmem>>, vector<1x8x32xf32>
    %293 = vector.shape_cast %292 : vector<1x8x32xf32> to vector<8x32xf32>
    %294 = vector.shape_cast %291 : vector<8x32xf32> to vector<1x8x32xf32>
    tpu.vector_store %arg14[%c0_86, %c0_87, %c0_88], %294 {strides = array<i32>} : memref<1x8x32xf32, #tpu.memory_space<vmem>>, vector<1x8x32xf32>,
    return
  }
  func.func @transform_0(%arg0: i32, %arg1: memref<5xi32, #tpu.memory_space<smem>>) -> (i32, i32, i32) {
    %c0_i32 = arith.constant 0 : i32
    %c0_i32_0 = arith.constant 0 : i32
    %c0_i32_1 = arith.constant 0 : i32
    return %arg0, %c0_i32, %c0_i32_0 : i32, i32, i32
  }
  func.func @transform_1(%arg0: i32, %arg1: memref<5xi32, #tpu.memory_space<smem>>) -> (i32, i32, i32) {
    %c0_i32 = arith.constant 0 : i32
    %c0_i32_0 = arith.constant 0 : i32
    %c0_i32_1 = arith.constant 0 : i32
    return %arg0, %c0_i32, %c0_i32_0 : i32, i32, i32
  }
  func.func @transform_2(%arg0: i32, %arg1: memref<5xi32, #tpu.memory_space<smem>>) -> (i32, i32, i32) {
    %0 = arith.index_cast %arg0 : i32 to index
    %1 = memref.load %arg1[%0] : memref<5xi32, #tpu.memory_space<smem>>
    %c0_i32 = arith.constant 0 : i32
    %c0_i32_0 = arith.constant 0 : i32
    %c0_i32_1 = arith.constant 0 : i32
    return %1, %c0_i32, %c0_i32_0 : i32, i32, i32
  }
  func.func @transform_3(%arg0: i32, %arg1: memref<5xi32, #tpu.memory_space<smem>>) -> (i32, i32, i32) {
    %0 = arith.index_cast %arg0 : i32 to index
    %1 = memref.load %arg1[%0] : memref<5xi32, #tpu.memory_space<smem>>
    %c0_i32 = arith.constant 0 : i32
    %c0_i32_0 = arith.constant 0 : i32
    %c0_i32_1 = arith.constant 0 : i32
    return %1, %c0_i32, %c0_i32_0 : i32, i32, i32
  }
  func.func @transform_4(%arg0: i32, %arg1: memref<5xi32, #tpu.memory_space<smem>>) -> (i32, i32, i32) {
    %0 = arith.index_cast %arg0 : i32 to index
    %1 = memref.load %arg1[%0] : memref<5xi32, #tpu.memory_space<smem>>
    %c0_i32 = arith.constant 0 : i32
    %c0_i32_0 = arith.constant 0 : i32
    %c0_i32_1 = arith.constant 0 : i32
    return %1, %c0_i32, %c0_i32_0 : i32, i32, i32
  }
  func.func @transform_5(%arg0: i32, %arg1: memref<5xi32, #tpu.memory_space<smem>>) -> (i32, i32, i32) {
    %0 = arith.index_cast %arg0 : i32 to index
    %1 = memref.load %arg1[%0] : memref<5xi32, #tpu.memory_space<smem>>
    %c0_i32 = arith.constant 0 : i32
    %c0_i32_0 = arith.constant 0 : i32
    %c0_i32_1 = arith.constant 0 : i32
    return %1, %c0_i32, %c0_i32_0 : i32, i32, i32
  }
  func.func @transform_6(%arg0: i32, %arg1: memref<5xi32, #tpu.memory_space<smem>>) -> (i32, i32, i32) {
    %0 = arith.index_cast %arg0 : i32 to index
    %1 = memref.load %arg1[%0] : memref<5xi32, #tpu.memory_space<smem>>
    %c0_i32 = arith.constant 0 : i32
    %c0_i32_0 = arith.constant 0 : i32
    %c0_i32_1 = arith.constant 0 : i32
    return %1, %c0_i32, %c0_i32_0 : i32, i32, i32
  }
  func.func @transform_7(%arg0: i32, %arg1: memref<5xi32, #tpu.memory_space<smem>>) -> (i32, i32, i32) {
    %0 = arith.index_cast %arg0 : i32 to index
    %1 = memref.load %arg1[%0] : memref<5xi32, #tpu.memory_space<smem>>
    %c0_i32 = arith.constant 0 : i32
    %c0_i32_0 = arith.constant 0 : i32
    %c0_i32_1 = arith.constant 0 : i32
    return %1, %c0_i32, %c0_i32_0 : i32, i32, i32
  }
  func.func @transform_8(%arg0: i32, %arg1: memref<5xi32, #tpu.memory_space<smem>>) -> (i32, i32, i32) {
    %0 = arith.index_cast %arg0 : i32 to index
    %1 = memref.load %arg1[%0] : memref<5xi32, #tpu.memory_space<smem>>
    %c0_i32 = arith.constant 0 : i32
    %c0_i32_0 = arith.constant 0 : i32
    %c0_i32_1 = arith.constant 0 : i32
    return %1, %c0_i32, %c0_i32_0 : i32, i32, i32
  }
  func.func @transform_9(%arg0: i32, %arg1: memref<5xi32, #tpu.memory_space<smem>>) -> (i32, i32, i32) {
    %0 = arith.index_cast %arg0 : i32 to index
    %1 = memref.load %arg1[%0] : memref<5xi32, #tpu.memory_space<smem>>
    %c0_i32 = arith.constant 0 : i32
    %c0_i32_0 = arith.constant 0 : i32
    %c0_i32_1 = arith.constant 0 : i32
    return %1, %c0_i32, %c0_i32_0 : i32, i32, i32
  }
  func.func @transform_10(%arg0: i32, %arg1: memref<5xi32, #tpu.memory_space<smem>>) -> (i32, i32, i32) {
    %0 = arith.index_cast %arg0 : i32 to index
    %1 = memref.load %arg1[%0] : memref<5xi32, #tpu.memory_space<smem>>
    %c0_i32 = arith.constant 0 : i32
    %c0_i32_0 = arith.constant 0 : i32
    %c0_i32_1 = arith.constant 0 : i32
    return %1, %c0_i32, %c0_i32_0 : i32, i32, i32
  }
  func.func @transform_11(%arg0: i32, %arg1: memref<5xi32, #tpu.memory_space<smem>>) -> (i32, i32, i32) {
    %0 = arith.index_cast %arg0 : i32 to index
    %1 = memref.load %arg1[%0] : memref<5xi32, #tpu.memory_space<smem>>
    %c0_i32 = arith.constant 0 : i32
    %c0_i32_0 = arith.constant 0 : i32
    %c0_i32_1 = arith.constant 0 : i32
    return %1, %c0_i32, %c0_i32_0 : i32, i32, i32
  }
  func.func @transform_12(%arg0: i32, %arg1: memref<5xi32, #tpu.memory_space<smem>>) -> (i32, i32, i32) {
    %c0_i32 = arith.constant 0 : i32
    %c0_i32_0 = arith.constant 0 : i32
    %c0_i32_1 = arith.constant 0 : i32
    return %arg0, %c0_i32, %c0_i32_0 : i32, i32, i32
  }
}

</mosaic_0001>

<llo_original>
// kernel: tpu_custom_call.1
$region0: #{tpu_custom_call.1}
  #allocation0 [shape = 'u32[]', space=smem, size = 0x4, offset = 0x4, fixed_abs, tag = 'smem constant byte address 0x4 - core index']
  #allocation1 [shape = 'u32[144,128]{1,0:T(1,128)}', space=vmem, size = 0x12000, scoped, tag = 'internal scratch']
  #allocation2 [shape = 's32[1]{0}', space=sflag, size = 0x4, scoped, tag = 'scoped memory for tpu_custom_call.1']
  #allocation3 [shape = 'u8[512]{0}', space=smem, size = 0x200, scoped, tag = 'prefetched SMEM operand 0']
  %s0 = inlined_call_operand.vmem [shape: s32[5], index: 0, kind: input, shape index: {}]
  %s1 = inlined_call_operand.vmem [shape: f32[5,64,32], index: 1, kind: input, shape index: {}]
  %s2 = inlined_call_operand.vmem [shape: s32[5,8,1], index: 2, kind: input, shape index: {}]
  %s3 = inlined_call_operand.vmem [shape: f32[4,32,32], index: 3, kind: input, shape index: {}]
  %s4 = inlined_call_operand.vmem [shape: f32[4,32,32], index: 4, kind: input, shape index: {}]
  %s5 = inlined_call_operand.vmem [shape: f32[4,32,32], index: 5, kind: input, shape index: {}]
  %s6 = inlined_call_operand.vmem [shape: f32[4,32,32], index: 6, kind: input, shape index: {}]
  %s7 = inlined_call_operand.hbm [shape: f32[4,32,32], index: 7, kind: input, shape index: {}]
  %s8 = inlined_call_operand.hbm [shape: f32[4,32,32], index: 8, kind: input, shape index: {}]
  %s9 = inlined_call_operand.vmem [shape: f32[4,1,32], index: 9, kind: input, shape index: {}]
  %s10 = inlined_call_operand.vmem [shape: f32[4,1,32], index: 10, kind: input, shape index: {}]
  %s11 = inlined_call_operand.vmem [shape: f32[4,1,32], index: 11, kind: input, shape index: {}]
  %s12 = inlined_call_operand.vmem [shape: f32[4,1,32], index: 12, kind: input, shape index: {}]
  %s13 = inlined_call_operand.hbm [shape: f32[5,8,32], index: 13, kind: output, shape index: {}]
  %s14 = sld [smem:[#allocation0]]
  $region89: #{tpu_custom_call.1} parent=0
    _
  %s16 = ssub.s32 1, %s14
  %s17 = scalar_select 0, %s16, %s14
  %s18 = sshll.u32 %s0, 4
  %s19 = int_to_ptr.vmem [resolvable:$true] %s18
  %21 = dma.vmem_to_smem %s19, 16, [#allocation3], [#allocation2]
  %22 = dma.done [#allocation2], 16
  %23 = sfence
  $region1: #{tpu_custom_call.1} parent=0
    #allocation4 [shape = 'u8[32768]{0}', space=vmem, size = 0x8000, scoped, tag = 'input window, operand 7']
    #allocation5 [shape = 's32[2]{0}', space=sflag, size = 0x8, scoped, tag = 'scoped memory for tpu_custom_call.1']
    #allocation6 [shape = 's32[2]{0}', space=sflag, size = 0x8, scoped, tag = 'scoped memory for tpu_custom_call.1']
    #allocation7 [shape = 'u8[32768]{0}', space=vmem, size = 0x8000, scoped, tag = 'input window, operand 8']
    #allocation8 [shape = 's32[2]{0}', space=sflag, size = 0x8, scoped, tag = 'scoped memory for tpu_custom_call.1']
    #allocation9 [shape = 'u8[8192]{0}', space=vmem, size = 0x2000, scoped, tag = 'output window, operand 0']
    %24 = vsyncpa [#allocation5], 0
    %s25 = scalar_lea.sflag [#allocation5], 1
    %26 = vsyncpa %s25, 0
    %27 = vsyncpa [#allocation8], 0
    %s28 = scalar_lea.sflag [#allocation8], 1
    %29 = vsyncpa %s28, 0
    %30 = vsyncpa [#allocation6], 0
    %s31 = scalar_lea.sflag [#allocation6], 1
    %32 = vsyncpa %s31, 0
    loop: start=0, step=1, limit=7
    $region2: #{tpu_custom_call.1} parent=1 // loop_pre_header
      _
    $region3: #{tpu_custom_call.1} parent=1 // loop_header
      %s34 = sphi 0, %s38
      %p35 = scmp.ge.s32.totalorder %s34, 7
      %s44 = sphi 0, %s46
      %s47 = sphi 0, %s44
      %s48 = sphi 0, %s47
      %s64 = sphi 0, %s48
      %s70 = sphi 0, %s72
      %s73 = sphi 0, %s70
      %s74 = sphi 0, %s73
      %s90 = sphi 0, %s74
      %s98 = sphi 0, %s100
      %s101 = sphi 0, %s98
      %s102 = sphi 0, %s101
      %s118 = sphi 0, %s102
      %s126 = sphi 0, %s128
      %s129 = sphi 0, %s126
      %s130 = sphi 0, %s129
      %s146 = sphi 0, %s130
      %s154 = sphi 0, %s156
      %s157 = sphi 0, %s154
      %s158 = sphi 0, %s157
      %s174 = sphi 0, %s158
      %s182 = sphi 0, %s184
      %s185 = sphi 0, %s182
      %s186 = sphi 0, %s185
      %s202 = sphi 0, %s186
      %s210 = sphi 0, %s212
      %s213 = sphi 0, %s210
      %s214 = sphi 0, %s213
      %s230 = sphi 0, %s214
      %s238 = sphi 0, %s240
      %s241 = sphi 0, %s238
      %s242 = sphi 0, %s241
      %s258 = sphi 0, %s242
      %s266 = sphi 0, %s268
      %s269 = sphi 0, %s266
      %s270 = sphi 0, %s269
      %s286 = sphi 0, %s270
      %s294 = sphi 0, %s296
      %s297 = sphi 0, %s294
      %s298 = sphi 0, %s297
      %s314 = sphi 0, %s298
      %s322 = sphi 0, %s324
      %s325 = sphi 0, %s322
      %s326 = sphi 0, %s325
      %s342 = sphi 0, %s326
      %s350 = sphi 0, %s352
      %s353 = sphi 0, %s350
      %s354 = sphi 0, %s353
      %s370 = sphi 0, %s354
      %s376 = sphi 0, %s378
      %s379 = sphi 0, %s376
      %s380 = sphi 0, %s379
      %s396 = sphi 0, %s380
    $region4: #{tpu_custom_call.1} parent=1 // loop_header_branch
      %37 = sbr.rel (%p35) target = $region8
    $region5: #{tpu_custom_call.1} parent=1 // loop_body
      %s39 = ssub.s32 %s34, 1
      %s40 = ssub.s32 %s34, 2
      %s41 = sadd.s32 %s34, 1
      %s42 = ssub.s32 %s34, %s41
      %p43 = scmp.eq.s32.totalorder %s42, 0
      %s45 = sadd.s32 %s44, 1
      %s46 = scalar_select %p43, %s44, %s45
      %p49 = pneg %p43
      %p50 = scmp.eq.s32.totalorder %s34, 4
      %p51 = por %p49, %p50
      %p52 = scmp.ne.s32.totalorder %s44, %s47
      %p53 = scmp.eq.s32.totalorder %s34, 0
      %p54 = por %p52, %p53
      %p55 = scmp.ne.s32.totalorder %s44, %s47
      %p56 = scmp.eq.s32.totalorder %s39, 4
      %p57 = por %p55, %p56
      %p58 = scmp.ne.s32.totalorder %s47, %s48
      %p59 = scmp.eq.s32.totalorder %s39, 0
      %p60 = por %p58, %p59
      %p61 = scmp.ne.s32.totalorder %s47, %s48
      %p62 = scmp.eq.s32.totalorder %s40, 4
      %p63 = por %p61, %p62
      %p65 = scmp.ne.s32.totalorder %s48, %s64
      %p66 = scmp.eq.s32.totalorder %s40, 0
      %p67 = por %p65, %p66
      %s68 = ssub.s32 %s34, %s41
      %p69 = scmp.eq.s32.totalorder %s68, 0
      %s71 = sadd.s32 %s70, 1
      %s72 = scalar_select %p69, %s70, %s71
      %p75 = pneg %p69
      %p76 = scmp.eq.s32.totalorder %s34, 4
      %p77 = por %p75, %p76
      %p78 = scmp.ne.s32.totalorder %s70, %s73
      %p79 = scmp.eq.s32.totalorder %s34, 0
      %p80 = por %p78, %p79
      %p81 = scmp.ne.s32.totalorder %s70, %s73
      %p82 = scmp.eq.s32.totalorder %s39, 4
      %p83 = por %p81, %p82
      %p84 = scmp.ne.s32.totalorder %s73, %s74
      %p85 = scmp.eq.s32.totalorder %s39, 0
      %p86 = por %p84, %p85
      %p87 = scmp.ne.s32.totalorder %s73, %s74
      %p88 = scmp.eq.s32.totalorder %s40, 4
      %p89 = por %p87, %p88
      %p91 = scmp.ne.s32.totalorder %s74, %s90
      %p92 = scmp.eq.s32.totalorder %s40, 0
      %p93 = por %p91, %p92
      %s94 = sld [smem:[#allocation3 + %s34]]
      %s95 = sld [smem:[#allocation3 + %s41]]
      %s96 = ssub.s32 %s94, %s95
      %p97 = scmp.eq.s32.totalorder %s96, 0
      %s99 = sadd.s32 %s98, 1
      %s100 = scalar_select %p97, %s98, %s99
      %p103 = pneg %p97
      %p104 = scmp.eq.s32.totalorder %s34, 4
      %p105 = por %p103, %p104
      %p106 = scmp.ne.s32.totalorder %s98, %s101
      %p107 = scmp.eq.s32.totalorder %s34, 0
      %p108 = por %p106, %p107
      %p109 = scmp.ne.s32.totalorder %s98, %s101
      %p110 = scmp.eq.s32.totalorder %s39, 4
      %p111 = por %p109, %p110
      %p112 = scmp.ne.s32.totalorder %s101, %s102
      %p113 = scmp.eq.s32.totalorder %s39, 0
      %p114 = por %p112, %p113
      %p115 = scmp.ne.s32.totalorder %s101, %s102
      %p116 = scmp.eq.s32.totalorder %s40, 4
      %p117 = por %p115, %p116
      %p119 = scmp.ne.s32.totalorder %s102, %s118
      %p120 = scmp.eq.s32.totalorder %s40, 0
      %p121 = por %p119, %p120
      %s122 = sld [smem:[#allocation3 + %s34]]
      %s123 = sld [smem:[#allocation3 + %s41]]
      %s124 = ssub.s32 %s122, %s123
      %p125 = scmp.eq.s32.totalorder %s124, 0
      %s127 = sadd.s32 %s126, 1
      %s128 = scalar_select %p125, %s126, %s127
      %p131 = pneg %p125
      %p132 = scmp.eq.s32.totalorder %s34, 4
      %p133 = por %p131, %p132
      %p134 = scmp.ne.s32.totalorder %s126, %s129
      %p135 = scmp.eq.s32.totalorder %s34, 0
      %p136 = por %p134, %p135
      %p137 = scmp.ne.s32.totalorder %s126, %s129
      %p138 = scmp.eq.s32.totalorder %s39, 4
      %p139 = por %p137, %p138
      %p140 = scmp.ne.s32.totalorder %s129, %s130
      %p141 = scmp.eq.s32.totalorder %s39, 0
      %p142 = por %p140, %p141
      %p143 = scmp.ne.s32.totalorder %s129, %s130
      %p144 = scmp.eq.s32.totalorder %s40, 4
      %p145 = por %p143, %p144
      %p147 = scmp.ne.s32.totalorder %s130, %s146
      %p148 = scmp.eq.s32.totalorder %s40, 0
      %p149 = por %p147, %p148
      %s150 = sld [smem:[#allocation3 + %s34]]
      %s151 = sld [smem:[#allocation3 + %s41]]
      %s152 = ssub.s32 %s150, %s151
      %p153 = scmp.eq.s32.totalorder %s152, 0
      %s155 = sadd.s32 %s154, 1
      %s156 = scalar_select %p153, %s154, %s155
      %p159 = pneg %p153
      %p160 = scmp.eq.s32.totalorder %s34, 4
      %p161 = por %p159, %p160
      %p162 = scmp.ne.s32.totalorder %s154, %s157
      %p163 = scmp.eq.s32.totalorder %s34, 0
      %p164 = por %p162, %p163
      %p165 = scmp.ne.s32.totalorder %s154, %s157
      %p166 = scmp.eq.s32.totalorder %s39, 4
      %p167 = por %p165, %p166
      %p168 = scmp.ne.s32.totalorder %s157, %s158
      %p169 = scmp.eq.s32.totalorder %s39, 0
      %p170 = por %p168, %p169
      %p171 = scmp.ne.s32.totalorder %s157, %s158
      %p172 = scmp.eq.s32.totalorder %s40, 4
      %p173 = por %p171, %p172
      %p175 = scmp.ne.s32.totalorder %s158, %s174
      %p176 = scmp.eq.s32.totalorder %s40, 0
      %p177 = por %p175, %p176
      %s178 = sld [smem:[#allocation3 + %s34]]
      %s179 = sld [smem:[#allocation3 + %s41]]
      %s180 = ssub.s32 %s178, %s179
      %p181 = scmp.eq.s32.totalorder %s180, 0
      %s183 = sadd.s32 %s182, 1
      %s184 = scalar_select %p181, %s182, %s183
      %p187 = pneg %p181
      %p188 = scmp.eq.s32.totalorder %s34, 4
      %p189 = por %p187, %p188
      %p190 = scmp.ne.s32.totalorder %s182, %s185
      %p191 = scmp.eq.s32.totalorder %s34, 0
      %p192 = por %p190, %p191
      %p193 = scmp.ne.s32.totalorder %s182, %s185
      %p194 = scmp.eq.s32.totalorder %s39, 4
      %p195 = por %p193, %p194
      %p196 = scmp.ne.s32.totalorder %s185, %s186
      %p197 = scmp.eq.s32.totalorder %s39, 0
      %p198 = por %p196, %p197
      %p199 = scmp.ne.s32.totalorder %s185, %s186
      %p200 = scmp.eq.s32.totalorder %s40, 4
      %p201 = por %p199, %p200
      %p203 = scmp.ne.s32.totalorder %s186, %s202
      %p204 = scmp.eq.s32.totalorder %s40, 0
      %p205 = por %p203, %p204
      %s206 = sld [smem:[#allocation3 + %s34]]
      %s207 = sld [smem:[#allocation3 + %s41]]
      %s208 = ssub.s32 %s206, %s207
      %p209 = scmp.eq.s32.totalorder %s208, 0
      %s211 = sadd.s32 %s210, 1
      %s212 = scalar_select %p209, %s210, %s211
      %p215 = pneg %p209
      %p216 = scmp.eq.s32.totalorder %s34, 4
      %p217 = por %p215, %p216
      %p218 = scmp.ne.s32.totalorder %s210, %s213
      %p219 = scmp.eq.s32.totalorder %s34, 0
      %p220 = por %p218, %p219
      %p221 = scmp.ne.s32.totalorder %s210, %s213
      %p222 = scmp.eq.s32.totalorder %s39, 4
      %p223 = por %p221, %p222
      %p224 = scmp.ne.s32.totalorder %s213, %s214
      %p225 = scmp.eq.s32.totalorder %s39, 0
      %p226 = por %p224, %p225
      %p227 = scmp.ne.s32.totalorder %s213, %s214
      %p228 = scmp.eq.s32.totalorder %s40, 4
      %p229 = por %p227, %p228
      %p231 = scmp.ne.s32.totalorder %s214, %s230
      %p232 = scmp.eq.s32.totalorder %s40, 0
      %p233 = por %p231, %p232
      %s234 = sld [smem:[#allocation3 + %s34]]
      %s235 = sld [smem:[#allocation3 + %s41]]
      %s236 = ssub.s32 %s234, %s235
      %p237 = scmp.eq.s32.totalorder %s236, 0
      %s239 = sadd.s32 %s238, 1
      %s240 = scalar_select %p237, %s238, %s239
      %p243 = pneg %p237
      %p244 = scmp.eq.s32.totalorder %s34, 4
      %p245 = por %p243, %p244
      %p246 = scmp.ne.s32.totalorder %s238, %s241
      %p247 = scmp.eq.s32.totalorder %s34, 0
      %p248 = por %p246, %p247
      %p249 = scmp.ne.s32.totalorder %s238, %s241
      %p250 = scmp.eq.s32.totalorder %s39, 4
      %p251 = por %p249, %p250
      %p252 = scmp.ne.s32.totalorder %s241, %s242
      %p253 = scmp.eq.s32.totalorder %s39, 0
      %p254 = por %p252, %p253
      %p255 = scmp.ne.s32.totalorder %s241, %s242
      %p256 = scmp.eq.s32.totalorder %s40, 4
      %p257 = por %p255, %p256
      %p259 = scmp.ne.s32.totalorder %s242, %s258
      %p260 = scmp.eq.s32.totalorder %s40, 0
      %p261 = por %p259, %p260
      %s262 = sld [smem:[#allocation3 + %s34]]
      %s263 = sld [smem:[#allocation3 + %s41]]
      %s264 = ssub.s32 %s262, %s263
      %p265 = scmp.eq.s32.totalorder %s264, 0
      %s267 = sadd.s32 %s266, 1
      %s268 = scalar_select %p265, %s266, %s267
      %p271 = pneg %p265
      %p272 = scmp.eq.s32.totalorder %s34, 4
      %p273 = por %p271, %p272
      %p274 = scmp.ne.s32.totalorder %s266, %s269
      %p275 = scmp.eq.s32.totalorder %s34, 0
      %p276 = por %p274, %p275
      %p277 = scmp.ne.s32.totalorder %s266, %s269
      %p278 = scmp.eq.s32.totalorder %s39, 4
      %p279 = por %p277, %p278
      %p280 = scmp.ne.s32.totalorder %s269, %s270
      %p281 = scmp.eq.s32.totalorder %s39, 0
      %p282 = por %p280, %p281
      %p283 = scmp.ne.s32.totalorder %s269, %s270
      %p284 = scmp.eq.s32.totalorder %s40, 4
      %p285 = por %p283, %p284
      %p287 = scmp.ne.s32.totalorder %s270, %s286
      %p288 = scmp.eq.s32.totalorder %s40, 0
      %p289 = por %p287, %p288
      %s290 = sld [smem:[#allocation3 + %s34]]
      %s291 = sld [smem:[#allocation3 + %s41]]
      %s292 = ssub.s32 %s290, %s291
      %p293 = scmp.eq.s32.totalorder %s292, 0
      %s295 = sadd.s32 %s294, 1
      %s296 = scalar_select %p293, %s294, %s295
      %p299 = pneg %p293
      %p300 = scmp.eq.s32.totalorder %s34, 4
      %p301 = por %p299, %p300
      %p302 = scmp.ne.s32.totalorder %s294, %s297
      %p303 = scmp.eq.s32.totalorder %s34, 0
      %p304 = por %p302, %p303
      %p305 = scmp.ne.s32.totalorder %s294, %s297
      %p306 = scmp.eq.s32.totalorder %s39, 4
      %p307 = por %p305, %p306
      %p308 = scmp.ne.s32.totalorder %s297, %s298
      %p309 = scmp.eq.s32.totalorder %s39, 0
      %p310 = por %p308, %p309
      %p311 = scmp.ne.s32.totalorder %s297, %s298
      %p312 = scmp.eq.s32.totalorder %s40, 4
      %p313 = por %p311, %p312
      %p315 = scmp.ne.s32.totalorder %s298, %s314
      %p316 = scmp.eq.s32.totalorder %s40, 0
      %p317 = por %p315, %p316
      %s318 = sld [smem:[#allocation3 + %s34]]
      %s319 = sld [smem:[#allocation3 + %s41]]
      %s320 = ssub.s32 %s318, %s319
      %p321 = scmp.eq.s32.totalorder %s320, 0
      %s323 = sadd.s32 %s322, 1
      %s324 = scalar_select %p321, %s322, %s323
      %p327 = pneg %p321
      %p328 = scmp.eq.s32.totalorder %s34, 4
      %p329 = por %p327, %p328
      %p330 = scmp.ne.s32.totalorder %s322, %s325
      %p331 = scmp.eq.s32.totalorder %s34, 0
      %p332 = por %p330, %p331
      %p333 = scmp.ne.s32.totalorder %s322, %s325
      %p334 = scmp.eq.s32.totalorder %s39, 4
      %p335 = por %p333, %p334
      %p336 = scmp.ne.s32.totalorder %s325, %s326
      %p337 = scmp.eq.s32.totalorder %s39, 0
      %p338 = por %p336, %p337
      %p339 = scmp.ne.s32.totalorder %s325, %s326
      %p340 = scmp.eq.s32.totalorder %s40, 4
      %p341 = por %p339, %p340
      %p343 = scmp.ne.s32.totalorder %s326, %s342
      %p344 = scmp.eq.s32.totalorder %s40, 0
      %p345 = por %p343, %p344
      %s346 = sld [smem:[#allocation3 + %s34]]
      %s347 = sld [smem:[#allocation3 + %s41]]
      %s348 = ssub.s32 %s346, %s347
      %p349 = scmp.eq.s32.totalorder %s348, 0
      %s351 = sadd.s32 %s350, 1
      %s352 = scalar_select %p349, %s350, %s351
      %p355 = pneg %p349
      %p356 = scmp.eq.s32.totalorder %s34, 4
      %p357 = por %p355, %p356
      %p358 = scmp.ne.s32.totalorder %s350, %s353
      %p359 = scmp.eq.s32.totalorder %s34, 0
      %p360 = por %p358, %p359
      %p361 = scmp.ne.s32.totalorder %s350, %s353
      %p362 = scmp.eq.s32.totalorder %s39, 4
      %p363 = por %p361, %p362
      %p364 = scmp.ne.s32.totalorder %s353, %s354
      %p365 = scmp.eq.s32.totalorder %s39, 0
      %p366 = por %p364, %p365
      %p367 = scmp.ne.s32.totalorder %s353, %s354
      %p368 = scmp.eq.s32.totalorder %s40, 4
      %p369 = por %p367, %p368
      %p371 = scmp.ne.s32.totalorder %s354, %s370
      %p372 = scmp.eq.s32.totalorder %s40, 0
      %p373 = por %p371, %p372
      %s374 = ssub.s32 %s34, %s41
      %p375 = scmp.eq.s32.totalorder %s374, 0
      %s377 = sadd.s32 %s376, 1
      %s378 = scalar_select %p375, %s376, %s377
      %p381 = pneg %p375
      %p382 = scmp.eq.s32.totalorder %s34, 4
      %p383 = por %p381, %p382
      %p384 = scmp.ne.s32.totalorder %s376, %s379
      %p385 = scmp.eq.s32.totalorder %s34, 0
      %p386 = por %p384, %p385
      %p387 = scmp.ne.s32.totalorder %s376, %s379
      %p388 = scmp.eq.s32.totalorder %s39, 4
      %p389 = por %p387, %p388
      %p390 = scmp.ne.s32.totalorder %s379, %s380
      %p391 = scmp.eq.s32.totalorder %s39, 0
      %p392 = por %p390, %p391
      %p393 = scmp.ne.s32.totalorder %s379, %s380
      %p394 = scmp.eq.s32.totalorder %s40, 4
      %p395 = por %p393, %p394
      %p397 = scmp.ne.s32.totalorder %s380, %s396
      %p398 = scmp.eq.s32.totalorder %s40, 0
      %p399 = por %p397, %p398
      %p400 = scmp.le.s32.totalorder 1, %s34
      %p401 = scmp.lt.s32.totalorder %s34, 6
      %p402 = pnand %p400, %p401
      %p403 = pneg %p402
      // Predicated region
      $region9: #{tpu_custom_call.1} parent=5 // pred_check
        _
      $region10: #{tpu_custom_call.1} parent=5 // pred_check_branch
        %405 = sbr.rel (%p402) target = $region12
      $region11: #{tpu_custom_call.1} parent=5 // pred_region
        %s406 = ssub.s32 %s34, 1
      $region12: #{tpu_custom_call.1} parent=5 // pred_fallthru
        _
      %p407 = scmp.lt.s32.totalorder %s34, 5
      // Predicated region
      $region13: #{tpu_custom_call.1} parent=5 // pred_check
        %p408 = pneg %p407
      $region14: #{tpu_custom_call.1} parent=5 // pred_check_branch
        %410 = sbr.rel (%p408) target = $region16
      $region15: #{tpu_custom_call.1} parent=5 // pred_region
        // Predicated region
        $region17: #{tpu_custom_call.1} parent=15 // pred_check
          %p411 = pneg %p54
        $region18: #{tpu_custom_call.1} parent=15 // pred_check_branch
          %413 = sbr.rel (%p411) target = $region20
        $region19: #{tpu_custom_call.1} parent=15 // pred_region
          %p414 = scmp.lt.s32.totalorder %s34, 4
          %s415 = scalar_select %p414, %s34, 4
          %s416 = smul.addr %s415, 8
          %s417 = smul.addr %s416, 8
          %s418 = scalar_lea.vmem %s1, %s417
        $region20: #{tpu_custom_call.1} parent=15 // pred_fallthru
          _
        // Predicated region
        $region21: #{tpu_custom_call.1} parent=15 // pred_check
          %p419 = pneg %p80
        $region22: #{tpu_custom_call.1} parent=15 // pred_check_branch
          %421 = sbr.rel (%p419) target = $region24
        $region23: #{tpu_custom_call.1} parent=15 // pred_region
          %p422 = scmp.lt.s32.totalorder %s34, 4
          %s423 = scalar_select %p422, %s34, 4
          %s424 = smul.addr %s423, 8
          %s425 = scalar_lea.vmem %s2, %s424
        $region24: #{tpu_custom_call.1} parent=15 // pred_fallthru
          _
        // Predicated region
        $region25: #{tpu_custom_call.1} parent=15 // pred_check
          %p426 = pneg %p108
        $region26: #{tpu_custom_call.1} parent=15 // pred_check_branch
          %428 = sbr.rel (%p426) target = $region28
        $region27: #{tpu_custom_call.1} parent=15 // pred_region
          %s429 = sld [smem:[#allocation3 + %s34]]
          %p430 = scmp.lt.s32.totalorder %s429, 3
          %s431 = scalar_select %p430, %s429, 3
          %s432 = smul.addr %s431, 4
          %s433 = smul.addr %s432, 8
          %s434 = scalar_lea.vmem %s3, %s433
          %s435 = sld [smem:[#allocation3 + %s34]]
        $region28: #{tpu_custom_call.1} parent=15 // pred_fallthru
          _
        // Predicated region
        $region29: #{tpu_custom_call.1} parent=15 // pred_check
          %p436 = pneg %p136
        $region30: #{tpu_custom_call.1} parent=15 // pred_check_branch
          %438 = sbr.rel (%p436) target = $region32
        $region31: #{tpu_custom_call.1} parent=15 // pred_region
          %s439 = sld [smem:[#allocation3 + %s34]]
          %p440 = scmp.lt.s32.totalorder %s439, 3
          %s441 = scalar_select %p440, %s439, 3
          %s442 = smul.addr %s441, 4
          %s443 = smul.addr %s442, 8
          %s444 = scalar_lea.vmem %s4, %s443
          %s445 = sld [smem:[#allocation3 + %s34]]
        $region32: #{tpu_custom_call.1} parent=15 // pred_fallthru
          _
        // Predicated region
        $region33: #{tpu_custom_call.1} parent=15 // pred_check
          %p446 = pneg %p164
        $region34: #{tpu_custom_call.1} parent=15 // pred_check_branch
          %448 = sbr.rel (%p446) target = $region36
        $region35: #{tpu_custom_call.1} parent=15 // pred_region
          %s449 = sld [smem:[#allocation3 + %s34]]
          %p450 = scmp.lt.s32.totalorder %s449, 3
          %s451 = scalar_select %p450, %s449, 3
          %s452 = smul.addr %s451, 4
          %s453 = smul.addr %s452, 8
          %s454 = scalar_lea.vmem %s5, %s453
          %s455 = sld [smem:[#allocation3 + %s34]]
        $region36: #{tpu_custom_call.1} parent=15 // pred_fallthru
          _
        // Predicated region
        $region37: #{tpu_custom_call.1} parent=15 // pred_check
          %p456 = pneg %p192
        $region38: #{tpu_custom_call.1} parent=15 // pred_check_branch
          %458 = sbr.rel (%p456) target = $region40
        $region39: #{tpu_custom_call.1} parent=15 // pred_region
          %s459 = sld [smem:[#allocation3 + %s34]]
          %p460 = scmp.lt.s32.totalorder %s459, 3
          %s461 = scalar_select %p460, %s459, 3
          %s462 = smul.addr %s461, 4
          %s463 = smul.addr %s462, 8
          %s464 = scalar_lea.vmem %s6, %s463
          %s465 = sld [smem:[#allocation3 + %s34]]
        $region40: #{tpu_custom_call.1} parent=15 // pred_fallthru
          _
        // Predicated region
        $region41: #{tpu_custom_call.1} parent=15 // pred_check
          %p466 = pneg %p220
        $region42: #{tpu_custom_call.1} parent=15 // pred_check_branch
          %468 = sbr.rel (%p466) target = $region44
        $region43: #{tpu_custom_call.1} parent=15 // pred_region
          %s469 = sand.u32 %s210, 1
          %s470 = scalar_lea.sflag [#allocation5], %s469
          %s471 = sand.u32 %s210, 1
          %s472 = smul.addr %s471, 32
          %s473 = scalar_lea.vmem [#allocation4], %s472
          %s474 = sld [smem:[#allocation3 + %s34]]
          %s476 = ssub.s32 512, 512
          %477 = vsyncadd %s470, %s476
          %s478 = smul.addr %s474, 4
          %s479 = smul.addr %s478, 128
          %s480 = scalar_lea.hbm %s7, %s479
          %s481 = sshll.u32 %s473, 4
          %s482 = int_to_ptr.vmem [resolvable:$true] %s481
          %487 = dma.hbm_to_vmem [thread:$0]  %s480, 512, %s482, %s470, 128, 128, 8
        $region44: #{tpu_custom_call.1} parent=15 // pred_fallthru
          _
        // Predicated region
        $region45: #{tpu_custom_call.1} parent=15 // pred_check
          %p488 = pneg %p248
        $region46: #{tpu_custom_call.1} parent=15 // pred_check_branch
          %490 = sbr.rel (%p488) target = $region48
        $region47: #{tpu_custom_call.1} parent=15 // pred_region
          %s491 = sand.u32 %s238, 1
          %s492 = scalar_lea.sflag [#allocation8], %s491
          %s493 = sand.u32 %s238, 1
          %s494 = smul.addr %s493, 32
          %s495 = scalar_lea.vmem [#allocation7], %s494
          %s496 = sld [smem:[#allocation3 + %s34]]
          %s498 = ssub.s32 512, 512
          %499 = vsyncadd %s492, %s498
          %s500 = smul.addr %s496, 4
          %s501 = smul.addr %s500, 128
          %s502 = scalar_lea.hbm %s8, %s501
          %s503 = sshll.u32 %s495, 4
          %s504 = int_to_ptr.vmem [resolvable:$true] %s503
          %509 = dma.hbm_to_vmem [thread:$0]  %s502, 512, %s504, %s492, 128, 128, 8
        $region48: #{tpu_custom_call.1} parent=15 // pred_fallthru
          _
        // Predicated region
        $region49: #{tpu_custom_call.1} parent=15 // pred_check
          %p510 = pneg %p276
        $region50: #{tpu_custom_call.1} parent=15 // pred_check_branch
          %512 = sbr.rel (%p510) target = $region52
        $region51: #{tpu_custom_call.1} parent=15 // pred_region
          %s513 = sld [smem:[#allocation3 + %s34]]
          %p514 = scmp.lt.s32.totalorder %s513, 3
          %s515 = scalar_select %p514, %s513, 3
          %s516 = scalar_lea.vmem %s9, %s515
          %s517 = sld [smem:[#allocation3 + %s34]]
        $region52: #{tpu_custom_call.1} parent=15 // pred_fallthru
          _
        // Predicated region
        $region53: #{tpu_custom_call.1} parent=15 // pred_check
          %p518 = pneg %p304
        $region54: #{tpu_custom_call.1} parent=15 // pred_check_branch
          %520 = sbr.rel (%p518) target = $region56
        $region55: #{tpu_custom_call.1} parent=15 // pred_region
          %s521 = sld [smem:[#allocation3 + %s34]]
          %p522 = scmp.lt.s32.totalorder %s521, 3
          %s523 = scalar_select %p522, %s521, 3
          %s524 = scalar_lea.vmem %s10, %s523
          %s525 = sld [smem:[#allocation3 + %s34]]
        $region56: #{tpu_custom_call.1} parent=15 // pred_fallthru
          _
        // Predicated region
        $region57: #{tpu_custom_call.1} parent=15 // pred_check
          %p526 = pneg %p332
        $region58: #{tpu_custom_call.1} parent=15 // pred_check_branch
          %528 = sbr.rel (%p526) target = $region60
        $region59: #{tpu_custom_call.1} parent=15 // pred_region
          %s529 = sld [smem:[#allocation3 + %s34]]
          %p530 = scmp.lt.s32.totalorder %s529, 3
          %s531 = scalar_select %p530, %s529, 3
          %s532 = scalar_lea.vmem %s11, %s531
          %s533 = sld [smem:[#allocation3 + %s34]]
        $region60: #{tpu_custom_call.1} parent=15 // pred_fallthru
          _
        // Predicated region
        $region61: #{tpu_custom_call.1} parent=15 // pred_check
          %p534 = pneg %p360
        $region62: #{tpu_custom_call.1} parent=15 // pred_check_branch
          %536 = sbr.rel (%p534) target = $region64
        $region63: #{tpu_custom_call.1} parent=15 // pred_region
          %s537 = sld [smem:[#allocation3 + %s34]]
          %p538 = scmp.lt.s32.totalorder %s537, 3
          %s539 = scalar_select %p538, %s537, 3
          %s540 = scalar_lea.vmem %s12, %s539
          %s541 = sld [smem:[#allocation3 + %s34]]
        $region64: #{tpu_custom_call.1} parent=15 // pred_fallthru
          _
      $region16: #{tpu_custom_call.1} parent=5 // pred_fallthru
        _
      %p542 = scmp.le.s32.totalorder 1, %s34
      %p543 = scmp.lt.s32.totalorder %s34, 6
      %p544 = pnand %p542, %p543
      %p545 = pneg %p544
      // Predicated region
      $region65: #{tpu_custom_call.1} parent=5 // pred_check
        _
      $region66: #{tpu_custom_call.1} parent=5 // pred_check_branch
        %547 = sbr.rel (%p544) target = $region68
      $region67: #{tpu_custom_call.1} parent=5 // pred_region
        %s548 = ssub.s32 %s34, 1
        %s549 = sand.u32 %s213, 1
        %s550 = scalar_lea.sflag [#allocation5], %s549
        %s551 = sand.u32 %s213, 1
        %s552 = smul.addr %s551, 32
        %s553 = scalar_lea.vmem [#allocation4], %s552
        // Predicated region
        $region69: #{tpu_custom_call.1} parent=67 // pred_check
          %p554 = pneg %p226
        $region70: #{tpu_custom_call.1} parent=67 // pred_check_branch
          %556 = sbr.rel (%p554) target = $region72
        $region71: #{tpu_custom_call.1} parent=67 // pred_region
          %557 = dma.done %s550, 512
        $region72: #{tpu_custom_call.1} parent=67 // pred_fallthru
          _
        %s558 = sand.u32 %s241, 1
        %s559 = scalar_lea.sflag [#allocation8], %s558
        %s560 = sand.u32 %s241, 1
        %s561 = smul.addr %s560, 32
        %s562 = scalar_lea.vmem [#allocation7], %s561
        // Predicated region
        $region73: #{tpu_custom_call.1} parent=67 // pred_check
          %p563 = pneg %p254
        $region74: #{tpu_custom_call.1} parent=67 // pred_check_branch
          %565 = sbr.rel (%p563) target = $region76
        $region75: #{tpu_custom_call.1} parent=67 // pred_region
          %566 = dma.done %s559, 512
        $region76: #{tpu_custom_call.1} parent=67 // pred_fallthru
          _
        %p567 = scmp.lt.s32.totalorder %s39, 4
        %s568 = scalar_select %p567, %s39, 4
        %s569 = smul.addr %s568, 8
        %s570 = smul.addr %s569, 8
        %s571 = scalar_lea.vmem %s1, %s570
        %p572 = pneg %p60
        %p573 = pneg %p57
        %p574 = scmp.lt.s32.totalorder %s39, 4
        %s575 = scalar_select %p574, %s39, 4
        %s576 = smul.addr %s575, 8
        %s577 = scalar_lea.vmem %s2, %s576
        %p578 = pneg %p86
        %p579 = pneg %p83
        %s580 = sld [smem:[#allocation3 + %s39]]
        %p581 = scmp.lt.s32.totalorder %s580, 3
        %s582 = scalar_select %p581, %s580, 3
        %s583 = smul.addr %s582, 4
        %s584 = smul.addr %s583, 8
        %s585 = scalar_lea.vmem %s3, %s584
        %p586 = pneg %p114
        %p587 = pneg %p111
        %s588 = sld [smem:[#allocation3 + %s39]]
        %p589 = scmp.lt.s32.totalorder %s588, 3
        %s590 = scalar_select %p589, %s588, 3
        %s591 = smul.addr %s590, 4
        %s592 = smul.addr %s591, 8
        %s593 = scalar_lea.vmem %s4, %s592
        %p594 = pneg %p142
        %p595 = pneg %p139
        %s596 = sld [smem:[#allocation3 + %s39]]
        %p597 = scmp.lt.s32.totalorder %s596, 3
        %s598 = scalar_select %p597, %s596, 3
        %s599 = smul.addr %s598, 4
        %s600 = smul.addr %s599, 8
        %s601 = scalar_lea.vmem %s5, %s600
        %p602 = pneg %p170
        %p603 = pneg %p167
        %s604 = sld [smem:[#allocation3 + %s39]]
        %p605 = scmp.lt.s32.totalorder %s604, 3
        %s606 = scalar_select %p605, %s604, 3
        %s607 = smul.addr %s606, 4
        %s608 = smul.addr %s607, 8
        %s609 = scalar_lea.vmem %s6, %s608
        %p610 = pneg %p198
        %p611 = pneg %p195
        %s612 = sand.u32 %s213, 1
        %s613 = scalar_lea.sflag [#allocation5], %s612
        %s614 = sand.u32 %s213, 1
        %s615 = smul.addr %s614, 32
        %s616 = scalar_lea.vmem [#allocation4], %s615
        %p617 = pneg %p226
        %p618 = pneg %p223
        %s619 = sand.u32 %s241, 1
        %s620 = scalar_lea.sflag [#allocation8], %s619
        %s621 = sand.u32 %s241, 1
        %s622 = smul.addr %s621, 32
        %s623 = scalar_lea.vmem [#allocation7], %s622
        %p624 = pneg %p254
        %p625 = pneg %p251
        %s626 = sld [smem:[#allocation3 + %s39]]
        %p627 = scmp.lt.s32.totalorder %s626, 3
        %s628 = scalar_select %p627, %s626, 3
        %s629 = scalar_lea.vmem %s9, %s628
        %p630 = pneg %p282
        %p631 = pneg %p279
        %s632 = sld [smem:[#allocation3 + %s39]]
        %p633 = scmp.lt.s32.totalorder %s632, 3
        %s634 = scalar_select %p633, %s632, 3
        %s635 = scalar_lea.vmem %s10, %s634
        %p636 = pneg %p310
        %p637 = pneg %p307
        %s638 = sld [smem:[#allocation3 + %s39]]
        %p639 = scmp.lt.s32.totalorder %s638, 3
        %s640 = scalar_select %p639, %s638, 3
        %s641 = scalar_lea.vmem %s11, %s640
        %p642 = pneg %p338
        %p643 = pneg %p335
        %s644 = sld [smem:[#allocation3 + %s39]]
        %p645 = scmp.lt.s32.totalorder %s644, 3
        %s646 = scalar_select %p645, %s644, 3
        %s647 = scalar_lea.vmem %s12, %s646
        %p648 = pneg %p366
        %p649 = pneg %p363
        %p650 = pneg %p392
        %p651 = pneg %p389
        %s652 = sand.u32 %s379, 1
        %s653 = scalar_lea.sflag [#allocation6], %s652
        %s654 = sand.u32 %s379, 1
        %s655 = smul.addr %s654, 8
        %s656 = scalar_lea.vmem [#allocation9], %s655
        %p657 = scmp.lt.s32.totalorder %s39, 4
        %s658 = scalar_select %p657, %s39, 4
        %s659 = smul.addr %s658, 8
        %s660 = smul.addr %s659, 8
        %s661 = scalar_lea.vmem %s1, %s660
        %p662 = scmp.lt.s32.totalorder %s39, 4
        %s663 = scalar_select %p662, %s39, 4
        %s664 = smul.addr %s663, 8
        %s665 = scalar_lea.vmem %s2, %s664
        %s666 = sld [smem:[#allocation3 + %s39]]
        %p667 = scmp.lt.s32.totalorder %s666, 3
        %s668 = scalar_select %p667, %s666, 3
        %s669 = smul.addr %s668, 4
        %s670 = smul.addr %s669, 8
        %s671 = scalar_lea.vmem %s3, %s670
        %s672 = sld [smem:[#allocation3 + %s39]]
        %s673 = sld [smem:[#allocation3 + %s39]]
        %p674 = scmp.lt.s32.totalorder %s673, 3
        %s675 = scalar_select %p674, %s673, 3
        %s676 = smul.addr %s675, 4
        %s677 = smul.addr %s676, 8
        %s678 = scalar_lea.vmem %s4, %s677
        %s679 = sld [smem:[#allocation3 + %s39]]
        %s680 = sld [smem:[#allocation3 + %s39]]
        %p681 = scmp.lt.s32.totalorder %s680, 3
        %s682 = scalar_select %p681, %s680, 3
        %s683 = smul.addr %s682, 4
        %s684 = smul.addr %s683, 8
        %s685 = scalar_lea.vmem %s5, %s684
        %s686 = sld [smem:[#allocation3 + %s39]]
        %s687 = sld [smem:[#allocation3 + %s39]]
        %p688 = scmp.lt.s32.totalorder %s687, 3
        %s689 = scalar_select %p688, %s687, 3
        %s690 = smul.addr %s689, 4
        %s691 = smul.addr %s690, 8
        %s692 = scalar_lea.vmem %s6, %s691
        %s693 = sld [smem:[#allocation3 + %s39]]
        %s694 = sld [smem:[#allocation3 + %s39]]
        %s695 = sld [smem:[#allocation3 + %s39]]
        %s696 = sld [smem:[#allocation3 + %s39]]
        %p697 = scmp.lt.s32.totalorder %s696, 3
        %s698 = scalar_select %p697, %s696, 3
        %s699 = scalar_lea.vmem %s9, %s698
        %s700 = sld [smem:[#allocation3 + %s39]]
        %s701 = sld [smem:[#allocation3 + %s39]]
        %p702 = scmp.lt.s32.totalorder %s701, 3
        %s703 = scalar_select %p702, %s701, 3
        %s704 = scalar_lea.vmem %s10, %s703
        %s705 = sld [smem:[#allocation3 + %s39]]
        %s706 = sld [smem:[#allocation3 + %s39]]
        %p707 = scmp.lt.s32.totalorder %s706, 3
        %s708 = scalar_select %p707, %s706, 3
        %s709 = scalar_lea.vmem %s11, %s708
        %s710 = sld [smem:[#allocation3 + %s39]]
        %s711 = sld [smem:[#allocation3 + %s39]]
        %p712 = scmp.lt.s32.totalorder %s711, 3
        %s713 = scalar_select %p712, %s711, 3
        %s714 = scalar_lea.vmem %s12, %s713
        %s715 = sld [smem:[#allocation3 + %s39]]
        %v716 = vld [vmem:[%s661] sm:$0xff]
        %v717 = vld [vmem:[%s661 + $0x8] sm:$0xff]
        %v718 = vld [vmem:[%s661 + $0x10] sm:$0xff]
        %v719 = vld [vmem:[%s661 + $0x18] sm:$0xff]
        %v720 = vld [vmem:[%s661 + $0x20] sm:$0xff]
        %v721 = vld [vmem:[%s661 + $0x28] sm:$0xff]
        %v722 = vld [vmem:[%s661 + $0x30] sm:$0xff]
        %v723 = vld [vmem:[%s661 + $0x38] sm:$0xff]
        %v724 = vld [vmem:[%s671] sm:$0xff]
        %v725 = vld [vmem:[%s671 + $0x8] sm:$0xff]
        %v726 = vld [vmem:[%s671 + $0x10] sm:$0xff]
        %v727 = vld [vmem:[%s671 + $0x18] sm:$0xff]
        %v728 = vld [vmem:[%s699] sm:$0x1]
        %v730 = vlaneseq
        %v731 = vshrl.u32 %v730, 7
        %v732 = vsub.s32 0, %v731
        %v733 = vrot.slane %v728, %v732
        %vm735 = vcmask 261120
        %v737 = vsel %vm735, %v716, 0
        %v740 = vsel %vm735, %v717, 0
        %v743 = vsel %vm735, %v718, 0
        %v746 = vsel %vm735, %v719, 0
        %v749 = vsel %vm735, %v720, 0
        %v752 = vsel %vm735, %v721, 0
        %v755 = vsel %vm735, %v722, 0
        %v758 = vsel %vm735, %v723, 0
        %760 = vmatprep.subr.mxu0 0.0
        %761 = vmatpush1.msra.mxu0 %v724
        %762 = vmatprep.subr.mxu0 0.0
        %763 = vmatpush1.msra.mxu0 %v725
        %764 = vmatprep.subr.mxu0 0.0
        %765 = vmatpush1.msra.mxu0 %v726
        %766 = vmatprep.subr.mxu0 0.0
        %767 = vmatpush1.msra.mxu0 %v727
        %768 = vmatprep.subr.mxu0 0.0
        %769 = vmatpush1.msra.mxu0 0.0
        %770 = vmatprep.subr.mxu0 0.0
        %771 = vmatpush1.msra.mxu0 0.0
        %772 = vmatprep.subr.mxu0 0.0
        %773 = vmatpush1.msra.mxu0 0.0
        %774 = vmatprep.subr.mxu0 0.0
        %775 = vmatpush1.msra.mxu0 0.0
        %776 = vmatprep.subr.mxu0 0.0
        %777 = vmatpush1.msra.mxu0 0.0
        %778 = vmatprep.subr.mxu0 0.0
        %779 = vmatpush1.msra.mxu0 0.0
        %780 = vmatprep.subr.mxu0 0.0
        %781 = vmatpush1.msra.mxu0 0.0
        %782 = vmatprep.subr.mxu0 0.0
        %783 = vmatpush1.msra.mxu0 0.0
        %784 = vmatprep.subr.mxu0 0.0
        %785 = vmatpush1.msra.mxu0 0.0
        %786 = vmatprep.subr.mxu0 0.0
        %787 = vmatpush1.msra.mxu0 0.0
        %788 = vmatprep.subr.mxu0 0.0
        %789 = vmatpush1.msra.mxu0 0.0
        %790 = vmatprep.subr.mxu0 0.0
        %791 = vmatpush1.msra.mxu0 0.0
        %792 = vmatprep.subr.mxu0 0.0
        %793 = vmatpush1.msra.mxu0 0.0
        %794 = vmatprep.subr.mxu0 0.0
        %795 = vmatpush1.msra.mxu0 0.0
        %796 = vmatprep.subr.mxu0 0.0
        %797 = vmatpush1.msra.mxu0 0.0
        %798 = vmatprep.subr.mxu0 0.0
        %799 = vmatpush1.msra.mxu0 0.0
        %800 = vmatprep.subr.mxu0 0.0
        %801 = vmatpush1.msra.mxu0 0.0
        %802 = vmatprep.subr.mxu0 0.0
        %803 = vmatpush1.msra.mxu0 0.0
        %804 = vmatprep.subr.mxu0 0.0
        %805 = vmatpush1.msra.mxu0 0.0
        %806 = vmatprep.subr.mxu0 0.0
        %807 = vmatpush1.msra.mxu0 0.0
        %808 = vmatprep.subr.mxu0 0.0
        %809 = vmatpush1.msra.mxu0 0.0
        %810 = vmatprep.subr.mxu0 0.0
        %811 = vmatpush1.msra.mxu0 0.0
        %812 = vmatprep.subr.mxu0 0.0
        %813 = vmatpush1.msra.mxu0 0.0
        %814 = vmatprep.subr.mxu0 0.0
        %815 = vmatpush1.msra.mxu0 0.0
        %816 = vmatprep.subr.mxu0 0.0
        %817 = vmatpush1.msra.mxu0 0.0
        %818 = vmatprep.subr.mxu0 0.0
        %819 = vmatpush1.msra.mxu0 0.0
        %820 = vmatprep.subr.mxu0 0.0
        %821 = vmatpush1.msra.mxu0 0.0
        %822 = vmatprep.subr.mxu0 0.0
        %823 = vmatpush1.msra.mxu0 0.0
        %824 = vmatprep.mubr.f32.mxu0 0.0
        %825 = vmatmul.mubr.f32.gmra.mrb[0].mxu0 %v737
        %v826 = vpop.f32.mrb[0].mxu0
        %v827 = vadd.f32 %v733, %v826
        %v828 = vpop.f32.mrb[0].mxu0
        %829 = vmatprep.mubr.f32.mxu0 0.0
        %830 = vmatmul.mubr.f32.gmra.mrb[0].mxu0 %v740
        %v831 = vpop.f32.mrb[0].mxu0
        %v832 = vadd.f32 %v733, %v831
        %v833 = vpop.f32.mrb[0].mxu0
        %834 = vmatprep.mubr.f32.mxu0 0.0
        %835 = vmatmul.mubr.f32.gmra.mrb[0].mxu0 %v743
        %v836 = vpop.f32.mrb[0].mxu0
        %v837 = vadd.f32 %v733, %v836
        %v838 = vpop.f32.mrb[0].mxu0
        %839 = vmatprep.mubr.f32.mxu0 0.0
        %840 = vmatmul.mubr.f32.gmra.mrb[0].mxu0 %v746
        %v841 = vpop.f32.mrb[0].mxu0
        %v842 = vadd.f32 %v733, %v841
        %v843 = vpop.f32.mrb[0].mxu0
        %844 = vmatprep.mubr.f32.mxu0 0.0
        %845 = vmatmul.mubr.f32.gmra.mrb[0].mxu0 %v749
        %v846 = vpop.f32.mrb[0].mxu0
        %v847 = vadd.f32 %v733, %v846
        %v848 = vpop.f32.mrb[0].mxu0
        %849 = vmatprep.mubr.f32.mxu0 0.0
        %850 = vmatmul.mubr.f32.gmra.mrb[0].mxu0 %v752
        %v851 = vpop.f32.mrb[0].mxu0
        %v852 = vadd.f32 %v733, %v851
        %v853 = vpop.f32.mrb[0].mxu0
        %854 = vmatprep.mubr.f32.mxu0 0.0
        %855 = vmatmul.mubr.f32.gmra.mrb[0].mxu0 %v755
        %v856 = vpop.f32.mrb[0].mxu0
        %v857 = vadd.f32 %v733, %v856
        %v858 = vpop.f32.mrb[0].mxu0
        %859 = vmatprep.mubr.f32.mxu0 0.0
        %860 = vmatmul.mubr.f32.gmra.mrb[0].mxu0 %v758
        %v861 = vpop.f32.mrb[0].mxu0
        %v862 = vadd.f32 %v733, %v861
        %v863 = vpop.f32.mrb[0].mxu0
        %864 = vdwg.mxu0
        %v865 = vld [vmem:[%s678] sm:$0xff]
        %v866 = vld [vmem:[%s678 + $0x8] sm:$0xff]
        %v867 = vld [vmem:[%s678 + $0x10] sm:$0xff]
        %v868 = vld [vmem:[%s678 + $0x18] sm:$0xff]
        %v869 = vld [vmem:[%s704] sm:$0x1]
        %v871 = vlaneseq
        %v872 = vshrl.u32 %v871, 7
        %v873 = vsub.s32 0, %v872
        %v874 = vrot.slane %v869, %v873
        %876 = vmatprep.subr.mxu0 0.0
        %877 = vmatpush1.msra.mxu0 %v865
        %878 = vmatprep.subr.mxu0 0.0
        %879 = vmatpush1.msra.mxu0 %v866
        %880 = vmatprep.subr.mxu0 0.0
        %881 = vmatpush1.msra.mxu0 %v867
        %882 = vmatprep.subr.mxu0 0.0
        %883 = vmatpush1.msra.mxu0 %v868
        %884 = vmatprep.subr.mxu0 0.0
        %885 = vmatpush1.msra.mxu0 0.0
        %886 = vmatprep.subr.mxu0 0.0
        %887 = vmatpush1.msra.mxu0 0.0
        %888 = vmatprep.subr.mxu0 0.0
        %889 = vmatpush1.msra.mxu0 0.0
        %890 = vmatprep.subr.mxu0 0.0
        %891 = vmatpush1.msra.mxu0 0.0
        %892 = vmatprep.subr.mxu0 0.0
        %893 = vmatpush1.msra.mxu0 0.0
        %894 = vmatprep.subr.mxu0 0.0
        %895 = vmatpush1.msra.mxu0 0.0
        %896 = vmatprep.subr.mxu0 0.0
        %897 = vmatpush1.msra.mxu0 0.0
        %898 = vmatprep.subr.mxu0 0.0
        %899 = vmatpush1.msra.mxu0 0.0
        %900 = vmatprep.subr.mxu0 0.0
        %901 = vmatpush1.msra.mxu0 0.0
        %902 = vmatprep.subr.mxu0 0.0
        %903 = vmatpush1.msra.mxu0 0.0
        %904 = vmatprep.subr.mxu0 0.0
        %905 = vmatpush1.msra.mxu0 0.0
        %906 = vmatprep.subr.mxu0 0.0
        %907 = vmatpush1.msra.mxu0 0.0
        %908 = vmatprep.subr.mxu0 0.0
        %909 = vmatpush1.msra.mxu0 0.0
        %910 = vmatprep.subr.mxu0 0.0
        %911 = vmatpush1.msra.mxu0 0.0
        %912 = vmatprep.subr.mxu0 0.0
        %913 = vmatpush1.msra.mxu0 0.0
        %914 = vmatprep.subr.mxu0 0.0
        %915 = vmatpush1.msra.mxu0 0.0
        %916 = vmatprep.subr.mxu0 0.0
        %917 = vmatpush1.msra.mxu0 0.0
        %918 = vmatprep.subr.mxu0 0.0
        %919 = vmatpush1.msra.mxu0 0.0
        %920 = vmatprep.subr.mxu0 0.0
        %921 = vmatpush1.msra.mxu0 0.0
        %922 = vmatprep.subr.mxu0 0.0
        %923 = vmatpush1.msra.mxu0 0.0
        %924 = vmatprep.subr.mxu0 0.0
        %925 = vmatpush1.msra.mxu0 0.0
        %926 = vmatprep.subr.mxu0 0.0
        %927 = vmatpush1.msra.mxu0 0.0
        %928 = vmatprep.subr.mxu0 0.0
        %929 = vmatpush1.msra.mxu0 0.0
        %930 = vmatprep.subr.mxu0 0.0
        %931 = vmatpush1.msra.mxu0 0.0
        %932 = vmatprep.subr.mxu0 0.0
        %933 = vmatpush1.msra.mxu0 0.0
        %934 = vmatprep.subr.mxu0 0.0
        %935 = vmatpush1.msra.mxu0 0.0
        %936 = vmatprep.subr.mxu0 0.0
        %937 = vmatpush1.msra.mxu0 0.0
        %938 = vmatprep.subr.mxu0 0.0
        %939 = vmatpush1.msra.mxu0 0.0
        %940 = vmatprep.mubr.f32.mxu0 0.0
        %941 = vmatmul.mubr.f32.gmra.mrb[0].mxu0 %v737
        %v942 = vpop.f32.mrb[0].mxu0
        %v943 = vadd.f32 %v874, %v942
        %v944 = vpop.f32.mrb[0].mxu0
        %945 = vmatprep.mubr.f32.mxu0 0.0
        %946 = vmatmul.mubr.f32.gmra.mrb[0].mxu0 %v740
        %v947 = vpop.f32.mrb[0].mxu0
        %v948 = vadd.f32 %v874, %v947
        %v949 = vpop.f32.mrb[0].mxu0
        %950 = vmatprep.mubr.f32.mxu0 0.0
        %951 = vmatmul.mubr.f32.gmra.mrb[0].mxu0 %v743
        %v952 = vpop.f32.mrb[0].mxu0
        %v953 = vadd.f32 %v874, %v952
        %v954 = vpop.f32.mrb[0].mxu0
        %955 = vmatprep.mubr.f32.mxu0 0.0
        %956 = vmatmul.mubr.f32.gmra.mrb[0].mxu0 %v746
        %v957 = vpop.f32.mrb[0].mxu0
        %v958 = vadd.f32 %v874, %v957
        %v959 = vpop.f32.mrb[0].mxu0
        %960 = vmatprep.mubr.f32.mxu0 0.0
        %961 = vmatmul.mubr.f32.gmra.mrb[0].mxu0 %v749
        %v962 = vpop.f32.mrb[0].mxu0
        %v963 = vadd.f32 %v874, %v962
        %v964 = vpop.f32.mrb[0].mxu0
        %965 = vmatprep.mubr.f32.mxu0 0.0
        %966 = vmatmul.mubr.f32.gmra.mrb[0].mxu0 %v752
        %v967 = vpop.f32.mrb[0].mxu0
        %v968 = vadd.f32 %v874, %v967
        %v969 = vpop.f32.mrb[0].mxu0
        %970 = vmatprep.mubr.f32.mxu0 0.0
        %971 = vmatmul.mubr.f32.gmra.mrb[0].mxu0 %v755
        %v972 = vpop.f32.mrb[0].mxu0
        %v973 = vadd.f32 %v874, %v972
        %v974 = vpop.f32.mrb[0].mxu0
        %975 = vmatprep.mubr.f32.mxu0 0.0
        %976 = vmatmul.mubr.f32.gmra.mrb[0].mxu0 %v758
        %v977 = vpop.f32.mrb[0].mxu0
        %v978 = vadd.f32 %v874, %v977
        %v979 = vpop.f32.mrb[0].mxu0
        %980 = vdwg.mxu0
        %v981 = vld [vmem:[%s685] sm:$0xff]
        %v982 = vld [vmem:[%s685 + $0x8] sm:$0xff]
        %v983 = vld [vmem:[%s685 + $0x10] sm:$0xff]
        %v984 = vld [vmem:[%s685 + $0x18] sm:$0xff]
        %v985 = vld [vmem:[%s709] sm:$0x1]
        %v987 = vlaneseq
        %v988 = vshrl.u32 %v987, 7
        %v989 = vsub.s32 0, %v988
        %v990 = vrot.slane %v985, %v989
        %992 = vmatprep.subr.mxu0 0.0
        %993 = vmatpush1.msra.mxu0 %v981
        %994 = vmatprep.subr.mxu0 0.0
        %995 = vmatpush1.msra.mxu0 %v982
        %996 = vmatprep.subr.mxu0 0.0
        %997 = vmatpush1.msra.mxu0 %v983
        %998 = vmatprep.subr.mxu0 0.0
        %999 = vmatpush1.msra.mxu0 %v984
        %1000 = vmatprep.subr.mxu0 0.0
        %1001 = vmatpush1.msra.mxu0 0.0
        %1002 = vmatprep.subr.mxu0 0.0
        %1003 = vmatpush1.msra.mxu0 0.0
        %1004 = vmatprep.subr.mxu0 0.0
        %1005 = vmatpush1.msra.mxu0 0.0
        %1006 = vmatprep.subr.mxu0 0.0
        %1007 = vmatpush1.msra.mxu0 0.0
        %1008 = vmatprep.subr.mxu0 0.0
        %1009 = vmatpush1.msra.mxu0 0.0
        %1010 = vmatprep.subr.mxu0 0.0
        %1011 = vmatpush1.msra.mxu0 0.0
        %1012 = vmatprep.subr.mxu0 0.0
        %1013 = vmatpush1.msra.mxu0 0.0
        %1014 = vmatprep.subr.mxu0 0.0
        %1015 = vmatpush1.msra.mxu0 0.0
        %1016 = vmatprep.subr.mxu0 0.0
        %1017 = vmatpush1.msra.mxu0 0.0
        %1018 = vmatprep.subr.mxu0 0.0
        %1019 = vmatpush1.msra.mxu0 0.0
        %1020 = vmatprep.subr.mxu0 0.0
        %1021 = vmatpush1.msra.mxu0 0.0
        %1022 = vmatprep.subr.mxu0 0.0
        %1023 = vmatpush1.msra.mxu0 0.0
        %1024 = vmatprep.subr.mxu0 0.0
        %1025 = vmatpush1.msra.mxu0 0.0
        %1026 = vmatprep.subr.mxu0 0.0
        %1027 = vmatpush1.msra.mxu0 0.0
        %1028 = vmatprep.subr.mxu0 0.0
        %1029 = vmatpush1.msra.mxu0 0.0
        %1030 = vmatprep.subr.mxu0 0.0
        %1031 = vmatpush1.msra.mxu0 0.0
        %1032 = vmatprep.subr.mxu0 0.0
        %1033 = vmatpush1.msra.mxu0 0.0
        %1034 = vmatprep.subr.mxu0 0.0
        %1035 = vmatpush1.msra.mxu0 0.0
        %1036 = vmatprep.subr.mxu0 0.0
        %1037 = vmatpush1.msra.mxu0 0.0
        %1038 = vmatprep.subr.mxu0 0.0
        %1039 = vmatpush1.msra.mxu0 0.0
        %1040 = vmatprep.subr.mxu0 0.0
        %1041 = vmatpush1.msra.mxu0 0.0
        %1042 = vmatprep.subr.mxu0 0.0
        %1043 = vmatpush1.msra.mxu0 0.0
        %1044 = vmatprep.subr.mxu0 0.0
        %1045 = vmatpush1.msra.mxu0 0.0
        %1046 = vmatprep.subr.mxu0 0.0
        %1047 = vmatpush1.msra.mxu0 0.0
        %1048 = vmatprep.subr.mxu0 0.0
        %1049 = vmatpush1.msra.mxu0 0.0
        %1050 = vmatprep.subr.mxu0 0.0
        %1051 = vmatpush1.msra.mxu0 0.0
        %1052 = vmatprep.subr.mxu0 0.0
        %1053 = vmatpush1.msra.mxu0 0.0
        %1054 = vmatprep.subr.mxu0 0.0
        %1055 = vmatpush1.msra.mxu0 0.0
        %1056 = vmatprep.mubr.f32.mxu0 0.0
        %1057 = vmatmul.mubr.f32.gmra.mrb[0].mxu0 %v737
        %v1058 = vpop.f32.mrb[0].mxu0
        %v1059 = vadd.f32 %v990, %v1058
        %v1060 = vpop.f32.mrb[0].mxu0
        %1061 = vmatprep.mubr.f32.mxu0 0.0
        %1062 = vmatmul.mubr.f32.gmra.mrb[0].mxu0 %v740
        %v1063 = vpop.f32.mrb[0].mxu0
        %v1064 = vadd.f32 %v990, %v1063
        %v1065 = vpop.f32.mrb[0].mxu0
        %1066 = vmatprep.mubr.f32.mxu0 0.0
        %1067 = vmatmul.mubr.f32.gmra.mrb[0].mxu0 %v743
        %v1068 = vpop.f32.mrb[0].mxu0
        %v1069 = vadd.f32 %v990, %v1068
        %v1070 = vpop.f32.mrb[0].mxu0
        %1071 = vmatprep.mubr.f32.mxu0 0.0
        %1072 = vmatmul.mubr.f32.gmra.mrb[0].mxu0 %v746
        %v1073 = vpop.f32.mrb[0].mxu0
        %v1074 = vadd.f32 %v990, %v1073
        %v1075 = vpop.f32.mrb[0].mxu0
        %1076 = vmatprep.mubr.f32.mxu0 0.0
        %1077 = vmatmul.mubr.f32.gmra.mrb[0].mxu0 %v749
        %v1078 = vpop.f32.mrb[0].mxu0
        %v1079 = vadd.f32 %v990, %v1078
        %v1080 = vpop.f32.mrb[0].mxu0
        %1081 = vmatprep.mubr.f32.mxu0 0.0
        %1082 = vmatmul.mubr.f32.gmra.mrb[0].mxu0 %v752
        %v1083 = vpop.f32.mrb[0].mxu0
        %v1084 = vadd.f32 %v990, %v1083
        %v1085 = vpop.f32.mrb[0].mxu0
        %1086 = vmatprep.mubr.f32.mxu0 0.0
        %1087 = vmatmul.mubr.f32.gmra.mrb[0].mxu0 %v755
        %v1088 = vpop.f32.mrb[0].mxu0
        %v1089 = vadd.f32 %v990, %v1088
        %v1090 = vpop.f32.mrb[0].mxu0
        %1091 = vmatprep.mubr.f32.mxu0 0.0
        %1092 = vmatmul.mubr.f32.gmra.mrb[0].mxu0 %v758
        %v1093 = vpop.f32.mrb[0].mxu0
        %v1094 = vadd.f32 %v990, %v1093
        %v1095 = vpop.f32.mrb[0].mxu0
        %1096 = vdwg.mxu0
        %v1097 = vld [vmem:[%s692] sm:$0xff]
        %v1098 = vld [vmem:[%s692 + $0x8] sm:$0xff]
        %v1099 = vld [vmem:[%s692 + $0x10] sm:$0xff]
        %v1100 = vld [vmem:[%s692 + $0x18] sm:$0xff]
        %v1101 = vld [vmem:[%s553] sm:$0xff]
        %v1102 = vld [vmem:[%s553 + $0x8] sm:$0xff]
        %v1103 = vld [vmem:[%s553 + $0x10] sm:$0xff]
        %v1104 = vld [vmem:[%s553 + $0x18] sm:$0xff]
        %v1105 = vld [vmem:[%s562] sm:$0xff]
        %v1106 = vld [vmem:[%s562 + $0x8] sm:$0xff]
        %v1107 = vld [vmem:[%s562 + $0x10] sm:$0xff]
        %v1108 = vld [vmem:[%s562 + $0x18] sm:$0xff]
        %v1109 = vld [vmem:[%s714] sm:$0x1]
        %v1111 = vlaneseq
        %v1112 = vshrl.u32 %v1111, 7
        %v1113 = vsub.s32 0, %v1112
        %v1114 = vrot.slane %v1109, %v1113
        %v1116 = vld [vmem:[%s665] sm:$0xff]
        %v1118 = vsel %vm735, 0.0, 0
        %1120 = vmatprep.subr.mxu0 0.0
        %1121 = vmatpush1.msra.mxu0 %v1097
        %1122 = vmatprep.subr.mxu0 0.0
        %1123 = vmatpush1.msra.mxu0 %v1098
        %1124 = vmatprep.subr.mxu0 0.0
        %1125 = vmatpush1.msra.mxu0 %v1099
        %1126 = vmatprep.subr.mxu0 0.0
        %1127 = vmatpush1.msra.mxu0 %v1100
        %1128 = vmatprep.subr.mxu0 0.0
        %1129 = vmatpush1.msra.mxu0 0.0
        %1130 = vmatprep.subr.mxu0 0.0
        %1131 = vmatpush1.msra.mxu0 0.0
        %1132 = vmatprep.subr.mxu0 0.0
        %1133 = vmatpush1.msra.mxu0 0.0
        %1134 = vmatprep.subr.mxu0 0.0
        %1135 = vmatpush1.msra.mxu0 0.0
        %1136 = vmatprep.subr.mxu0 0.0
        %1137 = vmatpush1.msra.mxu0 0.0
        %1138 = vmatprep.subr.mxu0 0.0
        %1139 = vmatpush1.msra.mxu0 0.0
        %1140 = vmatprep.subr.mxu0 0.0
        %1141 = vmatpush1.msra.mxu0 0.0
        %1142 = vmatprep.subr.mxu0 0.0
        %1143 = vmatpush1.msra.mxu0 0.0
        %1144 = vmatprep.subr.mxu0 0.0
        %1145 = vmatpush1.msra.mxu0 0.0
        %1146 = vmatprep.subr.mxu0 0.0
        %1147 = vmatpush1.msra.mxu0 0.0
        %1148 = vmatprep.subr.mxu0 0.0
        %1149 = vmatpush1.msra.mxu0 0.0
        %1150 = vmatprep.subr.mxu0 0.0
        %1151 = vmatpush1.msra.mxu0 0.0
        %1152 = vmatprep.subr.mxu0 0.0
        %1153 = vmatpush1.msra.mxu0 0.0
        %1154 = vmatprep.subr.mxu0 0.0
        %1155 = vmatpush1.msra.mxu0 0.0
        %1156 = vmatprep.subr.mxu0 0.0
        %1157 = vmatpush1.msra.mxu0 0.0
        %1158 = vmatprep.subr.mxu0 0.0
        %1159 = vmatpush1.msra.mxu0 0.0
        %1160 = vmatprep.subr.mxu0 0.0
        %1161 = vmatpush1.msra.mxu0 0.0
        %1162 = vmatprep.subr.mxu0 0.0
        %1163 = vmatpush1.msra.mxu0 0.0
        %1164 = vmatprep.subr.mxu0 0.0
        %1165 = vmatpush1.msra.mxu0 0.0
        %1166 = vmatprep.subr.mxu0 0.0
        %1167 = vmatpush1.msra.mxu0 0.0
        %1168 = vmatprep.subr.mxu0 0.0
        %1169 = vmatpush1.msra.mxu0 0.0
        %1170 = vmatprep.subr.mxu0 0.0
        %1171 = vmatpush1.msra.mxu0 0.0
        %1172 = vmatprep.subr.mxu0 0.0
        %1173 = vmatpush1.msra.mxu0 0.0
        %1174 = vmatprep.subr.mxu0 0.0
        %1175 = vmatpush1.msra.mxu0 0.0
        %1176 = vmatprep.subr.mxu0 0.0
        %1177 = vmatpush1.msra.mxu0 0.0
        %1178 = vmatprep.subr.mxu0 0.0
        %1179 = vmatpush1.msra.mxu0 0.0
        %1180 = vmatprep.subr.mxu0 0.0
        %1181 = vmatpush1.msra.mxu0 0.0
        %1182 = vmatprep.subr.mxu0 0.0
        %1183 = vmatpush1.msra.mxu0 0.0
        %1184 = vmatprep.mubr.f32.mxu0 0.0
        %1185 = vmatmul.mubr.f32.gmra.mrb[0].mxu0 %v1118
        %v1186 = vpop.f32.mrb[0].mxu0
        %v1187 = vadd.f32 0.0, %v1186
        %v1188 = vpop.f32.mrb[0].mxu0
        %1189 = vdwg.mxu0
        %1190 = vmatprep.subr.mxu0 0.0
        %1191 = vmatpush1.msra.mxu0 %v1101
        %1192 = vmatprep.subr.mxu0 0.0
        %1193 = vmatpush1.msra.mxu0 %v1102
        %1194 = vmatprep.subr.mxu0 0.0
        %1195 = vmatpush1.msra.mxu0 %v1103
        %1196 = vmatprep.subr.mxu0 0.0
        %1197 = vmatpush1.msra.mxu0 %v1104
        %1198 = vmatprep.subr.mxu0 0.0
        %1199 = vmatpush1.msra.mxu0 0.0
        %1200 = vmatprep.subr.mxu0 0.0
        %1201 = vmatpush1.msra.mxu0 0.0
        %1202 = vmatprep.subr.mxu0 0.0
        %1203 = vmatpush1.msra.mxu0 0.0
        %1204 = vmatprep.subr.mxu0 0.0
        %1205 = vmatpush1.msra.mxu0 0.0
        %1206 = vmatprep.subr.mxu0 0.0
        %1207 = vmatpush1.msra.mxu0 0.0
        %1208 = vmatprep.subr.mxu0 0.0
        %1209 = vmatpush1.msra.mxu0 0.0
        %1210 = vmatprep.subr.mxu0 0.0
        %1211 = vmatpush1.msra.mxu0 0.0
        %1212 = vmatprep.subr.mxu0 0.0
        %1213 = vmatpush1.msra.mxu0 0.0
        %1214 = vmatprep.subr.mxu0 0.0
        %1215 = vmatpush1.msra.mxu0 0.0
        %1216 = vmatprep.subr.mxu0 0.0
        %1217 = vmatpush1.msra.mxu0 0.0
        %1218 = vmatprep.subr.mxu0 0.0
        %1219 = vmatpush1.msra.mxu0 0.0
        %1220 = vmatprep.subr.mxu0 0.0
        %1221 = vmatpush1.msra.mxu0 0.0
        %1222 = vmatprep.subr.mxu0 0.0
        %1223 = vmatpush1.msra.mxu0 0.0
        %1224 = vmatprep.subr.mxu0 0.0
        %1225 = vmatpush1.msra.mxu0 0.0
        %1226 = vmatprep.subr.mxu0 0.0
        %1227 = vmatpush1.msra.mxu0 0.0
        %1228 = vmatprep.subr.mxu0 0.0
        %1229 = vmatpush1.msra.mxu0 0.0
        %1230 = vmatprep.subr.mxu0 0.0
        %1231 = vmatpush1.msra.mxu0 0.0
        %1232 = vmatprep.subr.mxu0 0.0
        %1233 = vmatpush1.msra.mxu0 0.0
        %1234 = vmatprep.subr.mxu0 0.0
        %1235 = vmatpush1.msra.mxu0 0.0
        %1236 = vmatprep.subr.mxu0 0.0
        %1237 = vmatpush1.msra.mxu0 0.0
        %1238 = vmatprep.subr.mxu0 0.0
        %1239 = vmatpush1.msra.mxu0 0.0
        %1240 = vmatprep.subr.mxu0 0.0
        %1241 = vmatpush1.msra.mxu0 0.0
        %1242 = vmatprep.subr.mxu0 0.0
        %1243 = vmatpush1.msra.mxu0 0.0
        %1244 = vmatprep.subr.mxu0 0.0
        %1245 = vmatpush1.msra.mxu0 0.0
        %1246 = vmatprep.subr.mxu0 0.0
        %1247 = vmatpush1.msra.mxu0 0.0
        %1248 = vmatprep.subr.mxu0 0.0
        %1249 = vmatpush1.msra.mxu0 0.0
        %1250 = vmatprep.subr.mxu0 0.0
        %1251 = vmatpush1.msra.mxu0 0.0
        %1252 = vmatprep.subr.mxu0 0.0
        %1253 = vmatpush1.msra.mxu0 0.0
        %1254 = vmatprep.mubr.f32.mxu0 0.0
        %1255 = vmatmul.mubr.f32.gmra.mrb[0].mxu0 %v1118
        %v1256 = vpop.f32.mrb[0].mxu0
        %v1257 = vadd.f32 0.0, %v1256
        %v1258 = vpop.f32.mrb[0].mxu0
        %1259 = vdwg.mxu0
        %v1260 = vadd.f32 %v827, %v1187
        %v1261 = vxor.u32 %v1260, 2147483648
        %v1262 = vmul.f32 %v1261, 1.442695
        %v1263 = vpow.pop %v1262
        %v1264 = vadd.f32 %v1263, 1.0
        %v1265 = vrcp.pop %v1264
        %v1266 = vmul.f32 1.0, %v1265
        %v1267 = vadd.f32 %v943, %v1257
        %v1268 = vxor.u32 %v1267, 2147483648
        %v1269 = vmul.f32 %v1268, 1.442695
        %v1270 = vpow.pop %v1269
        %v1271 = vadd.f32 %v1270, 1.0
        %v1272 = vrcp.pop %v1271
        %v1273 = vmul.f32 1.0, %v1272
        %1274 = vmatprep.subr.mxu0 0.0
        %1275 = vmatpush1.msra.mxu0 %v1105
        %1276 = vmatprep.subr.mxu0 0.0
        %1277 = vmatpush1.msra.mxu0 %v1106
        %1278 = vmatprep.subr.mxu0 0.0
        %1279 = vmatpush1.msra.mxu0 %v1107
        %1280 = vmatprep.subr.mxu0 0.0
        %1281 = vmatpush1.msra.mxu0 %v1108
        %1282 = vmatprep.subr.mxu0 0.0
        %1283 = vmatpush1.msra.mxu0 0.0
        %1284 = vmatprep.subr.mxu0 0.0
        %1285 = vmatpush1.msra.mxu0 0.0
        %1286 = vmatprep.subr.mxu0 0.0
        %1287 = vmatpush1.msra.mxu0 0.0
        %1288 = vmatprep.subr.mxu0 0.0
        %1289 = vmatpush1.msra.mxu0 0.0
        %1290 = vmatprep.subr.mxu0 0.0
        %1291 = vmatpush1.msra.mxu0 0.0
        %1292 = vmatprep.subr.mxu0 0.0
        %1293 = vmatpush1.msra.mxu0 0.0
        %1294 = vmatprep.subr.mxu0 0.0
        %1295 = vmatpush1.msra.mxu0 0.0
        %1296 = vmatprep.subr.mxu0 0.0
        %1297 = vmatpush1.msra.mxu0 0.0
        %1298 = vmatprep.subr.mxu0 0.0
        %1299 = vmatpush1.msra.mxu0 0.0
        %1300 = vmatprep.subr.mxu0 0.0
        %1301 = vmatpush1.msra.mxu0 0.0
        %1302 = vmatprep.subr.mxu0 0.0
        %1303 = vmatpush1.msra.mxu0 0.0
        %1304 = vmatprep.subr.mxu0 0.0
        %1305 = vmatpush1.msra.mxu0 0.0
        %1306 = vmatprep.subr.mxu0 0.0
        %1307 = vmatpush1.msra.mxu0 0.0
        %1308 = vmatprep.subr.mxu0 0.0
        %1309 = vmatpush1.msra.mxu0 0.0
        %1310 = vmatprep.subr.mxu0 0.0
        %1311 = vmatpush1.msra.mxu0 0.0
        %1312 = vmatprep.subr.mxu0 0.0
        %1313 = vmatpush1.msra.mxu0 0.0
        %1314 = vmatprep.subr.mxu0 0.0
        %1315 = vmatpush1.msra.mxu0 0.0
        %1316 = vmatprep.subr.mxu0 0.0
        %1317 = vmatpush1.msra.mxu0 0.0
        %1318 = vmatprep.subr.mxu0 0.0
        %1319 = vmatpush1.msra.mxu0 0.0
        %1320 = vmatprep.subr.mxu0 0.0
        %1321 = vmatpush1.msra.mxu0 0.0
        %1322 = vmatprep.subr.mxu0 0.0
        %1323 = vmatpush1.msra.mxu0 0.0
        %1324 = vmatprep.subr.mxu0 0.0
        %1325 = vmatpush1.msra.mxu0 0.0
        %1326 = vmatprep.subr.mxu0 0.0
        %1327 = vmatpush1.msra.mxu0 0.0
        %1328 = vmatprep.subr.mxu0 0.0
        %1329 = vmatpush1.msra.mxu0 0.0
        %1330 = vmatprep.subr.mxu0 0.0
        %1331 = vmatpush1.msra.mxu0 0.0
        %1332 = vmatprep.subr.mxu0 0.0
        %1333 = vmatpush1.msra.mxu0 0.0
        %1334 = vmatprep.subr.mxu0 0.0
        %1335 = vmatpush1.msra.mxu0 0.0
        %1336 = vmatprep.subr.mxu0 0.0
        %1337 = vmatpush1.msra.mxu0 0.0
        %1338 = vmatprep.mubr.f32.mxu0 0.0
        %1339 = vmatmul.mubr.f32.gmra.mrb[0].mxu0 %v1118
        %v1340 = vpop.f32.mrb[0].mxu0
        %v1341 = vadd.f32 %v1114, %v1340
        %v1342 = vpop.f32.mrb[0].mxu0
        %1343 = vdwg.mxu0
        %v1344 = vmul.f32 %v1266, %v1341
        %v1345 = vadd.f32 %v1059, %v1344
        %v1346 = vtanh.pop %v1345
        %v1347 = vsub.f32 1.0, %v1273
        %v1348 = vmul.f32 %v1347, %v1346
        %v1349 = vmul.f32 %v1273, 0.0
        %v1350 = vadd.f32 %v1348, %v1349
        %vm1351 = vcmp.gt.s32.totalorder %v1116, 0
        %v1352 = vsel %vm1351, 1, 0
        %1353 = vset.pattern.permute.xlu0 0
        %1354 = vperm.xlu0 %1353, %v1352
        %v1355 = vpop.permute.xlu0 %1354
        %vm1356 = vcmp.eq.s32.totalorder %v1355, 1
        %v1357 = vsel %vm1356, %v1350, 0.0
        %v1359 = vsel %vm735, %v1357, 0
        %1361 = vmatprep.subr.mxu0 0.0
        %1362 = vmatpush1.msra.mxu0 %v1097
        %1363 = vmatprep.subr.mxu0 0.0
        %1364 = vmatpush1.msra.mxu0 %v1098
        %1365 = vmatprep.subr.mxu0 0.0
        %1366 = vmatpush1.msra.mxu0 %v1099
        %1367 = vmatprep.subr.mxu0 0.0
        %1368 = vmatpush1.msra.mxu0 %v1100
        %1369 = vmatprep.subr.mxu0 0.0
        %1370 = vmatpush1.msra.mxu0 0.0
        %1371 = vmatprep.subr.mxu0 0.0
        %1372 = vmatpush1.msra.mxu0 0.0
        %1373 = vmatprep.subr.mxu0 0.0
        %1374 = vmatpush1.msra.mxu0 0.0
        %1375 = vmatprep.subr.mxu0 0.0
        %1376 = vmatpush1.msra.mxu0 0.0
        %1377 = vmatprep.subr.mxu0 0.0
        %1378 = vmatpush1.msra.mxu0 0.0
        %1379 = vmatprep.subr.mxu0 0.0
        %1380 = vmatpush1.msra.mxu0 0.0
        %1381 = vmatprep.subr.mxu0 0.0
        %1382 = vmatpush1.msra.mxu0 0.0
        %1383 = vmatprep.subr.mxu0 0.0
        %1384 = vmatpush1.msra.mxu0 0.0
        %1385 = vmatprep.subr.mxu0 0.0
        %1386 = vmatpush1.msra.mxu0 0.0
        %1387 = vmatprep.subr.mxu0 0.0
        %1388 = vmatpush1.msra.mxu0 0.0
        %1389 = vmatprep.subr.mxu0 0.0
        %1390 = vmatpush1.msra.mxu0 0.0
        %1391 = vmatprep.subr.mxu0 0.0
        %1392 = vmatpush1.msra.mxu0 0.0
        %1393 = vmatprep.subr.mxu0 0.0
        %1394 = vmatpush1.msra.mxu0 0.0
        %1395 = vmatprep.subr.mxu0 0.0
        %1396 = vmatpush1.msra.mxu0 0.0
        %1397 = vmatprep.subr.mxu0 0.0
        %1398 = vmatpush1.msra.mxu0 0.0
        %1399 = vmatprep.subr.mxu0 0.0
        %1400 = vmatpush1.msra.mxu0 0.0
        %1401 = vmatprep.subr.mxu0 0.0
        %1402 = vmatpush1.msra.mxu0 0.0
        %1403 = vmatprep.subr.mxu0 0.0
        %1404 = vmatpush1.msra.mxu0 0.0
        %1405 = vmatprep.subr.mxu0 0.0
        %1406 = vmatpush1.msra.mxu0 0.0
        %1407 = vmatprep.subr.mxu0 0.0
        %1408 = vmatpush1.msra.mxu0 0.0
        %1409 = vmatprep.subr.mxu0 0.0
        %1410 = vmatpush1.msra.mxu0 0.0
        %1411 = vmatprep.subr.mxu0 0.0
        %1412 = vmatpush1.msra.mxu0 0.0
        %1413 = vmatprep.subr.mxu0 0.0
        %1414 = vmatpush1.msra.mxu0 0.0
        %1415 = vmatprep.subr.mxu0 0.0
        %1416 = vmatpush1.msra.mxu0 0.0
        %1417 = vmatprep.subr.mxu0 0.0
        %1418 = vmatpush1.msra.mxu0 0.0
        %1419 = vmatprep.subr.mxu0 0.0
        %1420 = vmatpush1.msra.mxu0 0.0
        %1421 = vmatprep.subr.mxu0 0.0
        %1422 = vmatpush1.msra.mxu0 0.0
        %1423 = vmatprep.subr.mxu0 0.0
        %1424 = vmatpush1.msra.mxu0 0.0
        %1425 = vmatprep.mubr.f32.mxu0 0.0
        %1426 = vmatmul.mubr.f32.gmra.mrb[0].mxu0 %v1359
        %v1427 = vpop.f32.mrb[0].mxu0
        %v1428 = vadd.f32 0.0, %v1427
        %v1429 = vpop.f32.mrb[0].mxu0
        %1430 = vdwg.mxu0
        %1431 = vmatprep.subr.mxu0 0.0
        %1432 = vmatpush1.msra.mxu0 %v1101
        %1433 = vmatprep.subr.mxu0 0.0
        %1434 = vmatpush1.msra.mxu0 %v1102
        %1435 = vmatprep.subr.mxu0 0.0
        %1436 = vmatpush1.msra.mxu0 %v1103
        %1437 = vmatprep.subr.mxu0 0.0
        %1438 = vmatpush1.msra.mxu0 %v1104
        %1439 = vmatprep.subr.mxu0 0.0
        %1440 = vmatpush1.msra.mxu0 0.0
        %1441 = vmatprep.subr.mxu0 0.0
        %1442 = vmatpush1.msra.mxu0 0.0
        %1443 = vmatprep.subr.mxu0 0.0
        %1444 = vmatpush1.msra.mxu0 0.0
        %1445 = vmatprep.subr.mxu0 0.0
        %1446 = vmatpush1.msra.mxu0 0.0
        %1447 = vmatprep.subr.mxu0 0.0
        %1448 = vmatpush1.msra.mxu0 0.0
        %1449 = vmatprep.subr.mxu0 0.0
        %1450 = vmatpush1.msra.mxu0 0.0
        %1451 = vmatprep.subr.mxu0 0.0
        %1452 = vmatpush1.msra.mxu0 0.0
        %1453 = vmatprep.subr.mxu0 0.0
        %1454 = vmatpush1.msra.mxu0 0.0
        %1455 = vmatprep.subr.mxu0 0.0
        %1456 = vmatpush1.msra.mxu0 0.0
        %1457 = vmatprep.subr.mxu0 0.0
        %1458 = vmatpush1.msra.mxu0 0.0
        %1459 = vmatprep.subr.mxu0 0.0
        %1460 = vmatpush1.msra.mxu0 0.0
        %1461 = vmatprep.subr.mxu0 0.0
        %1462 = vmatpush1.msra.mxu0 0.0
        %1463 = vmatprep.subr.mxu0 0.0
        %1464 = vmatpush1.msra.mxu0 0.0
        %1465 = vmatprep.subr.mxu0 0.0
        %1466 = vmatpush1.msra.mxu0 0.0
        %1467 = vmatprep.subr.mxu0 0.0
        %1468 = vmatpush1.msra.mxu0 0.0
        %1469 = vmatprep.subr.mxu0 0.0
        %1470 = vmatpush1.msra.mxu0 0.0
        %1471 = vmatprep.subr.mxu0 0.0
        %1472 = vmatpush1.msra.mxu0 0.0
        %1473 = vmatprep.subr.mxu0 0.0
        %1474 = vmatpush1.msra.mxu0 0.0
        %1475 = vmatprep.subr.mxu0 0.0
        %1476 = vmatpush1.msra.mxu0 0.0
        %1477 = vmatprep.subr.mxu0 0.0
        %1478 = vmatpush1.msra.mxu0 0.0
        %1479 = vmatprep.subr.mxu0 0.0
        %1480 = vmatpush1.msra.mxu0 0.0
        %1481 = vmatprep.subr.mxu0 0.0
        %1482 = vmatpush1.msra.mxu0 0.0
        %1483 = vmatprep.subr.mxu0 0.0
        %1484 = vmatpush1.msra.mxu0 0.0
        %1485 = vmatprep.subr.mxu0 0.0
        %1486 = vmatpush1.msra.mxu0 0.0
        %1487 = vmatprep.subr.mxu0 0.0
        %1488 = vmatpush1.msra.mxu0 0.0
        %1489 = vmatprep.subr.mxu0 0.0
        %1490 = vmatpush1.msra.mxu0 0.0
        %1491 = vmatprep.subr.mxu0 0.0
        %1492 = vmatpush1.msra.mxu0 0.0
        %1493 = vmatprep.subr.mxu0 0.0
        %1494 = vmatpush1.msra.mxu0 0.0
        %1495 = vmatprep.mubr.f32.mxu0 0.0
        %1496 = vmatmul.mubr.f32.gmra.mrb[0].mxu0 %v1359
        %v1497 = vpop.f32.mrb[0].mxu0
        %v1498 = vadd.f32 0.0, %v1497
        %v1499 = vpop.f32.mrb[0].mxu0
        %1500 = vdwg.mxu0
        %v1501 = vadd.f32 %v832, %v1428
        %v1502 = vxor.u32 %v1501, 2147483648
        %v1503 = vmul.f32 %v1502, 1.442695
        %v1504 = vpow.pop %v1503
        %v1505 = vadd.f32 %v1504, 1.0
        %v1506 = vrcp.pop %v1505
        %v1507 = vmul.f32 1.0, %v1506
        %v1508 = vadd.f32 %v948, %v1498
        %v1509 = vxor.u32 %v1508, 2147483648
        %v1510 = vmul.f32 %v1509, 1.442695
        %v1511 = vpow.pop %v1510
        %v1512 = vadd.f32 %v1511, 1.0
        %v1513 = vrcp.pop %v1512
        %v1514 = vmul.f32 1.0, %v1513
        %1515 = vmatprep.subr.mxu0 0.0
        %1516 = vmatpush1.msra.mxu0 %v1105
        %1517 = vmatprep.subr.mxu0 0.0
        %1518 = vmatpush1.msra.mxu0 %v1106
        %1519 = vmatprep.subr.mxu0 0.0
        %1520 = vmatpush1.msra.mxu0 %v1107
        %1521 = vmatprep.subr.mxu0 0.0
        %1522 = vmatpush1.msra.mxu0 %v1108
        %1523 = vmatprep.subr.mxu0 0.0
        %1524 = vmatpush1.msra.mxu0 0.0
        %1525 = vmatprep.subr.mxu0 0.0
        %1526 = vmatpush1.msra.mxu0 0.0
        %1527 = vmatprep.subr.mxu0 0.0
        %1528 = vmatpush1.msra.mxu0 0.0
        %1529 = vmatprep.subr.mxu0 0.0
        %1530 = vmatpush1.msra.mxu0 0.0
        %1531 = vmatprep.subr.mxu0 0.0
        %1532 = vmatpush1.msra.mxu0 0.0
        %1533 = vmatprep.subr.mxu0 0.0
        %1534 = vmatpush1.msra.mxu0 0.0
        %1535 = vmatprep.subr.mxu0 0.0
        %1536 = vmatpush1.msra.mxu0 0.0
        %1537 = vmatprep.subr.mxu0 0.0
        %1538 = vmatpush1.msra.mxu0 0.0
        %1539 = vmatprep.subr.mxu0 0.0
        %1540 = vmatpush1.msra.mxu0 0.0
        %1541 = vmatprep.subr.mxu0 0.0
        %1542 = vmatpush1.msra.mxu0 0.0
        %1543 = vmatprep.subr.mxu0 0.0
        %1544 = vmatpush1.msra.mxu0 0.0
        %1545 = vmatprep.subr.mxu0 0.0
        %1546 = vmatpush1.msra.mxu0 0.0
        %1547 = vmatprep.subr.mxu0 0.0
        %1548 = vmatpush1.msra.mxu0 0.0
        %1549 = vmatprep.subr.mxu0 0.0
        %1550 = vmatpush1.msra.mxu0 0.0
        %1551 = vmatprep.subr.mxu0 0.0
        %1552 = vmatpush1.msra.mxu0 0.0
        %1553 = vmatprep.subr.mxu0 0.0
        %1554 = vmatpush1.msra.mxu0 0.0
        %1555 = vmatprep.subr.mxu0 0.0
        %1556 = vmatpush1.msra.mxu0 0.0
        %1557 = vmatprep.subr.mxu0 0.0
        %1558 = vmatpush1.msra.mxu0 0.0
        %1559 = vmatprep.subr.mxu0 0.0
        %1560 = vmatpush1.msra.mxu0 0.0
        %1561 = vmatprep.subr.mxu0 0.0
        %1562 = vmatpush1.msra.mxu0 0.0
        %1563 = vmatprep.subr.mxu0 0.0
        %1564 = vmatpush1.msra.mxu0 0.0
        %1565 = vmatprep.subr.mxu0 0.0
        %1566 = vmatpush1.msra.mxu0 0.0
        %1567 = vmatprep.subr.mxu0 0.0
        %1568 = vmatpush1.msra.mxu0 0.0
        %1569 = vmatprep.subr.mxu0 0.0
        %1570 = vmatpush1.msra.mxu0 0.0
        %1571 = vmatprep.subr.mxu0 0.0
        %1572 = vmatpush1.msra.mxu0 0.0
        %1573 = vmatprep.subr.mxu0 0.0
        %1574 = vmatpush1.msra.mxu0 0.0
        %1575 = vmatprep.subr.mxu0 0.0
        %1576 = vmatpush1.msra.mxu0 0.0
        %1577 = vmatprep.subr.mxu0 0.0
        %1578 = vmatpush1.msra.mxu0 0.0
        %1579 = vmatprep.mubr.f32.mxu0 0.0
        %1580 = vmatmul.mubr.f32.gmra.mrb[0].mxu0 %v1359
        %v1581 = vpop.f32.mrb[0].mxu0
        %v1582 = vadd.f32 %v1114, %v1581
        %v1583 = vpop.f32.mrb[0].mxu0
        %1584 = vdwg.mxu0
        %v1585 = vmul.f32 %v1507, %v1582
        %v1586 = vadd.f32 %v1064, %v1585
        %v1587 = vtanh.pop %v1586
        %v1588 = vsub.f32 1.0, %v1514
        %v1589 = vmul.f32 %v1588, %v1587
        %v1590 = vmul.f32 %v1514, %v1357
        %v1591 = vadd.f32 %v1589, %v1590
        %vm1592 = vcmp.gt.s32.totalorder %v1116, 1
        %v1593 = vsel %vm1592, 1, 0
        %1594 = vset.pattern.permute.xlu0 0
        %1595 = vperm.xlu0 %1594, %v1593
        %v1596 = vpop.permute.xlu0 %1595
        %vm1597 = vcmp.eq.s32.totalorder %v1596, 1
        %v1598 = vsel %vm1597, %v1591, %v1357
        %v1600 = vsel %vm735, %v1598, 0
        %1602 = vmatprep.subr.mxu0 0.0
        %1603 = vmatpush1.msra.mxu0 %v1097
        %1604 = vmatprep.subr.mxu0 0.0
        %1605 = vmatpush1.msra.mxu0 %v1098
        %1606 = vmatprep.subr.mxu0 0.0
        %1607 = vmatpush1.msra.mxu0 %v1099
        %1608 = vmatprep.subr.mxu0 0.0
        %1609 = vmatpush1.msra.mxu0 %v1100
        %1610 = vmatprep.subr.mxu0 0.0
        %1611 = vmatpush1.msra.mxu0 0.0
        %1612 = vmatprep.subr.mxu0 0.0
        %1613 = vmatpush1.msra.mxu0 0.0
        %1614 = vmatprep.subr.mxu0 0.0
        %1615 = vmatpush1.msra.mxu0 0.0
        %1616 = vmatprep.subr.mxu0 0.0
        %1617 = vmatpush1.msra.mxu0 0.0
        %1618 = vmatprep.subr.mxu0 0.0
        %1619 = vmatpush1.msra.mxu0 0.0
        %1620 = vmatprep.subr.mxu0 0.0
        %1621 = vmatpush1.msra.mxu0 0.0
        %1622 = vmatprep.subr.mxu0 0.0
        %1623 = vmatpush1.msra.mxu0 0.0
        %1624 = vmatprep.subr.mxu0 0.0
        %1625 = vmatpush1.msra.mxu0 0.0
        %1626 = vmatprep.subr.mxu0 0.0
        %1627 = vmatpush1.msra.mxu0 0.0
        %1628 = vmatprep.subr.mxu0 0.0
        %1629 = vmatpush1.msra.mxu0 0.0
        %1630 = vmatprep.subr.mxu0 0.0
        %1631 = vmatpush1.msra.mxu0 0.0
        %1632 = vmatprep.subr.mxu0 0.0
        %1633 = vmatpush1.msra.mxu0 0.0
        %1634 = vmatprep.subr.mxu0 0.0
        %1635 = vmatpush1.msra.mxu0 0.0
        %1636 = vmatprep.subr.mxu0 0.0
        %1637 = vmatpush1.msra.mxu0 0.0
        %1638 = vmatprep.subr.mxu0 0.0
        %1639 = vmatpush1.msra.mxu0 0.0
        %1640 = vmatprep.subr.mxu0 0.0
        %1641 = vmatpush1.msra.mxu0 0.0
        %1642 = vmatprep.subr.mxu0 0.0
        %1643 = vmatpush1.msra.mxu0 0.0
        %1644 = vmatprep.subr.mxu0 0.0
        %1645 = vmatpush1.msra.mxu0 0.0
        %1646 = vmatprep.subr.mxu0 0.0
        %1647 = vmatpush1.msra.mxu0 0.0
        %1648 = vmatprep.subr.mxu0 0.0
        %1649 = vmatpush1.msra.mxu0 0.0
        %1650 = vmatprep.subr.mxu0 0.0
        %1651 = vmatpush1.msra.mxu0 0.0
        %1652 = vmatprep.subr.mxu0 0.0
        %1653 = vmatpush1.msra.mxu0 0.0
        %1654 = vmatprep.subr.mxu0 0.0
        %1655 = vmatpush1.msra.mxu0 0.0
        %1656 = vmatprep.subr.mxu0 0.0
        %1657 = vmatpush1.msra.mxu0 0.0
        %1658 = vmatprep.subr.mxu0 0.0
        %1659 = vmatpush1.msra.mxu0 0.0
        %1660 = vmatprep.subr.mxu0 0.0
        %1661 = vmatpush1.msra.mxu0 0.0
        %1662 = vmatprep.subr.mxu0 0.0
        %1663 = vmatpush1.msra.mxu0 0.0
        %1664 = vmatprep.subr.mxu0 0.0
        %1665 = vmatpush1.msra.mxu0 0.0
        %1666 = vmatprep.mubr.f32.mxu0 0.0
        %1667 = vmatmul.mubr.f32.gmra.mrb[0].mxu0 %v1600
        %v1668 = vpop.f32.mrb[0].mxu0
        %v1669 = vadd.f32 0.0, %v1668
        %v1670 = vpop.f32.mrb[0].mxu0
        %1671 = vdwg.mxu0
        %1672 = vmatprep.subr.mxu0 0.0
        %1673 = vmatpush1.msra.mxu0 %v1101
        %1674 = vmatprep.subr.mxu0 0.0
        %1675 = vmatpush1.msra.mxu0 %v1102
        %1676 = vmatprep.subr.mxu0 0.0
        %1677 = vmatpush1.msra.mxu0 %v1103
        %1678 = vmatprep.subr.mxu0 0.0
        %1679 = vmatpush1.msra.mxu0 %v1104
        %1680 = vmatprep.subr.mxu0 0.0
        %1681 = vmatpush1.msra.mxu0 0.0
        %1682 = vmatprep.subr.mxu0 0.0
        %1683 = vmatpush1.msra.mxu0 0.0
        %1684 = vmatprep.subr.mxu0 0.0
        %1685 = vmatpush1.msra.mxu0 0.0
        %1686 = vmatprep.subr.mxu0 0.0
        %1687 = vmatpush1.msra.mxu0 0.0
        %1688 = vmatprep.subr.mxu0 0.0
        %1689 = vmatpush1.msra.mxu0 0.0
        %1690 = vmatprep.subr.mxu0 0.0
        %1691 = vmatpush1.msra.mxu0 0.0
        %1692 = vmatprep.subr.mxu0 0.0
        %1693 = vmatpush1.msra.mxu0 0.0
        %1694 = vmatprep.subr.mxu0 0.0
        %1695 = vmatpush1.msra.mxu0 0.0
        %1696 = vmatprep.subr.mxu0 0.0
        %1697 = vmatpush1.msra.mxu0 0.0
        %1698 = vmatprep.subr.mxu0 0.0
        %1699 = vmatpush1.msra.mxu0 0.0
        %1700 = vmatprep.subr.mxu0 0.0
        %1701 = vmatpush1.msra.mxu0 0.0
        %1702 = vmatprep.subr.mxu0 0.0
        %1703 = vmatpush1.msra.mxu0 0.0
        %1704 = vmatprep.subr.mxu0 0.0
        %1705 = vmatpush1.msra.mxu0 0.0
        %1706 = vmatprep.subr.mxu0 0.0
        %1707 = vmatpush1.msra.mxu0 0.0
        %1708 = vmatprep.subr.mxu0 0.0
        %1709 = vmatpush1.msra.mxu0 0.0
        %1710 = vmatprep.subr.mxu0 0.0
        %1711 = vmatpush1.msra.mxu0 0.0
        %1712 = vmatprep.subr.mxu0 0.0
        %1713 = vmatpush1.msra.mxu0 0.0
        %1714 = vmatprep.subr.mxu0 0.0
        %1715 = vmatpush1.msra.mxu0 0.0
        %1716 = vmatprep.subr.mxu0 0.0
        %1717 = vmatpush1.msra.mxu0 0.0
        %1718 = vmatprep.subr.mxu0 0.0
        %1719 = vmatpush1.msra.mxu0 0.0
        %1720 = vmatprep.subr.mxu0 0.0
        %1721 = vmatpush1.msra.mxu0 0.0
        %1722 = vmatprep.subr.mxu0 0.0
        %1723 = vmatpush1.msra.mxu0 0.0
        %1724 = vmatprep.subr.mxu0 0.0
        %1725 = vmatpush1.msra.mxu0 0.0
        %1726 = vmatprep.subr.mxu0 0.0
        %1727 = vmatpush1.msra.mxu0 0.0
        %1728 = vmatprep.subr.mxu0 0.0
        %1729 = vmatpush1.msra.mxu0 0.0
        %1730 = vmatprep.subr.mxu0 0.0
        %1731 = vmatpush1.msra.mxu0 0.0
        %1732 = vmatprep.subr.mxu0 0.0
        %1733 = vmatpush1.msra.mxu0 0.0
        %1734 = vmatprep.subr.mxu0 0.0
        %1735 = vmatpush1.msra.mxu0 0.0
        %1736 = vmatprep.mubr.f32.mxu0 0.0
        %1737 = vmatmul.mubr.f32.gmra.mrb[0].mxu0 %v1600
        %v1738 = vpop.f32.mrb[0].mxu0
        %v1739 = vadd.f32 0.0, %v1738
        %v1740 = vpop.f32.mrb[0].mxu0
        %1741 = vdwg.mxu0
        %v1742 = vadd.f32 %v837, %v1669
        %v1743 = vxor.u32 %v1742, 2147483648
        %v1744 = vmul.f32 %v1743, 1.442695
        %v1745 = vpow.pop %v1744
        %v1746 = vadd.f32 %v1745, 1.0
        %v1747 = vrcp.pop %v1746
        %v1748 = vmul.f32 1.0, %v1747
        %v1749 = vadd.f32 %v953, %v1739
        %v1750 = vxor.u32 %v1749, 2147483648
        %v1751 = vmul.f32 %v1750, 1.442695
        %v1752 = vpow.pop %v1751
        %v1753 = vadd.f32 %v1752, 1.0
        %v1754 = vrcp.pop %v1753
        %v1755 = vmul.f32 1.0, %v1754
        %1756 = vmatprep.subr.mxu0 0.0
        %1757 = vmatpush1.msra.mxu0 %v1105
        %1758 = vmatprep.subr.mxu0 0.0
        %1759 = vmatpush1.msra.mxu0 %v1106
        %1760 = vmatprep.subr.mxu0 0.0
        %1761 = vmatpush1.msra.mxu0 %v1107
        %1762 = vmatprep.subr.mxu0 0.0
        %1763 = vmatpush1.msra.mxu0 %v1108
        %1764 = vmatprep.subr.mxu0 0.0
        %1765 = vmatpush1.msra.mxu0 0.0
        %1766 = vmatprep.subr.mxu0 0.0
        %1767 = vmatpush1.msra.mxu0 0.0
        %1768 = vmatprep.subr.mxu0 0.0
        %1769 = vmatpush1.msra.mxu0 0.0
        %1770 = vmatprep.subr.mxu0 0.0
        %1771 = vmatpush1.msra.mxu0 0.0
        %1772 = vmatprep.subr.mxu0 0.0
        %1773 = vmatpush1.msra.mxu0 0.0
        %1774 = vmatprep.subr.mxu0 0.0
        %1775 = vmatpush1.msra.mxu0 0.0
        %1776 = vmatprep.subr.mxu0 0.0
        %1777 = vmatpush1.msra.mxu0 0.0
        %1778 = vmatprep.subr.mxu0 0.0
        %1779 = vmatpush1.msra.mxu0 0.0
        %1780 = vmatprep.subr.mxu0 0.0
        %1781 = vmatpush1.msra.mxu0 0.0
        %1782 = vmatprep.subr.mxu0 0.0
        %1783 = vmatpush1.msra.mxu0 0.0
        %1784 = vmatprep.subr.mxu0 0.0
        %1785 = vmatpush1.msra.mxu0 0.0
        %1786 = vmatprep.subr.mxu0 0.0
        %1787 = vmatpush1.msra.mxu0 0.0
        %1788 = vmatprep.subr.mxu0 0.0
        %1789 = vmatpush1.msra.mxu0 0.0
        %1790 = vmatprep.subr.mxu0 0.0
        %1791 = vmatpush1.msra.mxu0 0.0
        %1792 = vmatprep.subr.mxu0 0.0
        %1793 = vmatpush1.msra.mxu0 0.0
        %1794 = vmatprep.subr.mxu0 0.0
        %1795 = vmatpush1.msra.mxu0 0.0
        %1796 = vmatprep.subr.mxu0 0.0
        %1797 = vmatpush1.msra.mxu0 0.0
        %1798 = vmatprep.subr.mxu0 0.0
        %1799 = vmatpush1.msra.mxu0 0.0
        %1800 = vmatprep.subr.mxu0 0.0
        %1801 = vmatpush1.msra.mxu0 0.0
        %1802 = vmatprep.subr.mxu0 0.0
        %1803 = vmatpush1.msra.mxu0 0.0
        %1804 = vmatprep.subr.mxu0 0.0
        %1805 = vmatpush1.msra.mxu0 0.0
        %1806 = vmatprep.subr.mxu0 0.0
        %1807 = vmatpush1.msra.mxu0 0.0
        %1808 = vmatprep.subr.mxu0 0.0
        %1809 = vmatpush1.msra.mxu0 0.0
        %1810 = vmatprep.subr.mxu0 0.0
        %1811 = vmatpush1.msra.mxu0 0.0
        %1812 = vmatprep.subr.mxu0 0.0
        %1813 = vmatpush1.msra.mxu0 0.0
        %1814 = vmatprep.subr.mxu0 0.0
        %1815 = vmatpush1.msra.mxu0 0.0
        %1816 = vmatprep.subr.mxu0 0.0
        %1817 = vmatpush1.msra.mxu0 0.0
        %1818 = vmatprep.subr.mxu0 0.0
        %1819 = vmatpush1.msra.mxu0 0.0
        %1820 = vmatprep.mubr.f32.mxu0 0.0
        %1821 = vmatmul.mubr.f32.gmra.mrb[0].mxu0 %v1600
        %v1822 = vpop.f32.mrb[0].mxu0
        %v1823 = vadd.f32 %v1114, %v1822
        %v1824 = vpop.f32.mrb[0].mxu0
        %1825 = vdwg.mxu0
        %v1826 = vmul.f32 %v1748, %v1823
        %v1827 = vadd.f32 %v1069, %v1826
        %v1828 = vtanh.pop %v1827
        %v1829 = vsub.f32 1.0, %v1755
        %v1830 = vmul.f32 %v1829, %v1828
        %v1831 = vmul.f32 %v1755, %v1598
        %v1832 = vadd.f32 %v1830, %v1831
        %vm1833 = vcmp.gt.s32.totalorder %v1116, 2
        %v1834 = vsel %vm1833, 1, 0
        %1835 = vset.pattern.permute.xlu0 0
        %1836 = vperm.xlu0 %1835, %v1834
        %v1837 = vpop.permute.xlu0 %1836
        %vm1838 = vcmp.eq.s32.totalorder %v1837, 1
        %v1839 = vsel %vm1838, %v1832, %v1598
        %v1841 = vsel %vm735, %v1839, 0
        %1843 = vmatprep.subr.mxu0 0.0
        %1844 = vmatpush1.msra.mxu0 %v1097
        %1845 = vmatprep.subr.mxu0 0.0
        %1846 = vmatpush1.msra.mxu0 %v1098
        %1847 = vmatprep.subr.mxu0 0.0
        %1848 = vmatpush1.msra.mxu0 %v1099
        %1849 = vmatprep.subr.mxu0 0.0
        %1850 = vmatpush1.msra.mxu0 %v1100
        %1851 = vmatprep.subr.mxu0 0.0
        %1852 = vmatpush1.msra.mxu0 0.0
        %1853 = vmatprep.subr.mxu0 0.0
        %1854 = vmatpush1.msra.mxu0 0.0
        %1855 = vmatprep.subr.mxu0 0.0
        %1856 = vmatpush1.msra.mxu0 0.0
        %1857 = vmatprep.subr.mxu0 0.0
        %1858 = vmatpush1.msra.mxu0 0.0
        %1859 = vmatprep.subr.mxu0 0.0
        %1860 = vmatpush1.msra.mxu0 0.0
        %1861 = vmatprep.subr.mxu0 0.0
        %1862 = vmatpush1.msra.mxu0 0.0
        %1863 = vmatprep.subr.mxu0 0.0
        %1864 = vmatpush1.msra.mxu0 0.0
        %1865 = vmatprep.subr.mxu0 0.0
        %1866 = vmatpush1.msra.mxu0 0.0
        %1867 = vmatprep.subr.mxu0 0.0
        %1868 = vmatpush1.msra.mxu0 0.0
        %1869 = vmatprep.subr.mxu0 0.0
        %1870 = vmatpush1.msra.mxu0 0.0
        %1871 = vmatprep.subr.mxu0 0.0
        %1872 = vmatpush1.msra.mxu0 0.0
        %1873 = vmatprep.subr.mxu0 0.0
        %1874 = vmatpush1.msra.mxu0 0.0
        %1875 = vmatprep.subr.mxu0 0.0
        %1876 = vmatpush1.msra.mxu0 0.0
        %1877 = vmatprep.subr.mxu0 0.0
        %1878 = vmatpush1.msra.mxu0 0.0
        %1879 = vmatprep.subr.mxu0 0.0
        %1880 = vmatpush1.msra.mxu0 0.0
        %1881 = vmatprep.subr.mxu0 0.0
        %1882 = vmatpush1.msra.mxu0 0.0
        %1883 = vmatprep.subr.mxu0 0.0
        %1884 = vmatpush1.msra.mxu0 0.0
        %1885 = vmatprep.subr.mxu0 0.0
        %1886 = vmatpush1.msra.mxu0 0.0
        %1887 = vmatprep.subr.mxu0 0.0
        %1888 = vmatpush1.msra.mxu0 0.0
        %1889 = vmatprep.subr.mxu0 0.0
        %1890 = vmatpush1.msra.mxu0 0.0
        %1891 = vmatprep.subr.mxu0 0.0
        %1892 = vmatpush1.msra.mxu0 0.0
        %1893 = vmatprep.subr.mxu0 0.0
        %1894 = vmatpush1.msra.mxu0 0.0
        %1895 = vmatprep.subr.mxu0 0.0
        %1896 = vmatpush1.msra.mxu0 0.0
        %1897 = vmatprep.subr.mxu0 0.0
        %1898 = vmatpush1.msra.mxu0 0.0
        %1899 = vmatprep.subr.mxu0 0.0
        %1900 = vmatpush1.msra.mxu0 0.0
        %1901 = vmatprep.subr.mxu0 0.0
        %1902 = vmatpush1.msra.mxu0 0.0
        %1903 = vmatprep.subr.mxu0 0.0
        %1904 = vmatpush1.msra.mxu0 0.0
        %1905 = vmatprep.subr.mxu0 0.0
        %1906 = vmatpush1.msra.mxu0 0.0
        %1907 = vmatprep.mubr.f32.mxu0 0.0
        %1908 = vmatmul.mubr.f32.gmra.mrb[0].mxu0 %v1841
        %v1909 = vpop.f32.mrb[0].mxu0
        %v1910 = vadd.f32 0.0, %v1909
        %v1911 = vpop.f32.mrb[0].mxu0
        %1912 = vdwg.mxu0
        %1913 = vmatprep.subr.mxu0 0.0
        %1914 = vmatpush1.msra.mxu0 %v1101
        %1915 = vmatprep.subr.mxu0 0.0
        %1916 = vmatpush1.msra.mxu0 %v1102
        %1917 = vmatprep.subr.mxu0 0.0
        %1918 = vmatpush1.msra.mxu0 %v1103
        %1919 = vmatprep.subr.mxu0 0.0
        %1920 = vmatpush1.msra.mxu0 %v1104
        %1921 = vmatprep.subr.mxu0 0.0
        %1922 = vmatpush1.msra.mxu0 0.0
        %1923 = vmatprep.subr.mxu0 0.0
        %1924 = vmatpush1.msra.mxu0 0.0
        %1925 = vmatprep.subr.mxu0 0.0
        %1926 = vmatpush1.msra.mxu0 0.0
        %1927 = vmatprep.subr.mxu0 0.0
        %1928 = vmatpush1.msra.mxu0 0.0
        %1929 = vmatprep.subr.mxu0 0.0
        %1930 = vmatpush1.msra.mxu0 0.0
        %1931 = vmatprep.subr.mxu0 0.0
        %1932 = vmatpush1.msra.mxu0 0.0
        %1933 = vmatprep.subr.mxu0 0.0
        %1934 = vmatpush1.msra.mxu0 0.0
        %1935 = vmatprep.subr.mxu0 0.0
        %1936 = vmatpush1.msra.mxu0 0.0
        %1937 = vmatprep.subr.mxu0 0.0
        %1938 = vmatpush1.msra.mxu0 0.0
        %1939 = vmatprep.subr.mxu0 0.0
        %1940 = vmatpush1.msra.mxu0 0.0
        %1941 = vmatprep.subr.mxu0 0.0
        %1942 = vmatpush1.msra.mxu0 0.0
        %1943 = vmatprep.subr.mxu0 0.0
        %1944 = vmatpush1.msra.mxu0 0.0
        %1945 = vmatprep.subr.mxu0 0.0
        %1946 = vmatpush1.msra.mxu0 0.0
        %1947 = vmatprep.subr.mxu0 0.0
        %1948 = vmatpush1.msra.mxu0 0.0
        %1949 = vmatprep.subr.mxu0 0.0
        %1950 = vmatpush1.msra.mxu0 0.0
        %1951 = vmatprep.subr.mxu0 0.0
        %1952 = vmatpush1.msra.mxu0 0.0
        %1953 = vmatprep.subr.mxu0 0.0
        %1954 = vmatpush1.msra.mxu0 0.0
        %1955 = vmatprep.subr.mxu0 0.0
        %1956 = vmatpush1.msra.mxu0 0.0
        %1957 = vmatprep.subr.mxu0 0.0
        %1958 = vmatpush1.msra.mxu0 0.0
        %1959 = vmatprep.subr.mxu0 0.0
        %1960 = vmatpush1.msra.mxu0 0.0
        %1961 = vmatprep.subr.mxu0 0.0
        %1962 = vmatpush1.msra.mxu0 0.0
        %1963 = vmatprep.subr.mxu0 0.0
        %1964 = vmatpush1.msra.mxu0 0.0
        %1965 = vmatprep.subr.mxu0 0.0
        %1966 = vmatpush1.msra.mxu0 0.0
        %1967 = vmatprep.subr.mxu0 0.0
        %1968 = vmatpush1.msra.mxu0 0.0
        %1969 = vmatprep.subr.mxu0 0.0
        %1970 = vmatpush1.msra.mxu0 0.0
        %1971 = vmatprep.subr.mxu0 0.0
        %1972 = vmatpush1.msra.mxu0 0.0
        %1973 = vmatprep.subr.mxu0 0.0
        %1974 = vmatpush1.msra.mxu0 0.0
        %1975 = vmatprep.subr.mxu0 0.0
        %1976 = vmatpush1.msra.mxu0 0.0
        %1977 = vmatprep.mubr.f32.mxu0 0.0
        %1978 = vmatmul.mubr.f32.gmra.mrb[0].mxu0 %v1841
        %v1979 = vpop.f32.mrb[0].mxu0
        %v1980 = vadd.f32 0.0, %v1979
        %v1981 = vpop.f32.mrb[0].mxu0
        %1982 = vdwg.mxu0
        %v1983 = vadd.f32 %v842, %v1910
        %v1984 = vxor.u32 %v1983, 2147483648
        %v1985 = vmul.f32 %v1984, 1.442695
        %v1986 = vpow.pop %v1985
        %v1987 = vadd.f32 %v1986, 1.0
        %v1988 = vrcp.pop %v1987
        %v1989 = vmul.f32 1.0, %v1988
        %v1990 = vadd.f32 %v958, %v1980
        %v1991 = vxor.u32 %v1990, 2147483648
        %v1992 = vmul.f32 %v1991, 1.442695
        %v1993 = vpow.pop %v1992
        %v1994 = vadd.f32 %v1993, 1.0
        %v1995 = vrcp.pop %v1994
        %v1996 = vmul.f32 1.0, %v1995
        %1997 = vmatprep.subr.mxu0 0.0
        %1998 = vmatpush1.msra.mxu0 %v1105
        %1999 = vmatprep.subr.mxu0 0.0
        %2000 = vmatpush1.msra.mxu0 %v1106
        %2001 = vmatprep.subr.mxu0 0.0
        %2002 = vmatpush1.msra.mxu0 %v1107
        %2003 = vmatprep.subr.mxu0 0.0
        %2004 = vmatpush1.msra.mxu0 %v1108
        %2005 = vmatprep.subr.mxu0 0.0
        %2006 = vmatpush1.msra.mxu0 0.0
        %2007 = vmatprep.subr.mxu0 0.0
        %2008 = vmatpush1.msra.mxu0 0.0
        %2009 = vmatprep.subr.mxu0 0.0
        %2010 = vmatpush1.msra.mxu0 0.0
        %2011 = vmatprep.subr.mxu0 0.0
        %2012 = vmatpush1.msra.mxu0 0.0
        %2013 = vmatprep.subr.mxu0 0.0
        %2014 = vmatpush1.msra.mxu0 0.0
        %2015 = vmatprep.subr.mxu0 0.0
        %2016 = vmatpush1.msra.mxu0 0.0
        %2017 = vmatprep.subr.mxu0 0.0
        %2018 = vmatpush1.msra.mxu0 0.0
        %2019 = vmatprep.subr.mxu0 0.0
        %2020 = vmatpush1.msra.mxu0 0.0
        %2021 = vmatprep.subr.mxu0 0.0
        %2022 = vmatpush1.msra.mxu0 0.0
        %2023 = vmatprep.subr.mxu0 0.0
        %2024 = vmatpush1.msra.mxu0 0.0
        %2025 = vmatprep.subr.mxu0 0.0
        %2026 = vmatpush1.msra.mxu0 0.0
        %2027 = vmatprep.subr.mxu0 0.0
        %2028 = vmatpush1.msra.mxu0 0.0
        %2029 = vmatprep.subr.mxu0 0.0
        %2030 = vmatpush1.msra.mxu0 0.0
        %2031 = vmatprep.subr.mxu0 0.0
        %2032 = vmatpush1.msra.mxu0 0.0
        %2033 = vmatprep.subr.mxu0 0.0
        %2034 = vmatpush1.msra.mxu0 0.0
        %2035 = vmatprep.subr.mxu0 0.0
        %2036 = vmatpush1.msra.mxu0 0.0
        %2037 = vmatprep.subr.mxu0 0.0
        %2038 = vmatpush1.msra.mxu0 0.0
        %2039 = vmatprep.subr.mxu0 0.0
        %2040 = vmatpush1.msra.mxu0 0.0
        %2041 = vmatprep.subr.mxu0 0.0
        %2042 = vmatpush1.msra.mxu0 0.0
        %2043 = vmatprep.subr.mxu0 0.0
        %2044 = vmatpush1.msra.mxu0 0.0
        %2045 = vmatprep.subr.mxu0 0.0
        %2046 = vmatpush1.msra.mxu0 0.0
        %2047 = vmatprep.subr.mxu0 0.0
        %2048 = vmatpush1.msra.mxu0 0.0
        %2049 = vmatprep.subr.mxu0 0.0
        %2050 = vmatpush1.msra.mxu0 0.0
        %2051 = vmatprep.subr.mxu0 0.0
        %2052 = vmatpush1.msra.mxu0 0.0
        %2053 = vmatprep.subr.mxu0 0.0
        %2054 = vmatpush1.msra.mxu0 0.0
        %2055 = vmatprep.subr.mxu0 0.0
        %2056 = vmatpush1.msra.mxu0 0.0
        %2057 = vmatprep.subr.mxu0 0.0
        %2058 = vmatpush1.msra.mxu0 0.0
        %2059 = vmatprep.subr.mxu0 0.0
        %2060 = vmatpush1.msra.mxu0 0.0
        %2061 = vmatprep.mubr.f32.mxu0 0.0
        %2062 = vmatmul.mubr.f32.gmra.mrb[0].mxu0 %v1841
        %v2063 = vpop.f32.mrb[0].mxu0
        %v2064 = vadd.f32 %v1114, %v2063
        %v2065 = vpop.f32.mrb[0].mxu0
        %2066 = vdwg.mxu0
        %v2067 = vmul.f32 %v1989, %v2064
        %v2068 = vadd.f32 %v1074, %v2067
        %v2069 = vtanh.pop %v2068
        %v2070 = vsub.f32 1.0, %v1996
        %v2071 = vmul.f32 %v2070, %v2069
        %v2072 = vmul.f32 %v1996, %v1839
        %v2073 = vadd.f32 %v2071, %v2072
        %vm2074 = vcmp.gt.s32.totalorder %v1116, 3
        %v2075 = vsel %vm2074, 1, 0
        %2076 = vset.pattern.permute.xlu0 0
        %2077 = vperm.xlu0 %2076, %v2075
        %v2078 = vpop.permute.xlu0 %2077
        %vm2079 = vcmp.eq.s32.totalorder %v2078, 1
        %v2080 = vsel %vm2079, %v2073, %v1839
        %v2082 = vsel %vm735, %v2080, 0
        %2084 = vmatprep.subr.mxu0 0.0
        %2085 = vmatpush1.msra.mxu0 %v1097
        %2086 = vmatprep.subr.mxu0 0.0
        %2087 = vmatpush1.msra.mxu0 %v1098
        %2088 = vmatprep.subr.mxu0 0.0
        %2089 = vmatpush1.msra.mxu0 %v1099
        %2090 = vmatprep.subr.mxu0 0.0
        %2091 = vmatpush1.msra.mxu0 %v1100
        %2092 = vmatprep.subr.mxu0 0.0
        %2093 = vmatpush1.msra.mxu0 0.0
        %2094 = vmatprep.subr.mxu0 0.0
        %2095 = vmatpush1.msra.mxu0 0.0
        %2096 = vmatprep.subr.mxu0 0.0
        %2097 = vmatpush1.msra.mxu0 0.0
        %2098 = vmatprep.subr.mxu0 0.0
        %2099 = vmatpush1.msra.mxu0 0.0
        %2100 = vmatprep.subr.mxu0 0.0
        %2101 = vmatpush1.msra.mxu0 0.0
        %2102 = vmatprep.subr.mxu0 0.0
        %2103 = vmatpush1.msra.mxu0 0.0
        %2104 = vmatprep.subr.mxu0 0.0
        %2105 = vmatpush1.msra.mxu0 0.0
        %2106 = vmatprep.subr.mxu0 0.0
        %2107 = vmatpush1.msra.mxu0 0.0
        %2108 = vmatprep.subr.mxu0 0.0
        %2109 = vmatpush1.msra.mxu0 0.0
        %2110 = vmatprep.subr.mxu0 0.0
        %2111 = vmatpush1.msra.mxu0 0.0
        %2112 = vmatprep.subr.mxu0 0.0
        %2113 = vmatpush1.msra.mxu0 0.0
        %2114 = vmatprep.subr.mxu0 0.0
        %2115 = vmatpush1.msra.mxu0 0.0
        %2116 = vmatprep.subr.mxu0 0.0
        %2117 = vmatpush1.msra.mxu0 0.0
        %2118 = vmatprep.subr.mxu0 0.0
        %2119 = vmatpush1.msra.mxu0 0.0
        %2120 = vmatprep.subr.mxu0 0.0
        %2121 = vmatpush1.msra.mxu0 0.0
        %2122 = vmatprep.subr.mxu0 0.0
        %2123 = vmatpush1.msra.mxu0 0.0
        %2124 = vmatprep.subr.mxu0 0.0
        %2125 = vmatpush1.msra.mxu0 0.0
        %2126 = vmatprep.subr.mxu0 0.0
        %2127 = vmatpush1.msra.mxu0 0.0
        %2128 = vmatprep.subr.mxu0 0.0
        %2129 = vmatpush1.msra.mxu0 0.0
        %2130 = vmatprep.subr.mxu0 0.0
        %2131 = vmatpush1.msra.mxu0 0.0
        %2132 = vmatprep.subr.mxu0 0.0
        %2133 = vmatpush1.msra.mxu0 0.0
        %2134 = vmatprep.subr.mxu0 0.0
        %2135 = vmatpush1.msra.mxu0 0.0
        %2136 = vmatprep.subr.mxu0 0.0
        %2137 = vmatpush1.msra.mxu0 0.0
        %2138 = vmatprep.subr.mxu0 0.0
        %2139 = vmatpush1.msra.mxu0 0.0
        %2140 = vmatprep.subr.mxu0 0.0
        %2141 = vmatpush1.msra.mxu0 0.0
        %2142 = vmatprep.subr.mxu0 0.0
        %2143 = vmatpush1.msra.mxu0 0.0
        %2144 = vmatprep.subr.mxu0 0.0
        %2145 = vmatpush1.msra.mxu0 0.0
        %2146 = vmatprep.subr.mxu0 0.0
        %2147 = vmatpush1.msra.mxu0 0.0
        %2148 = vmatprep.mubr.f32.mxu0 0.0
        %2149 = vmatmul.mubr.f32.gmra.mrb[0].mxu0 %v2082
        %v2150 = vpop.f32.mrb[0].mxu0
        %v2151 = vadd.f32 0.0, %v2150
        %v2152 = vpop.f32.mrb[0].mxu0
        %2153 = vdwg.mxu0
        %2154 = vmatprep.subr.mxu0 0.0
        %2155 = vmatpush1.msra.mxu0 %v1101
        %2156 = vmatprep.subr.mxu0 0.0
        %2157 = vmatpush1.msra.mxu0 %v1102
        %2158 = vmatprep.subr.mxu0 0.0
        %2159 = vmatpush1.msra.mxu0 %v1103
        %2160 = vmatprep.subr.mxu0 0.0
        %2161 = vmatpush1.msra.mxu0 %v1104
        %2162 = vmatprep.subr.mxu0 0.0
        %2163 = vmatpush1.msra.mxu0 0.0
        %2164 = vmatprep.subr.mxu0 0.0
        %2165 = vmatpush1.msra.mxu0 0.0
        %2166 = vmatprep.subr.mxu0 0.0
        %2167 = vmatpush1.msra.mxu0 0.0
        %2168 = vmatprep.subr.mxu0 0.0
        %2169 = vmatpush1.msra.mxu0 0.0
        %2170 = vmatprep.subr.mxu0 0.0
        %2171 = vmatpush1.msra.mxu0 0.0
        %2172 = vmatprep.subr.mxu0 0.0
        %2173 = vmatpush1.msra.mxu0 0.0
        %2174 = vmatprep.subr.mxu0 0.0
        %2175 = vmatpush1.msra.mxu0 0.0
        %2176 = vmatprep.subr.mxu0 0.0
        %2177 = vmatpush1.msra.mxu0 0.0
        %2178 = vmatprep.subr.mxu0 0.0
        %2179 = vmatpush1.msra.mxu0 0.0
        %2180 = vmatprep.subr.mxu0 0.0
        %2181 = vmatpush1.msra.mxu0 0.0
        %2182 = vmatprep.subr.mxu0 0.0
        %2183 = vmatpush1.msra.mxu0 0.0
        %2184 = vmatprep.subr.mxu0 0.0
        %2185 = vmatpush1.msra.mxu0 0.0
        %2186 = vmatprep.subr.mxu0 0.0
        %2187 = vmatpush1.msra.mxu0 0.0
        %2188 = vmatprep.subr.mxu0 0.0
        %2189 = vmatpush1.msra.mxu0 0.0
        %2190 = vmatprep.subr.mxu0 0.0
        %2191 = vmatpush1.msra.mxu0 0.0
        %2192 = vmatprep.subr.mxu0 0.0
        %2193 = vmatpush1.msra.mxu0 0.0
        %2194 = vmatprep.subr.mxu0 0.0
        %2195 = vmatpush1.msra.mxu0 0.0
        %2196 = vmatprep.subr.mxu0 0.0
        %2197 = vmatpush1.msra.mxu0 0.0
        %2198 = vmatprep.subr.mxu0 0.0
        %2199 = vmatpush1.msra.mxu0 0.0
        %2200 = vmatprep.subr.mxu0 0.0
        %2201 = vmatpush1.msra.mxu0 0.0
        %2202 = vmatprep.subr.mxu0 0.0
        %2203 = vmatpush1.msra.mxu0 0.0
        %2204 = vmatprep.subr.mxu0 0.0
        %2205 = vmatpush1.msra.mxu0 0.0
        %2206 = vmatprep.subr.mxu0 0.0
        %2207 = vmatpush1.msra.mxu0 0.0
        %2208 = vmatprep.subr.mxu0 0.0
        %2209 = vmatpush1.msra.mxu0 0.0
        %2210 = vmatprep.subr.mxu0 0.0
        %2211 = vmatpush1.msra.mxu0 0.0
        %2212 = vmatprep.subr.mxu0 0.0
        %2213 = vmatpush1.msra.mxu0 0.0
        %2214 = vmatprep.subr.mxu0 0.0
        %2215 = vmatpush1.msra.mxu0 0.0
        %2216 = vmatprep.subr.mxu0 0.0
        %2217 = vmatpush1.msra.mxu0 0.0
        %2218 = vmatprep.mubr.f32.mxu0 0.0
        %2219 = vmatmul.mubr.f32.gmra.mrb[0].mxu0 %v2082
        %v2220 = vpop.f32.mrb[0].mxu0
        %v2221 = vadd.f32 0.0, %v2220
        %v2222 = vpop.f32.mrb[0].mxu0
        %2223 = vdwg.mxu0
        %v2224 = vadd.f32 %v847, %v2151
        %v2225 = vxor.u32 %v2224, 2147483648
        %v2226 = vmul.f32 %v2225, 1.442695
        %v2227 = vpow.pop %v2226
        %v2228 = vadd.f32 %v2227, 1.0
        %v2229 = vrcp.pop %v2228
        %v2230 = vmul.f32 1.0, %v2229
        %v2231 = vadd.f32 %v963, %v2221
        %v2232 = vxor.u32 %v2231, 2147483648
        %v2233 = vmul.f32 %v2232, 1.442695
        %v2234 = vpow.pop %v2233
        %v2235 = vadd.f32 %v2234, 1.0
        %v2236 = vrcp.pop %v2235
        %v2237 = vmul.f32 1.0, %v2236
        %2238 = vmatprep.subr.mxu0 0.0
        %2239 = vmatpush1.msra.mxu0 %v1105
        %2240 = vmatprep.subr.mxu0 0.0
        %2241 = vmatpush1.msra.mxu0 %v1106
        %2242 = vmatprep.subr.mxu0 0.0
        %2243 = vmatpush1.msra.mxu0 %v1107
        %2244 = vmatprep.subr.mxu0 0.0
        %2245 = vmatpush1.msra.mxu0 %v1108
        %2246 = vmatprep.subr.mxu0 0.0
        %2247 = vmatpush1.msra.mxu0 0.0
        %2248 = vmatprep.subr.mxu0 0.0
        %2249 = vmatpush1.msra.mxu0 0.0
        %2250 = vmatprep.subr.mxu0 0.0
        %2251 = vmatpush1.msra.mxu0 0.0
        %2252 = vmatprep.subr.mxu0 0.0
        %2253 = vmatpush1.msra.mxu0 0.0
        %2254 = vmatprep.subr.mxu0 0.0
        %2255 = vmatpush1.msra.mxu0 0.0
        %2256 = vmatprep.subr.mxu0 0.0
        %2257 = vmatpush1.msra.mxu0 0.0
        %2258 = vmatprep.subr.mxu0 0.0
        %2259 = vmatpush1.msra.mxu0 0.0
        %2260 = vmatprep.subr.mxu0 0.0
        %2261 = vmatpush1.msra.mxu0 0.0
        %2262 = vmatprep.subr.mxu0 0.0
        %2263 = vmatpush1.msra.mxu0 0.0
        %2264 = vmatprep.subr.mxu0 0.0
        %2265 = vmatpush1.msra.mxu0 0.0
        %2266 = vmatprep.subr.mxu0 0.0
        %2267 = vmatpush1.msra.mxu0 0.0
        %2268 = vmatprep.subr.mxu0 0.0
        %2269 = vmatpush1.msra.mxu0 0.0
        %2270 = vmatprep.subr.mxu0 0.0
        %2271 = vmatpush1.msra.mxu0 0.0
        %2272 = vmatprep.subr.mxu0 0.0
        %2273 = vmatpush1.msra.mxu0 0.0
        %2274 = vmatprep.subr.mxu0 0.0
        %2275 = vmatpush1.msra.mxu0 0.0
        %2276 = vmatprep.subr.mxu0 0.0
        %2277 = vmatpush1.msra.mxu0 0.0
        %2278 = vmatprep.subr.mxu0 0.0
        %2279 = vmatpush1.msra.mxu0 0.0
        %2280 = vmatprep.subr.mxu0 0.0
        %2281 = vmatpush1.msra.mxu0 0.0
        %2282 = vmatprep.subr.mxu0 0.0
        %2283 = vmatpush1.msra.mxu0 0.0
        %2284 = vmatprep.subr.mxu0 0.0
        %2285 = vmatpush1.msra.mxu0 0.0
        %2286 = vmatprep.subr.mxu0 0.0
        %2287 = vmatpush1.msra.mxu0 0.0
        %2288 = vmatprep.subr.mxu0 0.0
        %2289 = vmatpush1.msra.mxu0 0.0
        %2290 = vmatprep.subr.mxu0 0.0
        %2291 = vmatpush1.msra.mxu0 0.0
        %2292 = vmatprep.subr.mxu0 0.0
        %2293 = vmatpush1.msra.mxu0 0.0
        %2294 = vmatprep.subr.mxu0 0.0
        %2295 = vmatpush1.msra.mxu0 0.0
        %2296 = vmatprep.subr.mxu0 0.0
        %2297 = vmatpush1.msra.mxu0 0.0
        %2298 = vmatprep.subr.mxu0 0.0
        %2299 = vmatpush1.msra.mxu0 0.0
        %2300 = vmatprep.subr.mxu0 0.0
        %2301 = vmatpush1.msra.mxu0 0.0
        %2302 = vmatprep.mubr.f32.mxu0 0.0
        %2303 = vmatmul.mubr.f32.gmra.mrb[0].mxu0 %v2082
        %v2304 = vpop.f32.mrb[0].mxu0
        %v2305 = vadd.f32 %v1114, %v2304
        %v2306 = vpop.f32.mrb[0].mxu0
        %2307 = vdwg.mxu0
        %v2308 = vmul.f32 %v2230, %v2305
        %v2309 = vadd.f32 %v1079, %v2308
        %v2310 = vtanh.pop %v2309
        %v2311 = vsub.f32 1.0, %v2237
        %v2312 = vmul.f32 %v2311, %v2310
        %v2313 = vmul.f32 %v2237, %v2080
        %v2314 = vadd.f32 %v2312, %v2313
        %vm2315 = vcmp.gt.s32.totalorder %v1116, 4
        %v2316 = vsel %vm2315, 1, 0
        %2317 = vset.pattern.permute.xlu0 0
        %2318 = vperm.xlu0 %2317, %v2316
        %v2319 = vpop.permute.xlu0 %2318
        %vm2320 = vcmp.eq.s32.totalorder %v2319, 1
        %v2321 = vsel %vm2320, %v2314, %v2080
        %v2323 = vsel %vm735, %v2321, 0
        %2325 = vmatprep.subr.mxu0 0.0
        %2326 = vmatpush1.msra.mxu0 %v1097
        %2327 = vmatprep.subr.mxu0 0.0
        %2328 = vmatpush1.msra.mxu0 %v1098
        %2329 = vmatprep.subr.mxu0 0.0
        %2330 = vmatpush1.msra.mxu0 %v1099
        %2331 = vmatprep.subr.mxu0 0.0
        %2332 = vmatpush1.msra.mxu0 %v1100
        %2333 = vmatprep.subr.mxu0 0.0
        %2334 = vmatpush1.msra.mxu0 0.0
        %2335 = vmatprep.subr.mxu0 0.0
        %2336 = vmatpush1.msra.mxu0 0.0
        %2337 = vmatprep.subr.mxu0 0.0
        %2338 = vmatpush1.msra.mxu0 0.0
        %2339 = vmatprep.subr.mxu0 0.0
        %2340 = vmatpush1.msra.mxu0 0.0
        %2341 = vmatprep.subr.mxu0 0.0
        %2342 = vmatpush1.msra.mxu0 0.0
        %2343 = vmatprep.subr.mxu0 0.0
        %2344 = vmatpush1.msra.mxu0 0.0
        %2345 = vmatprep.subr.mxu0 0.0
        %2346 = vmatpush1.msra.mxu0 0.0
        %2347 = vmatprep.subr.mxu0 0.0
        %2348 = vmatpush1.msra.mxu0 0.0
        %2349 = vmatprep.subr.mxu0 0.0
        %2350 = vmatpush1.msra.mxu0 0.0
        %2351 = vmatprep.subr.mxu0 0.0
        %2352 = vmatpush1.msra.mxu0 0.0
        %2353 = vmatprep.subr.mxu0 0.0
        %2354 = vmatpush1.msra.mxu0 0.0
        %2355 = vmatprep.subr.mxu0 0.0
        %2356 = vmatpush1.msra.mxu0 0.0
        %2357 = vmatprep.subr.mxu0 0.0
        %2358 = vmatpush1.msra.mxu0 0.0
        %2359 = vmatprep.subr.mxu0 0.0
        %2360 = vmatpush1.msra.mxu0 0.0
        %2361 = vmatprep.subr.mxu0 0.0
        %2362 = vmatpush1.msra.mxu0 0.0
        %2363 = vmatprep.subr.mxu0 0.0
        %2364 = vmatpush1.msra.mxu0 0.0
        %2365 = vmatprep.subr.mxu0 0.0
        %2366 = vmatpush1.msra.mxu0 0.0
        %2367 = vmatprep.subr.mxu0 0.0
        %2368 = vmatpush1.msra.mxu0 0.0
        %2369 = vmatprep.subr.mxu0 0.0
        %2370 = vmatpush1.msra.mxu0 0.0
        %2371 = vmatprep.subr.mxu0 0.0
        %2372 = vmatpush1.msra.mxu0 0.0
        %2373 = vmatprep.subr.mxu0 0.0
        %2374 = vmatpush1.msra.mxu0 0.0
        %2375 = vmatprep.subr.mxu0 0.0
        %2376 = vmatpush1.msra.mxu0 0.0
        %2377 = vmatprep.subr.mxu0 0.0
        %2378 = vmatpush1.msra.mxu0 0.0
        %2379 = vmatprep.subr.mxu0 0.0
        %2380 = vmatpush1.msra.mxu0 0.0
        %2381 = vmatprep.subr.mxu0 0.0
        %2382 = vmatpush1.msra.mxu0 0.0
        %2383 = vmatprep.subr.mxu0 0.0
        %2384 = vmatpush1.msra.mxu0 0.0
        %2385 = vmatprep.subr.mxu0 0.0
        %2386 = vmatpush1.msra.mxu0 0.0
        %2387 = vmatprep.subr.mxu0 0.0
        %2388 = vmatpush1.msra.mxu0 0.0
        %2389 = vmatprep.mubr.f32.mxu0 0.0
        %2390 = vmatmul.mubr.f32.gmra.mrb[0].mxu0 %v2323
        %v2391 = vpop.f32.mrb[0].mxu0
        %v2392 = vadd.f32 0.0, %v2391
        %v2393 = vpop.f32.mrb[0].mxu0
        %2394 = vdwg.mxu0
        %2395 = vmatprep.subr.mxu0 0.0
        %2396 = vmatpush1.msra.mxu0 %v1101
        %2397 = vmatprep.subr.mxu0 0.0
        %2398 = vmatpush1.msra.mxu0 %v1102
        %2399 = vmatprep.subr.mxu0 0.0
        %2400 = vmatpush1.msra.mxu0 %v1103
        %2401 = vmatprep.subr.mxu0 0.0
        %2402 = vmatpush1.msra.mxu0 %v1104
        %2403 = vmatprep.subr.mxu0 0.0
        %2404 = vmatpush1.msra.mxu0 0.0
        %2405 = vmatprep.subr.mxu0 0.0
        %2406 = vmatpush1.msra.mxu0 0.0
        %2407 = vmatprep.subr.mxu0 0.0
        %2408 = vmatpush1.msra.mxu0 0.0
        %2409 = vmatprep.subr.mxu0 0.0
        %2410 = vmatpush1.msra.mxu0 0.0
        %2411 = vmatprep.subr.mxu0 0.0
        %2412 = vmatpush1.msra.mxu0 0.0
        %2413 = vmatprep.subr.mxu0 0.0
        %2414 = vmatpush1.msra.mxu0 0.0
        %2415 = vmatprep.subr.mxu0 0.0
        %2416 = vmatpush1.msra.mxu0 0.0
        %2417 = vmatprep.subr.mxu0 0.0
        %2418 = vmatpush1.msra.mxu0 0.0
        %2419 = vmatprep.subr.mxu0 0.0
        %2420 = vmatpush1.msra.mxu0 0.0
        %2421 = vmatprep.subr.mxu0 0.0
        %2422 = vmatpush1.msra.mxu0 0.0
        %2423 = vmatprep.subr.mxu0 0.0
        %2424 = vmatpush1.msra.mxu0 0.0
        %2425 = vmatprep.subr.mxu0 0.0
        %2426 = vmatpush1.msra.mxu0 0.0
        %2427 = vmatprep.subr.mxu0 0.0
        %2428 = vmatpush1.msra.mxu0 0.0
        %2429 = vmatprep.subr.mxu0 0.0
        %2430 = vmatpush1.msra.mxu0 0.0
        %2431 = vmatprep.subr.mxu0 0.0
        %2432 = vmatpush1.msra.mxu0 0.0
        %2433 = vmatprep.subr.mxu0 0.0
        %2434 = vmatpush1.msra.mxu0 0.0
        %2435 = vmatprep.subr.mxu0 0.0
        %2436 = vmatpush1.msra.mxu0 0.0
        %2437 = vmatprep.subr.mxu0 0.0
        %2438 = vmatpush1.msra.mxu0 0.0
        %2439 = vmatprep.subr.mxu0 0.0
        %2440 = vmatpush1.msra.mxu0 0.0
        %2441 = vmatprep.subr.mxu0 0.0
        %2442 = vmatpush1.msra.mxu0 0.0
        %2443 = vmatprep.subr.mxu0 0.0
        %2444 = vmatpush1.msra.mxu0 0.0
        %2445 = vmatprep.subr.mxu0 0.0
        %2446 = vmatpush1.msra.mxu0 0.0
        %2447 = vmatprep.subr.mxu0 0.0
        %2448 = vmatpush1.msra.mxu0 0.0
        %2449 = vmatprep.subr.mxu0 0.0
        %2450 = vmatpush1.msra.mxu0 0.0
        %2451 = vmatprep.subr.mxu0 0.0
        %2452 = vmatpush1.msra.mxu0 0.0
        %2453 = vmatprep.subr.mxu0 0.0
        %2454 = vmatpush1.msra.mxu0 0.0
        %2455 = vmatprep.subr.mxu0 0.0
        %2456 = vmatpush1.msra.mxu0 0.0
        %2457 = vmatprep.subr.mxu0 0.0
        %2458 = vmatpush1.msra.mxu0 0.0
        %2459 = vmatprep.mubr.f32.mxu0 0.0
        %2460 = vmatmul.mubr.f32.gmra.mrb[0].mxu0 %v2323
        %v2461 = vpop.f32.mrb[0].mxu0
        %v2462 = vadd.f32 0.0, %v2461
        %v2463 = vpop.f32.mrb[0].mxu0
        %2464 = vdwg.mxu0
        %v2465 = vadd.f32 %v852, %v2392
        %v2466 = vxor.u32 %v2465, 2147483648
        %v2467 = vmul.f32 %v2466, 1.442695
        %v2468 = vpow.pop %v2467
        %v2469 = vadd.f32 %v2468, 1.0
        %v2470 = vrcp.pop %v2469
        %v2471 = vmul.f32 1.0, %v2470
        %v2472 = vadd.f32 %v968, %v2462
        %v2473 = vxor.u32 %v2472, 2147483648
        %v2474 = vmul.f32 %v2473, 1.442695
        %v2475 = vpow.pop %v2474
        %v2476 = vadd.f32 %v2475, 1.0
        %v2477 = vrcp.pop %v2476
        %v2478 = vmul.f32 1.0, %v2477
        %2479 = vmatprep.subr.mxu0 0.0
        %2480 = vmatpush1.msra.mxu0 %v1105
        %2481 = vmatprep.subr.mxu0 0.0
        %2482 = vmatpush1.msra.mxu0 %v1106
        %2483 = vmatprep.subr.mxu0 0.0
        %2484 = vmatpush1.msra.mxu0 %v1107
        %2485 = vmatprep.subr.mxu0 0.0
        %2486 = vmatpush1.msra.mxu0 %v1108
        %2487 = vmatprep.subr.mxu0 0.0
        %2488 = vmatpush1.msra.mxu0 0.0
        %2489 = vmatprep.subr.mxu0 0.0
        %2490 = vmatpush1.msra.mxu0 0.0
        %2491 = vmatprep.subr.mxu0 0.0
        %2492 = vmatpush1.msra.mxu0 0.0
        %2493 = vmatprep.subr.mxu0 0.0
        %2494 = vmatpush1.msra.mxu0 0.0
        %2495 = vmatprep.subr.mxu0 0.0
        %2496 = vmatpush1.msra.mxu0 0.0
        %2497 = vmatprep.subr.mxu0 0.0
        %2498 = vmatpush1.msra.mxu0 0.0
        %2499 = vmatprep.subr.mxu0 0.0
        %2500 = vmatpush1.msra.mxu0 0.0
        %2501 = vmatprep.subr.mxu0 0.0
        %2502 = vmatpush1.msra.mxu0 0.0
        %2503 = vmatprep.subr.mxu0 0.0
        %2504 = vmatpush1.msra.mxu0 0.0
        %2505 = vmatprep.subr.mxu0 0.0
        %2506 = vmatpush1.msra.mxu0 0.0
        %2507 = vmatprep.subr.mxu0 0.0
        %2508 = vmatpush1.msra.mxu0 0.0
        %2509 = vmatprep.subr.mxu0 0.0
        %2510 = vmatpush1.msra.mxu0 0.0
        %2511 = vmatprep.subr.mxu0 0.0
        %2512 = vmatpush1.msra.mxu0 0.0
        %2513 = vmatprep.subr.mxu0 0.0
        %2514 = vmatpush1.msra.mxu0 0.0
        %2515 = vmatprep.subr.mxu0 0.0
        %2516 = vmatpush1.msra.mxu0 0.0
        %2517 = vmatprep.subr.mxu0 0.0
        %2518 = vmatpush1.msra.mxu0 0.0
        %2519 = vmatprep.subr.mxu0 0.0
        %2520 = vmatpush1.msra.mxu0 0.0
        %2521 = vmatprep.subr.mxu0 0.0
        %2522 = vmatpush1.msra.mxu0 0.0
        %2523 = vmatprep.subr.mxu0 0.0
        %2524 = vmatpush1.msra.mxu0 0.0
        %2525 = vmatprep.subr.mxu0 0.0
        %2526 = vmatpush1.msra.mxu0 0.0
        %2527 = vmatprep.subr.mxu0 0.0
        %2528 = vmatpush1.msra.mxu0 0.0
        %2529 = vmatprep.subr.mxu0 0.0
        %2530 = vmatpush1.msra.mxu0 0.0
        %2531 = vmatprep.subr.mxu0 0.0
        %2532 = vmatpush1.msra.mxu0 0.0
        %2533 = vmatprep.subr.mxu0 0.0
        %2534 = vmatpush1.msra.mxu0 0.0
        %2535 = vmatprep.subr.mxu0 0.0
        %2536 = vmatpush1.msra.mxu0 0.0
        %2537 = vmatprep.subr.mxu0 0.0
        %2538 = vmatpush1.msra.mxu0 0.0
        %2539 = vmatprep.subr.mxu0 0.0
        %2540 = vmatpush1.msra.mxu0 0.0
        %2541 = vmatprep.subr.mxu0 0.0
        %2542 = vmatpush1.msra.mxu0 0.0
        %2543 = vmatprep.mubr.f32.mxu0 0.0
        %2544 = vmatmul.mubr.f32.gmra.mrb[0].mxu0 %v2323
        %v2545 = vpop.f32.mrb[0].mxu0
        %v2546 = vadd.f32 %v1114, %v2545
        %v2547 = vpop.f32.mrb[0].mxu0
        %2548 = vdwg.mxu0
        %v2549 = vmul.f32 %v2471, %v2546
        %v2550 = vadd.f32 %v1084, %v2549
        %v2551 = vtanh.pop %v2550
        %v2552 = vsub.f32 1.0, %v2478
        %v2553 = vmul.f32 %v2552, %v2551
        %v2554 = vmul.f32 %v2478, %v2321
        %v2555 = vadd.f32 %v2553, %v2554
        %vm2556 = vcmp.gt.s32.totalorder %v1116, 5
        %v2557 = vsel %vm2556, 1, 0
        %2558 = vset.pattern.permute.xlu0 0
        %2559 = vperm.xlu0 %2558, %v2557
        %v2560 = vpop.permute.xlu0 %2559
        %vm2561 = vcmp.eq.s32.totalorder %v2560, 1
        %v2562 = vsel %vm2561, %v2555, %v2321
        %v2564 = vsel %vm735, %v2562, 0
        %2566 = vmatprep.subr.mxu0 0.0
        %2567 = vmatpush1.msra.mxu0 %v1097
        %2568 = vmatprep.subr.mxu0 0.0
        %2569 = vmatpush1.msra.mxu0 %v1098
        %2570 = vmatprep.subr.mxu0 0.0
        %2571 = vmatpush1.msra.mxu0 %v1099
        %2572 = vmatprep.subr.mxu0 0.0
        %2573 = vmatpush1.msra.mxu0 %v1100
        %2574 = vmatprep.subr.mxu0 0.0
        %2575 = vmatpush1.msra.mxu0 0.0
        %2576 = vmatprep.subr.mxu0 0.0
        %2577 = vmatpush1.msra.mxu0 0.0
        %2578 = vmatprep.subr.mxu0 0.0
        %2579 = vmatpush1.msra.mxu0 0.0
        %2580 = vmatprep.subr.mxu0 0.0
        %2581 = vmatpush1.msra.mxu0 0.0
        %2582 = vmatprep.subr.mxu0 0.0
        %2583 = vmatpush1.msra.mxu0 0.0
        %2584 = vmatprep.subr.mxu0 0.0
        %2585 = vmatpush1.msra.mxu0 0.0
        %2586 = vmatprep.subr.mxu0 0.0
        %2587 = vmatpush1.msra.mxu0 0.0
        %2588 = vmatprep.subr.mxu0 0.0
        %2589 = vmatpush1.msra.mxu0 0.0
        %2590 = vmatprep.subr.mxu0 0.0
        %2591 = vmatpush1.msra.mxu0 0.0
        %2592 = vmatprep.subr.mxu0 0.0
        %2593 = vmatpush1.msra.mxu0 0.0
        %2594 = vmatprep.subr.mxu0 0.0
        %2595 = vmatpush1.msra.mxu0 0.0
        %2596 = vmatprep.subr.mxu0 0.0
        %2597 = vmatpush1.msra.mxu0 0.0
        %2598 = vmatprep.subr.mxu0 0.0
        %2599 = vmatpush1.msra.mxu0 0.0
        %2600 = vmatprep.subr.mxu0 0.0
        %2601 = vmatpush1.msra.mxu0 0.0
        %2602 = vmatprep.subr.mxu0 0.0
        %2603 = vmatpush1.msra.mxu0 0.0
        %2604 = vmatprep.subr.mxu0 0.0
        %2605 = vmatpush1.msra.mxu0 0.0
        %2606 = vmatprep.subr.mxu0 0.0
        %2607 = vmatpush1.msra.mxu0 0.0
        %2608 = vmatprep.subr.mxu0 0.0
        %2609 = vmatpush1.msra.mxu0 0.0
        %2610 = vmatprep.subr.mxu0 0.0
        %2611 = vmatpush1.msra.mxu0 0.0
        %2612 = vmatprep.subr.mxu0 0.0
        %2613 = vmatpush1.msra.mxu0 0.0
        %2614 = vmatprep.subr.mxu0 0.0
        %2615 = vmatpush1.msra.mxu0 0.0
        %2616 = vmatprep.subr.mxu0 0.0
        %2617 = vmatpush1.msra.mxu0 0.0
        %2618 = vmatprep.subr.mxu0 0.0
        %2619 = vmatpush1.msra.mxu0 0.0
        %2620 = vmatprep.subr.mxu0 0.0
        %2621 = vmatpush1.msra.mxu0 0.0
        %2622 = vmatprep.subr.mxu0 0.0
        %2623 = vmatpush1.msra.mxu0 0.0
        %2624 = vmatprep.subr.mxu0 0.0
        %2625 = vmatpush1.msra.mxu0 0.0
        %2626 = vmatprep.subr.mxu0 0.0
        %2627 = vmatpush1.msra.mxu0 0.0
        %2628 = vmatprep.subr.mxu0 0.0
        %2629 = vmatpush1.msra.mxu0 0.0
        %2630 = vmatprep.mubr.f32.mxu0 0.0
        %2631 = vmatmul.mubr.f32.gmra.mrb[0].mxu0 %v2564
        %v2632 = vpop.f32.mrb[0].mxu0
        %v2633 = vadd.f32 0.0, %v2632
        %v2634 = vpop.f32.mrb[0].mxu0
        %2635 = vdwg.mxu0
        %2636 = vmatprep.subr.mxu0 0.0
        %2637 = vmatpush1.msra.mxu0 %v1101
        %2638 = vmatprep.subr.mxu0 0.0
        %2639 = vmatpush1.msra.mxu0 %v1102
        %2640 = vmatprep.subr.mxu0 0.0
        %2641 = vmatpush1.msra.mxu0 %v1103
        %2642 = vmatprep.subr.mxu0 0.0
        %2643 = vmatpush1.msra.mxu0 %v1104
        %2644 = vmatprep.subr.mxu0 0.0
        %2645 = vmatpush1.msra.mxu0 0.0
        %2646 = vmatprep.subr.mxu0 0.0
        %2647 = vmatpush1.msra.mxu0 0.0
        %2648 = vmatprep.subr.mxu0 0.0
        %2649 = vmatpush1.msra.mxu0 0.0
        %2650 = vmatprep.subr.mxu0 0.0
        %2651 = vmatpush1.msra.mxu0 0.0
        %2652 = vmatprep.subr.mxu0 0.0
        %2653 = vmatpush1.msra.mxu0 0.0
        %2654 = vmatprep.subr.mxu0 0.0
        %2655 = vmatpush1.msra.mxu0 0.0
        %2656 = vmatprep.subr.mxu0 0.0
        %2657 = vmatpush1.msra.mxu0 0.0
        %2658 = vmatprep.subr.mxu0 0.0
        %2659 = vmatpush1.msra.mxu0 0.0
        %2660 = vmatprep.subr.mxu0 0.0
        %2661 = vmatpush1.msra.mxu0 0.0
        %2662 = vmatprep.subr.mxu0 0.0
        %2663 = vmatpush1.msra.mxu0 0.0
        %2664 = vmatprep.subr.mxu0 0.0
        %2665 = vmatpush1.msra.mxu0 0.0
        %2666 = vmatprep.subr.mxu0 0.0
        %2667 = vmatpush1.msra.mxu0 0.0
        %2668 = vmatprep.subr.mxu0 0.0
        %2669 = vmatpush1.msra.mxu0 0.0
        %2670 = vmatprep.subr.mxu0 0.0
        %2671 = vmatpush1.msra.mxu0 0.0
        %2672 = vmatprep.subr.mxu0 0.0
        %2673 = vmatpush1.msra.mxu0 0.0
        %2674 = vmatprep.subr.mxu0 0.0
        %2675 = vmatpush1.msra.mxu0 0.0
        %2676 = vmatprep.subr.mxu0 0.0
        %2677 = vmatpush1.msra.mxu0 0.0
        %2678 = vmatprep.subr.mxu0 0.0
        %2679 = vmatpush1.msra.mxu0 0.0
        %2680 = vmatprep.subr.mxu0 0.0
        %2681 = vmatpush1.msra.mxu0 0.0
        %2682 = vmatprep.subr.mxu0 0.0
        %2683 = vmatpush1.msra.mxu0 0.0
        %2684 = vmatprep.subr.mxu0 0.0
        %2685 = vmatpush1.msra.mxu0 0.0
        %2686 = vmatprep.subr.mxu0 0.0
        %2687 = vmatpush1.msra.mxu0 0.0
        %2688 = vmatprep.subr.mxu0 0.0
        %2689 = vmatpush1.msra.mxu0 0.0
        %2690 = vmatprep.subr.mxu0 0.0
        %2691 = vmatpush1.msra.mxu0 0.0
        %2692 = vmatprep.subr.mxu0 0.0
        %2693 = vmatpush1.msra.mxu0 0.0
        %2694 = vmatprep.subr.mxu0 0.0
        %2695 = vmatpush1.msra.mxu0 0.0
        %2696 = vmatprep.subr.mxu0 0.0
        %2697 = vmatpush1.msra.mxu0 0.0
        %2698 = vmatprep.subr.mxu0 0.0
        %2699 = vmatpush1.msra.mxu0 0.0
        %2700 = vmatprep.mubr.f32.mxu0 0.0
        %2701 = vmatmul.mubr.f32.gmra.mrb[0].mxu0 %v2564
        %v2702 = vpop.f32.mrb[0].mxu0
        %v2703 = vadd.f32 0.0, %v2702
        %v2704 = vpop.f32.mrb[0].mxu0
        %2705 = vdwg.mxu0
        %v2706 = vadd.f32 %v857, %v2633
        %v2707 = vxor.u32 %v2706, 2147483648
        %v2708 = vmul.f32 %v2707, 1.442695
        %v2709 = vpow.pop %v2708
        %v2710 = vadd.f32 %v2709, 1.0
        %v2711 = vrcp.pop %v2710
        %v2712 = vmul.f32 1.0, %v2711
        %v2713 = vadd.f32 %v973, %v2703
        %v2714 = vxor.u32 %v2713, 2147483648
        %v2715 = vmul.f32 %v2714, 1.442695
        %v2716 = vpow.pop %v2715
        %v2717 = vadd.f32 %v2716, 1.0
        %v2718 = vrcp.pop %v2717
        %v2719 = vmul.f32 1.0, %v2718
        %2720 = vmatprep.subr.mxu0 0.0
        %2721 = vmatpush1.msra.mxu0 %v1105
        %2722 = vmatprep.subr.mxu0 0.0
        %2723 = vmatpush1.msra.mxu0 %v1106
        %2724 = vmatprep.subr.mxu0 0.0
        %2725 = vmatpush1.msra.mxu0 %v1107
        %2726 = vmatprep.subr.mxu0 0.0
        %2727 = vmatpush1.msra.mxu0 %v1108
        %2728 = vmatprep.subr.mxu0 0.0
        %2729 = vmatpush1.msra.mxu0 0.0
        %2730 = vmatprep.subr.mxu0 0.0
        %2731 = vmatpush1.msra.mxu0 0.0
        %2732 = vmatprep.subr.mxu0 0.0
        %2733 = vmatpush1.msra.mxu0 0.0
        %2734 = vmatprep.subr.mxu0 0.0
        %2735 = vmatpush1.msra.mxu0 0.0
        %2736 = vmatprep.subr.mxu0 0.0
        %2737 = vmatpush1.msra.mxu0 0.0
        %2738 = vmatprep.subr.mxu0 0.0
        %2739 = vmatpush1.msra.mxu0 0.0
        %2740 = vmatprep.subr.mxu0 0.0
        %2741 = vmatpush1.msra.mxu0 0.0
        %2742 = vmatprep.subr.mxu0 0.0
        %2743 = vmatpush1.msra.mxu0 0.0
        %2744 = vmatprep.subr.mxu0 0.0
        %2745 = vmatpush1.msra.mxu0 0.0
        %2746 = vmatprep.subr.mxu0 0.0
        %2747 = vmatpush1.msra.mxu0 0.0
        %2748 = vmatprep.subr.mxu0 0.0
        %2749 = vmatpush1.msra.mxu0 0.0
        %2750 = vmatprep.subr.mxu0 0.0
        %2751 = vmatpush1.msra.mxu0 0.0
        %2752 = vmatprep.subr.mxu0 0.0
        %2753 = vmatpush1.msra.mxu0 0.0
        %2754 = vmatprep.subr.mxu0 0.0
        %2755 = vmatpush1.msra.mxu0 0.0
        %2756 = vmatprep.subr.mxu0 0.0
        %2757 = vmatpush1.msra.mxu0 0.0
        %2758 = vmatprep.subr.mxu0 0.0
        %2759 = vmatpush1.msra.mxu0 0.0
        %2760 = vmatprep.subr.mxu0 0.0
        %2761 = vmatpush1.msra.mxu0 0.0
        %2762 = vmatprep.subr.mxu0 0.0
        %2763 = vmatpush1.msra.mxu0 0.0
        %2764 = vmatprep.subr.mxu0 0.0
        %2765 = vmatpush1.msra.mxu0 0.0
        %2766 = vmatprep.subr.mxu0 0.0
        %2767 = vmatpush1.msra.mxu0 0.0
        %2768 = vmatprep.subr.mxu0 0.0
        %2769 = vmatpush1.msra.mxu0 0.0
        %2770 = vmatprep.subr.mxu0 0.0
        %2771 = vmatpush1.msra.mxu0 0.0
        %2772 = vmatprep.subr.mxu0 0.0
        %2773 = vmatpush1.msra.mxu0 0.0
        %2774 = vmatprep.subr.mxu0 0.0
        %2775 = vmatpush1.msra.mxu0 0.0
        %2776 = vmatprep.subr.mxu0 0.0
        %2777 = vmatpush1.msra.mxu0 0.0
        %2778 = vmatprep.subr.mxu0 0.0
        %2779 = vmatpush1.msra.mxu0 0.0
        %2780 = vmatprep.subr.mxu0 0.0
        %2781 = vmatpush1.msra.mxu0 0.0
        %2782 = vmatprep.subr.mxu0 0.0
        %2783 = vmatpush1.msra.mxu0 0.0
        %2784 = vmatprep.mubr.f32.mxu0 0.0
        %2785 = vmatmul.mubr.f32.gmra.mrb[0].mxu0 %v2564
        %v2786 = vpop.f32.mrb[0].mxu0
        %v2787 = vadd.f32 %v1114, %v2786
        %v2788 = vpop.f32.mrb[0].mxu0
        %2789 = vdwg.mxu0
        %v2790 = vmul.f32 %v2712, %v2787
        %v2791 = vadd.f32 %v1089, %v2790
        %v2792 = vtanh.pop %v2791
        %v2793 = vsub.f32 1.0, %v2719
        %v2794 = vmul.f32 %v2793, %v2792
        %v2795 = vmul.f32 %v2719, %v2562
        %v2796 = vadd.f32 %v2794, %v2795
        %vm2797 = vcmp.gt.s32.totalorder %v1116, 6
        %v2798 = vsel %vm2797, 1, 0
        %2799 = vset.pattern.permute.xlu0 0
        %2800 = vperm.xlu0 %2799, %v2798
        %v2801 = vpop.permute.xlu0 %2800
        %vm2802 = vcmp.eq.s32.totalorder %v2801, 1
        %v2803 = vsel %vm2802, %v2796, %v2562
        %v2805 = vsel %vm735, %v2803, 0
        %2807 = vmatprep.subr.mxu0 0.0
        %2808 = vmatpush1.msra.mxu0 %v1097
        %2809 = vmatprep.subr.mxu0 0.0
        %2810 = vmatpush1.msra.mxu0 %v1098
        %2811 = vmatprep.subr.mxu0 0.0
        %2812 = vmatpush1.msra.mxu0 %v1099
        %2813 = vmatprep.subr.mxu0 0.0
        %2814 = vmatpush1.msra.mxu0 %v1100
        %2815 = vmatprep.subr.mxu0 0.0
        %2816 = vmatpush1.msra.mxu0 0.0
        %2817 = vmatprep.subr.mxu0 0.0
        %2818 = vmatpush1.msra.mxu0 0.0
        %2819 = vmatprep.subr.mxu0 0.0
        %2820 = vmatpush1.msra.mxu0 0.0
        %2821 = vmatprep.subr.mxu0 0.0
        %2822 = vmatpush1.msra.mxu0 0.0
        %2823 = vmatprep.subr.mxu0 0.0
        %2824 = vmatpush1.msra.mxu0 0.0
        %2825 = vmatprep.subr.mxu0 0.0
        %2826 = vmatpush1.msra.mxu0 0.0
        %2827 = vmatprep.subr.mxu0 0.0
        %2828 = vmatpush1.msra.mxu0 0.0
        %2829 = vmatprep.subr.mxu0 0.0
        %2830 = vmatpush1.msra.mxu0 0.0
        %2831 = vmatprep.subr.mxu0 0.0
        %2832 = vmatpush1.msra.mxu0 0.0
        %2833 = vmatprep.subr.mxu0 0.0
        %2834 = vmatpush1.msra.mxu0 0.0
        %2835 = vmatprep.subr.mxu0 0.0
        %2836 = vmatpush1.msra.mxu0 0.0
        %2837 = vmatprep.subr.mxu0 0.0
        %2838 = vmatpush1.msra.mxu0 0.0
        %2839 = vmatprep.subr.mxu0 0.0
        %2840 = vmatpush1.msra.mxu0 0.0
        %2841 = vmatprep.subr.mxu0 0.0
        %2842 = vmatpush1.msra.mxu0 0.0
        %2843 = vmatprep.subr.mxu0 0.0
        %2844 = vmatpush1.msra.mxu0 0.0
        %2845 = vmatprep.subr.mxu0 0.0
        %2846 = vmatpush1.msra.mxu0 0.0
        %2847 = vmatprep.subr.mxu0 0.0
        %2848 = vmatpush1.msra.mxu0 0.0
        %2849 = vmatprep.subr.mxu0 0.0
        %2850 = vmatpush1.msra.mxu0 0.0
        %2851 = vmatprep.subr.mxu0 0.0
        %2852 = vmatpush1.msra.mxu0 0.0
        %2853 = vmatprep.subr.mxu0 0.0
        %2854 = vmatpush1.msra.mxu0 0.0
        %2855 = vmatprep.subr.mxu0 0.0
        %2856 = vmatpush1.msra.mxu0 0.0
        %2857 = vmatprep.subr.mxu0 0.0
        %2858 = vmatpush1.msra.mxu0 0.0
        %2859 = vmatprep.subr.mxu0 0.0
        %2860 = vmatpush1.msra.mxu0 0.0
        %2861 = vmatprep.subr.mxu0 0.0
        %2862 = vmatpush1.msra.mxu0 0.0
        %2863 = vmatprep.subr.mxu0 0.0
        %2864 = vmatpush1.msra.mxu0 0.0
        %2865 = vmatprep.subr.mxu0 0.0
        %2866 = vmatpush1.msra.mxu0 0.0
        %2867 = vmatprep.subr.mxu0 0.0
        %2868 = vmatpush1.msra.mxu0 0.0
        %2869 = vmatprep.subr.mxu0 0.0
        %2870 = vmatpush1.msra.mxu0 0.0
        %2871 = vmatprep.mubr.f32.mxu0 0.0
        %2872 = vmatmul.mubr.f32.gmra.mrb[0].mxu0 %v2805
        %v2873 = vpop.f32.mrb[0].mxu0
        %v2874 = vadd.f32 0.0, %v2873
        %v2875 = vpop.f32.mrb[0].mxu0
        %2876 = vdwg.mxu0
        %2877 = vmatprep.subr.mxu0 0.0
        %2878 = vmatpush1.msra.mxu0 %v1101
        %2879 = vmatprep.subr.mxu0 0.0
        %2880 = vmatpush1.msra.mxu0 %v1102
        %2881 = vmatprep.subr.mxu0 0.0
        %2882 = vmatpush1.msra.mxu0 %v1103
        %2883 = vmatprep.subr.mxu0 0.0
        %2884 = vmatpush1.msra.mxu0 %v1104
        %2885 = vmatprep.subr.mxu0 0.0
        %2886 = vmatpush1.msra.mxu0 0.0
        %2887 = vmatprep.subr.mxu0 0.0
        %2888 = vmatpush1.msra.mxu0 0.0
        %2889 = vmatprep.subr.mxu0 0.0
        %2890 = vmatpush1.msra.mxu0 0.0
        %2891 = vmatprep.subr.mxu0 0.0
        %2892 = vmatpush1.msra.mxu0 0.0
        %2893 = vmatprep.subr.mxu0 0.0
        %2894 = vmatpush1.msra.mxu0 0.0
        %2895 = vmatprep.subr.mxu0 0.0
        %2896 = vmatpush1.msra.mxu0 0.0
        %2897 = vmatprep.subr.mxu0 0.0
        %2898 = vmatpush1.msra.mxu0 0.0
        %2899 = vmatprep.subr.mxu0 0.0
        %2900 = vmatpush1.msra.mxu0 0.0
        %2901 = vmatprep.subr.mxu0 0.0
        %2902 = vmatpush1.msra.mxu0 0.0
        %2903 = vmatprep.subr.mxu0 0.0
        %2904 = vmatpush1.msra.mxu0 0.0
        %2905 = vmatprep.subr.mxu0 0.0
        %2906 = vmatpush1.msra.mxu0 0.0
        %2907 = vmatprep.subr.mxu0 0.0
        %2908 = vmatpush1.msra.mxu0 0.0
        %2909 = vmatprep.subr.mxu0 0.0
        %2910 = vmatpush1.msra.mxu0 0.0
        %2911 = vmatprep.subr.mxu0 0.0
        %2912 = vmatpush1.msra.mxu0 0.0
        %2913 = vmatprep.subr.mxu0 0.0
        %2914 = vmatpush1.msra.mxu0 0.0
        %2915 = vmatprep.subr.mxu0 0.0
        %2916 = vmatpush1.msra.mxu0 0.0
        %2917 = vmatprep.subr.mxu0 0.0
        %2918 = vmatpush1.msra.mxu0 0.0
        %2919 = vmatprep.subr.mxu0 0.0
        %2920 = vmatpush1.msra.mxu0 0.0
        %2921 = vmatprep.subr.mxu0 0.0
        %2922 = vmatpush1.msra.mxu0 0.0
        %2923 = vmatprep.subr.mxu0 0.0
        %2924 = vmatpush1.msra.mxu0 0.0
        %2925 = vmatprep.subr.mxu0 0.0
        %2926 = vmatpush1.msra.mxu0 0.0
        %2927 = vmatprep.subr.mxu0 0.0
        %2928 = vmatpush1.msra.mxu0 0.0
        %2929 = vmatprep.subr.mxu0 0.0
        %2930 = vmatpush1.msra.mxu0 0.0
        %2931 = vmatprep.subr.mxu0 0.0
        %2932 = vmatpush1.msra.mxu0 0.0
        %2933 = vmatprep.subr.mxu0 0.0
        %2934 = vmatpush1.msra.mxu0 0.0
        %2935 = vmatprep.subr.mxu0 0.0
        %2936 = vmatpush1.msra.mxu0 0.0
        %2937 = vmatprep.subr.mxu0 0.0
        %2938 = vmatpush1.msra.mxu0 0.0
        %2939 = vmatprep.subr.mxu0 0.0
        %2940 = vmatpush1.msra.mxu0 0.0
        %2941 = vmatprep.mubr.f32.mxu0 0.0
        %2942 = vmatmul.mubr.f32.gmra.mrb[0].mxu0 %v2805
        %v2943 = vpop.f32.mrb[0].mxu0
        %v2944 = vadd.f32 0.0, %v2943
        %v2945 = vpop.f32.mrb[0].mxu0
        %2946 = vdwg.mxu0
        %v2947 = vadd.f32 %v862, %v2874
        %v2948 = vxor.u32 %v2947, 2147483648
        %v2949 = vmul.f32 %v2948, 1.442695
        %v2950 = vpow.pop %v2949
        %v2951 = vadd.f32 %v2950, 1.0
        %v2952 = vrcp.pop %v2951
        %v2953 = vmul.f32 1.0, %v2952
        %v2954 = vadd.f32 %v978, %v2944
        %v2955 = vxor.u32 %v2954, 2147483648
        %v2956 = vmul.f32 %v2955, 1.442695
        %v2957 = vpow.pop %v2956
        %v2958 = vadd.f32 %v2957, 1.0
        %v2959 = vrcp.pop %v2958
        %v2960 = vmul.f32 1.0, %v2959
        %2961 = vmatprep.subr.mxu0 0.0
        %2962 = vmatpush1.msra.mxu0 %v1105
        %2963 = vmatprep.subr.mxu0 0.0
        %2964 = vmatpush1.msra.mxu0 %v1106
        %2965 = vmatprep.subr.mxu0 0.0
        %2966 = vmatpush1.msra.mxu0 %v1107
        %2967 = vmatprep.subr.mxu0 0.0
        %2968 = vmatpush1.msra.mxu0 %v1108
        %2969 = vmatprep.subr.mxu0 0.0
        %2970 = vmatpush1.msra.mxu0 0.0
        %2971 = vmatprep.subr.mxu0 0.0
        %2972 = vmatpush1.msra.mxu0 0.0
        %2973 = vmatprep.subr.mxu0 0.0
        %2974 = vmatpush1.msra.mxu0 0.0
        %2975 = vmatprep.subr.mxu0 0.0
        %2976 = vmatpush1.msra.mxu0 0.0
        %2977 = vmatprep.subr.mxu0 0.0
        %2978 = vmatpush1.msra.mxu0 0.0
        %2979 = vmatprep.subr.mxu0 0.0
        %2980 = vmatpush1.msra.mxu0 0.0
        %2981 = vmatprep.subr.mxu0 0.0
        %2982 = vmatpush1.msra.mxu0 0.0
        %2983 = vmatprep.subr.mxu0 0.0
        %2984 = vmatpush1.msra.mxu0 0.0
        %2985 = vmatprep.subr.mxu0 0.0
        %2986 = vmatpush1.msra.mxu0 0.0
        %2987 = vmatprep.subr.mxu0 0.0
        %2988 = vmatpush1.msra.mxu0 0.0
        %2989 = vmatprep.subr.mxu0 0.0
        %2990 = vmatpush1.msra.mxu0 0.0
        %2991 = vmatprep.subr.mxu0 0.0
        %2992 = vmatpush1.msra.mxu0 0.0
        %2993 = vmatprep.subr.mxu0 0.0
        %2994 = vmatpush1.msra.mxu0 0.0
        %2995 = vmatprep.subr.mxu0 0.0
        %2996 = vmatpush1.msra.mxu0 0.0
        %2997 = vmatprep.subr.mxu0 0.0
        %2998 = vmatpush1.msra.mxu0 0.0
        %2999 = vmatprep.subr.mxu0 0.0
        %3000 = vmatpush1.msra.mxu0 0.0
        %3001 = vmatprep.subr.mxu0 0.0
        %3002 = vmatpush1.msra.mxu0 0.0
        %3003 = vmatprep.subr.mxu0 0.0
        %3004 = vmatpush1.msra.mxu0 0.0
        %3005 = vmatprep.subr.mxu0 0.0
        %3006 = vmatpush1.msra.mxu0 0.0
        %3007 = vmatprep.subr.mxu0 0.0
        %3008 = vmatpush1.msra.mxu0 0.0
        %3009 = vmatprep.subr.mxu0 0.0
        %3010 = vmatpush1.msra.mxu0 0.0
        %3011 = vmatprep.subr.mxu0 0.0
        %3012 = vmatpush1.msra.mxu0 0.0
        %3013 = vmatprep.subr.mxu0 0.0
        %3014 = vmatpush1.msra.mxu0 0.0
        %3015 = vmatprep.subr.mxu0 0.0
        %3016 = vmatpush1.msra.mxu0 0.0
        %3017 = vmatprep.subr.mxu0 0.0
        %3018 = vmatpush1.msra.mxu0 0.0
        %3019 = vmatprep.subr.mxu0 0.0
        %3020 = vmatpush1.msra.mxu0 0.0
        %3021 = vmatprep.subr.mxu0 0.0
        %3022 = vmatpush1.msra.mxu0 0.0
        %3023 = vmatprep.subr.mxu0 0.0
        %3024 = vmatpush1.msra.mxu0 0.0
        %3025 = vmatprep.mubr.f32.mxu0 0.0
        %3026 = vmatmul.mubr.f32.gmra.mrb[0].mxu0 %v2805
        %v3027 = vpop.f32.mrb[0].mxu0
        %v3028 = vadd.f32 %v1114, %v3027
        %v3029 = vpop.f32.mrb[0].mxu0
        %3030 = vdwg.mxu0
        %v3031 = vmul.f32 %v2953, %v3028
        %v3032 = vadd.f32 %v1094, %v3031
        %v3033 = vtanh.pop %v3032
        %v3034 = vsub.f32 1.0, %v2960
        %v3035 = vmul.f32 %v3034, %v3033
        %v3036 = vmul.f32 %v2960, %v2803
        %v3037 = vadd.f32 %v3035, %v3036
        %vm3038 = vcmp.gt.s32.totalorder %v1116, 7
        %v3039 = vsel %vm3038, 1, 0
        %3040 = vset.pattern.permute.xlu0 0
        %3041 = vperm.xlu0 %3040, %v3039
        %v3042 = vpop.permute.xlu0 %3041
        %vm3043 = vcmp.eq.s32.totalorder %v3042, 1
        %v3044 = vsel %vm3043, %v3037, %v2803
        %3045 = vst.msk [vmem:[%s656] sm:$0xff] %vm735, %v3044
        %s3046 = sand.u32 %s379, 1
        %s3047 = scalar_lea.sflag [#allocation6], %s3046
        %s3048 = sand.u32 %s379, 1
        %s3049 = smul.addr %s3048, 8
        %s3050 = scalar_lea.vmem [#allocation9], %s3049
        // Predicated region
        $region77: #{tpu_custom_call.1} parent=67 // pred_check
          %p3051 = pneg %p389
        $region78: #{tpu_custom_call.1} parent=67 // pred_check_branch
          %3053 = sbr.rel (%p3051) target = $region80
        $region79: #{tpu_custom_call.1} parent=67 // pred_region
          %s3055 = ssub.s32 128, 128
          %3056 = vsyncadd %s3047, %s3055
          %s3057 = smul.addr %s39, 128
          %s3058 = scalar_lea.hbm %s13, %s3057
          %s3060 = sshll.u32 %s3050, 4
          %s3061 = int_to_ptr.vmem [resolvable:$true] %s3060
          %3063 = dma.vmem_to_hbm [thread:$0]  %s3061, 128, %s3058, %s3047
        $region80: #{tpu_custom_call.1} parent=67 // pred_fallthru
          _
      $region68: #{tpu_custom_call.1} parent=5 // pred_fallthru
        _
      %p3064 = scmp.le.s32.totalorder 2, %s34
      // Predicated region
      $region81: #{tpu_custom_call.1} parent=5 // pred_check
        %p3065 = pneg %p3064
      $region82: #{tpu_custom_call.1} parent=5 // pred_check_branch
        %3067 = sbr.rel (%p3065) target = $region84
      $region83: #{tpu_custom_call.1} parent=5 // pred_region
        %s3068 = ssub.s32 %s34, 2
        // Predicated region
        $region85: #{tpu_custom_call.1} parent=83 // pred_check
          %p3069 = pneg %p395
        $region86: #{tpu_custom_call.1} parent=83 // pred_check_branch
          %3071 = sbr.rel (%p3069) target = $region88
        $region87: #{tpu_custom_call.1} parent=83 // pred_region
          %s3072 = sand.u32 %s380, 1
          %s3073 = scalar_lea.sflag [#allocation6], %s3072
          %s3074 = sand.u32 %s380, 1
          %s3075 = smul.addr %s3074, 8
          %s3076 = scalar_lea.vmem [#allocation9], %s3075
          %3077 = dma.done %s3073, 128
        $region88: #{tpu_custom_call.1} parent=83 // pred_fallthru
          _
      $region84: #{tpu_custom_call.1} parent=5 // pred_fallthru
        _
    $region6: #{tpu_custom_call.1} parent=1 // loop_footer
      %s38 = sadd.s32 1, %s34
    $region7: #{tpu_custom_call.1} parent=1 // loop_footer_branch
      %33 = sbr.rel target = $region3
    $region8: #{tpu_custom_call.1} parent=1 // loop_exit
      _
    %3078 = vsyncpa [#allocation5], 1
    %s3079 = scalar_lea.sflag [#allocation5], 1
    %3080 = vsyncpa %s3079, 1
    %3081 = vsyncpa [#allocation8], 1
    %s3082 = scalar_lea.sflag [#allocation8], 1
    %3083 = vsyncpa %s3082, 1
    %3084 = vsyncpa [#allocation6], 1
    %s3085 = scalar_lea.sflag [#allocation6], 1
    %3086 = vsyncpa %s3085, 1

</llo_original>
